<compile_context>
chip_gen: v6e
topology: v6e:2x2x1
jax: 0.10.0
libtpu: 0.0.40
codegen_flags: <defaults>
</compile_context>

<pallas_src>
import numpy as np
import jax
import jax.numpy as jnp
from jax.experimental import pallas as pl
from jax.experimental.pallas import tpu as pltpu  # noqa: F401  (TPU backend namespace)

F32 = jnp.float32
MXU_DTYPE = jnp.bfloat16   # bf16 MXU operands, f32 accumulation

# ---------------- hyperparameters (small, consistent with the module) ----------------
TOKEN_SIZE = 64        # token_size
TOKEN_SIZE_OUT = 64    # token_size_out
EMB = 16               # args.embedding_size
HID = 32               # args.hidden_size
N_CLUSTER = 5          # args.n_cluster (priors unused in the train branch)
S1 = 2                 # args.s1_size
S2 = 4                 # args.s2_size
B = 2                  # batch
T = 8                  # max sequence length
BT = B * T
E2 = 2 * EMB           # 32
HB = 3 * HID           # 96  : the three encoder hidden states packed along lanes
GS = 128               # gate stride (r/z/n blocks padded to a vreg-aligned 128 lanes)
SCALES = (1, S1, S2)


def _mxu(a, b):
    """MXU matmul: bf16 operands, f32 accumulate."""
    return jnp.dot(a.astype(MXU_DTYPE), b.astype(MXU_DTYPE), preferred_element_type=F32)


def _layernorm(x, eps):
    mu = jnp.mean(x, axis=-1, keepdims=True)
    var = jnp.mean((x - mu) ** 2, axis=-1, keepdims=True)
    return (x - mu) * jax.lax.rsqrt(var + eps)


# -------- static pooling / group-sum operators (constants, block-diag per batch) -------
def _pool_matrix(scale):
    # rows r < T//scale average window [r*scale, (r+1)*scale); remaining rows are zero
    # (those positions are masked in the attention and never update the GRU state).
    p = np.zeros((T, T), np.float32)
    for r in range(T // scale):
        p[r, r * scale:(r + 1) * scale] = 1.0 / scale
    return p


# stacked pooling operators for scales s1 and s2 (scale 1 == identity, skipped in-kernel)
P12 = jnp.asarray(np.concatenate(
    [np.kron(np.eye(B, dtype=np.float32), _pool_matrix(s)) for s in (S1, S2)], axis=0))
# block-diag all-ones: per-batch group sum used as the softmax denominator (MXU reduce)
G_SUM = jnp.asarray(np.kron(np.eye(B, dtype=np.float32), np.ones((T, T), np.float32)))


# ================================ the fused Pallas kernel =============================

def _mst_oatd_kernel(adj_ref, dcol_ref, drow_ref, emb_ref, v_ref,
                     trajs_ref, tflat_ref,
                     co_wv_ref, co_w1_ref, co_b1_ref, co_w2_ref, co_b2_ref,
                     co_g_ref, co_beta_ref,
                     p12_ref, gsum_ref, maskcol_ref, enc_lens_ref, dec_lens_ref,
                     womega_ref, uomega_ref,
                     enc_wi_ref, enc_wh_ref, enc_bi_ref, enc_bh_ref,
                     w123_ref, head_w_ref, head_b_ref, eps_ref,
                     dec_wi_ref, dec_wh_ref, dec_bi_ref, dec_bh_ref,
                     lng_ref, lnb_ref, fow_ref, fob_ref,
                     out_ref, mlz_ref):
    # ---- 1) graph preprocess: nodes = (D A D) @ Embedding @ V  (D folded elementwise) ----
    scaled = adj_ref[...] * dcol_ref[...] * drow_ref[...]
    nodes = _mxu(_mxu(scaled, emb_ref[...]), v_ref[...])          # (TOKEN, EMB)

    # ---- 2) token gather as a one-hot MXU matmul (no XLA gather / HBM round trip) ----
    tok = jax.lax.broadcasted_iota(jnp.int32, (BT, TOKEN_SIZE), 1)
    onehot = (tok == trajs_ref[...]).astype(F32)                  # (BT, TOKEN)
    s_flat = _mxu(onehot, nodes)                                  # (BT, EMB)

    # ---- 3) co-attention: s|t branches packed block-diagonally along lanes ----
    # The reference's co-attention scores have shape (B,T,1,1) (seq.unsqueeze(2)): softmax
    # over the size-1 axis == 1 and matmul(coatt, v) == v, so Wq/Wk cancel and only Wv + FFN
    # + residual + LayerNorm remain.  Dropout(0.1): eval-mode identity.
    x_st = jnp.concatenate([s_flat, tflat_ref[...]], axis=1)      # (BT, 2E)
    cv = _mxu(x_st, co_wv_ref[...])                               # (BT, 2E) = [v_s | v_t]
    hh = jnp.maximum(_mxu(cv, co_w1_ref[...]) + co_b1_ref[...], 0.0)
    y = _mxu(hh, co_w2_ref[...]) + co_b2_ref[...] + cv            # FFN + residual
    g, beta = co_g_ref[...], co_beta_ref[...]
    st = jnp.concatenate([_layernorm(y[:, :EMB], 1e-6) * g + beta,
                          _layernorm(y[:, EMB:], 1e-6) * g + beta], axis=1)   # (BT, 2E)

    # ---- 4) multi-scale pooling (scale 1 == identity and is skipped) ----
    pooled = _mxu(p12_ref[...], st)                               # (2*BT, 2E)
    xs = (st, pooled[:BT, :], pooled[BT:, :])

    # ---- 5) temporal attention per scale: MXU logit + MXU group-sum softmax ----
    womega, uomega, gsum = womega_ref[...], uomega_ref[...], gsum_ref[...]
    attx = []
    for k in range(3):
        u = jnp.tanh(_mxu(xs[k], womega))                         # (BT, 2E)
        logit = _mxu(u, uomega)                                   # (BT, 1)
        # |logit| <= E2 * 0.1 with these params, so the max-subtraction is safely skipped;
        # masked entries (-1e10) underflow to exactly 0 after exp.
        e = jnp.exp(jnp.where(maskcol_ref[k] > 0.5, logit, -1e10))
        denom = jnp.dot(gsum, e, preferred_element_type=F32)      # per-batch sum via MXU
        attx.append(xs[k] * (e * pl.reciprocal(denom, approx=True)))
    attx_cat = jnp.concatenate(attx, axis=1)                      # (BT, 3*2E)

    # ---- 6) the three encoder GRUs as ONE block-diagonal recurrence ----
    # gate layout in the 3*GS = 384 columns: [r(96) pad | z(96) pad | n(96) pad],
    # each 96-wide group holding the 3 branches at 32-lane offsets matching h's layout.
    gx = _mxu(attx_cat, enc_wi_ref[...]) + enc_bi_ref[...]        # (BT, 3*GS)
    gx3 = gx.reshape(B, T, 3 * GS)
    gxr = gx3[:, :, :HB]                                          # hoisted gate lane-splits
    gxz = gx3[:, :, GS:GS + HB]
    gxn = gx3[:, :, 2 * GS:2 * GS + HB]
    whb = enc_wh_ref[...].astype(MXU_DTYPE)                       # hoisted bf16 cast
    bhb = enc_bh_ref[...]
    lens_lane = enc_lens_ref[...]                                 # (B, 3*HID) int32
    h = jnp.zeros((B, HB), F32)
    for t in range(T):                                            # static unroll
        gh = jnp.dot(h.astype(MXU_DTYPE), whb, preferred_element_type=F32) + bhb
        r = jax.nn.sigmoid(gxr[:, t, :] + gh[:, :HB])
        zg = jax.nn.sigmoid(gxz[:, t, :] + gh[:, GS:GS + HB])
        n = jnp.tanh(gxn[:, t, :] + r * gh[:, 2 * GS:2 * GS + HB])
        h_new = (1.0 - zg) * n + zg * h
        h = jnp.where(lens_lane > t, h_new, h)                    # pack_padded: freeze past len

    # ---- 7) weighted encoder fusion + fused fc_mu|fc_logvar head + reparameterize ----
    hw = h * w123_ref[...]                                        # W1/W2/W3 broadcast on lanes
    enc_final = hw[:, :HID] + hw[:, HID:2 * HID] + hw[:, 2 * HID:]
    ml = _mxu(enc_final, head_w_ref[...]) + head_b_ref[...]       # (B, 2H) = [mu | logvar]
    mu = ml[:, :HID]
    z = mu + eps_ref[...] * jnp.exp(0.5 * ml[:, HID:])
    mlz_ref[...] = jnp.concatenate([ml, z], axis=1)               # (B, 3H)

    # ---- 8) decoder GRU; the right-shifted input is a pure index offset on gx ----
    gxd = _mxu(st, dec_wi_ref[...]) + dec_bi_ref[...]             # (BT, 3H)
    gxd3 = gxd.reshape(B, T, 3 * HID)
    gdr, gdz, gdn = gxd3[:, :, :HID], gxd3[:, :, HID:2 * HID], gxd3[:, :, 2 * HID:]
    bi = dec_bi_ref[...]
    bir, biz, bin_ = bi[:, :HID], bi[:, HID:2 * HID], bi[:, 2 * HID:]
    dwh = dec_wh_ref[...].astype(MXU_DTYPE)
    dbh = dec_bh_ref[...]
    dlens = dec_lens_ref[...]                                     # (B, 1) int32
    hd = z
    outs = []
    for t in range(T):
        gh = jnp.dot(hd.astype(MXU_DTYPE), dwh, preferred_element_type=F32) + dbh
        if t == 0:                                                # d[:,0,:] == 0 -> gates = bias
            gr, gz_, gn = bir, biz, bin_
        else:                                                     # d[:,t,:] == st[:,t-1,:]
            gr, gz_, gn = gdr[:, t - 1, :], gdz[:, t - 1, :], gdn[:, t - 1, :]
        r = jax.nn.sigmoid(gr + gh[:, :HID])
        zz = jax.nn.sigmoid(gz_ + gh[:, HID:2 * HID])
        n = jnp.tanh(gn + r * gh[:, 2 * HID:])
        h_new = (1.0 - zz) * n + zz * hd
        valid = dlens > t
        hd = jnp.where(valid, h_new, hd)
        outs.append(jnp.where(valid, h_new, 0.0))                 # pad_packed_sequence zero-pads

    o_seq = jnp.stack(outs, axis=1).reshape(BT, HID)              # one stack+reshape, no row gathers

    # ---- 9) epilogue: LayerNorm(eps=1e-5) + fc_out, one lane-dense (BT, 64) store ----
    xn = _layernorm(o_seq, 1e-5) * lng_ref[...] + lnb_ref[...]
    out_ref[...] = _mxu(xn, fow_ref[...]) + fob_ref[...]


# ================================ wrapper / glue ======================================

def mst_oatd_forward(p, trajs, times, lengths, rng):
    bsz, t = trajs.shape

    # TODO(synk): TemporalEmbedding (d2v) source not provided; deterministic Time2Vec-style
    # stand-in, evaluated host-side (tiny elementwise op) rather than in-kernel sin.
    tt = times[..., None]
    t_flat = jnp.concatenate(
        [tt * p['t2v_w_lin'] + p['t2v_b_lin'],
         jnp.sin(tt * p['t2v_w_per'] + p['t2v_b_per'])], axis=-1).reshape(BT, EMB)

    # per-branch masks / scaled lengths (scale_process uses lengths // scale, as in the source)
    lens_scaled = jnp.stack([lengths // s for s in SCALES], axis=0)          # (3, B) int32
    t_idx = jnp.arange(T, dtype=jnp.int32)
    maskcol = (t_idx[None, None, :] < lens_scaled[:, :, None]).astype(F32).reshape(3, BT, 1)
    enc_lens_lane = jnp.repeat(lens_scaled.T.astype(jnp.int32), HID, axis=1)  # (B, 3*HID)
    dec_lens = lengths.reshape(B, 1).astype(jnp.int32)

    # train branch: `mode == 'pretrain' or 'train'` is always truthy in the original
    eps = jax.random.normal(rng, (bsz, HID), F32)                  # torch.randn_like -> fixed key

    out_flat, mlz = pl.pallas_call(
        _mst_oatd_kernel,
        out_shape=(jax.ShapeDtypeStruct((BT, TOKEN_SIZE_OUT), F32),
                   jax.ShapeDtypeStruct((B, HB), F32)),
    )(p['adj'], p['dinv_col'], p['dinv_row'], p['embedding'], p['V'],
      trajs.reshape(BT, 1).astype(jnp.int32), t_flat,
      p['co_Wv'], p['co_W1'], p['co_b1'], p['co_W2'], p['co_b2'],
      p['co_ln_g'], p['co_ln_b'],
      P12, G_SUM, maskcol, enc_lens_lane, dec_lens,
      p['w_omega'], p['u_omega'],
      p['enc_WiB'], p['enc_WhB'], p['enc_biB'], p['enc_bhB'],
      p['W123_lane'], p['fc_head_w'], p['fc_head_b'], eps,
      p['dec_Wi'], p['dec_Wh'], p['dec_bi'], p['dec_bh'],
      p['ln_out_g'], p['ln_out_b'], p['fc_out_w'], p['fc_out_b'])

    out = out_flat.reshape(bsz, t, TOKEN_SIZE_OUT)
    mu, logvar, z = mlz[:, :HID], mlz[:, HID:2 * HID], mlz[:, 2 * HID:]

    # TODO(synk): W1/W2/W3 .data renormalization is an in-place parameter side-effect that
    # does not change this forward's outputs; omitted.
    # PyTorch GRU hidden-state tensors carry a leading num_layers=1 axis.
    return out, mu[None], logvar[None], z[None]


# ================================ parameter init ======================================

def init_params(key):
    ks = iter(jax.random.split(key, 64))
    unif = lambda shape, a: jax.random.uniform(next(ks), shape, F32, -a, a)
    nrm = lambda shape, s=0.1: jax.random.normal(next(ks), shape, F32) * s

    p = {}
    # synthetic dense stand-ins for adj.npz / d_norm.npz
    adj = (jax.random.uniform(next(ks), (TOKEN_SIZE, TOKEN_SIZE)) < 0.1).astype(F32)
    adj = jnp.maximum(adj, adj.T)
    deg = jnp.sum(adj, axis=1) + 1.0
    dinv = 1.0 / jnp.sqrt(deg)
    p['adj'] = adj
    p['dinv_col'] = dinv.reshape(TOKEN_SIZE, 1).astype(F32)
    p['dinv_row'] = dinv.reshape(1, TOKEN_SIZE).astype(F32)
    p['embedding'] = nrm((TOKEN_SIZE, EMB), 1.0)
    p['V'] = unif((EMB, EMB), 0.2)                      # non-porto: V is (emb, emb)

    # co_attention (Linear weights stored as (in, out)); the s and t branches are packed
    # block-diagonally along lanes so the whole co-attention is 3 matmuls.
    def blkdiag(a, b):
        z = jnp.zeros((a.shape[0] + b.shape[0], a.shape[1] + b.shape[1]), F32)
        return z.at[:a.shape[0], :a.shape[1]].set(a).at[a.shape[0]:, a.shape[1]:].set(b)

    Wv_s, Wv_t = nrm((EMB, EMB)), nrm((EMB, EMB))
    fsw1, fsb1, fsw2, fsb2 = nrm((EMB, EMB)), nrm((1, EMB)), nrm((EMB, EMB)), nrm((1, EMB))
    ftw1, ftb1, ftw2, ftb2 = nrm((EMB, EMB)), nrm((1, EMB)), nrm((EMB, EMB)), nrm((1, EMB))
    p['co_Wv'] = blkdiag(Wv_s, Wv_t)
    p['co_W1'] = blkdiag(fsw1, ftw1)
    p['co_b1'] = jnp.concatenate([fsb1, ftb1], axis=1)
    p['co_W2'] = blkdiag(fsw2, ftw2)
    p['co_b2'] = jnp.concatenate([fsb2, ftb2], axis=1)
    p['co_ln_g'] = jnp.ones((1, EMB), F32)
    p['co_ln_b'] = jnp.zeros((1, EMB), F32)

    # temporal embedding (Time2Vec-style stand-in)
    p['t2v_w_lin'] = nrm((1,), 1.0)
    p['t2v_b_lin'] = nrm((1,), 1.0)
    p['t2v_w_per'] = nrm((EMB - 1,), 1.0)
    p['t2v_b_per'] = nrm((EMB - 1,), 1.0)

    # attention_layer params
    p['w_omega'] = unif((E2, E2), 0.1)
    p['u_omega'] = unif((E2, 1), 0.1)

    # GRU weights with gates concatenated [r|z|n]
    def gru(din, hid):
        return (nrm((din, 3 * hid)), nrm((hid, 3 * hid)),
                nrm((1, 3 * hid)), nrm((1, 3 * hid)))

    # the three multi-scale encoder GRUs, packed block-diagonally:
    #   hidden lanes : [h_s1 | h_s2 | h_s3]                         (B, 3*HID)
    #   gate columns : [r(96) pad | z(96) pad | n(96) pad]  stride GS=128 (aligned slices)
    enc = [gru(E2, HID) for _ in range(3)]
    WinB = jnp.zeros((3 * E2, 3 * GS), F32)
    WhB = jnp.zeros((HB, 3 * GS), F32)
    biB = jnp.zeros((1, 3 * GS), F32)
    bhB = jnp.zeros((1, 3 * GS), F32)
    for k in range(3):
        wi, wh, bi, bh = enc[k]
        for gate in range(3):
            cs = gate * GS + k * HID
            WinB = WinB.at[k * E2:(k + 1) * E2, cs:cs + HID].set(wi[:, gate * HID:(gate + 1) * HID])
            WhB = WhB.at[k * HID:(k + 1) * HID, cs:cs + HID].set(wh[:, gate * HID:(gate + 1) * HID])
            biB = biB.at[:, cs:cs + HID].set(bi[:, gate * HID:(gate + 1) * HID])
            bhB = bhB.at[:, cs:cs + HID].set(bh[:, gate * HID:(gate + 1) * HID])
    p['enc_WiB'], p['enc_WhB'], p['enc_biB'], p['enc_bhB'] = WinB, WhB, biB, bhB

    # decoder GRU
    p['dec_Wi'], p['dec_Wh'], p['dec_bi'], p['dec_bh'] = gru(E2, HID)

    # W1, W2, W3 (stored pre-broadcast along the branch-packed hidden lanes)
    p['W123_lane'] = jnp.full((1, HB), 1.0 / 3.0, F32)

    # fused fc_mu | fc_logvar head
    p['fc_head_w'] = jnp.concatenate([nrm((HID, HID)), nrm((HID, HID))], axis=1)   # (H, 2H)
    p['fc_head_b'] = jnp.concatenate([nrm((1, HID)), nrm((1, HID))], axis=1)       # (1, 2H)

    p['ln_out_g'] = jnp.ones((1, HID), F32)
    p['ln_out_b'] = jnp.zeros((1, HID), F32)
    p['fc_out_w'] = nrm((HID, TOKEN_SIZE_OUT))
    p['fc_out_b'] = nrm((1, TOKEN_SIZE_OUT))
    return p


# ===================================== main ==========================================

if __name__ == "__main__":
    key = jax.random.PRNGKey(0)
    pkey, trajkey, timekey, zkey = jax.random.split(key, 4)

    params = init_params(pkey)
    trajs = jax.random.randint(trajkey, (B, T), 0, TOKEN_SIZE, dtype=jnp.int32)
    times = jax.random.uniform(timekey, (B, T), F32, 0.0, 1.0)
    lengths = jnp.array([T, T - 2], dtype=jnp.int32)   # max(lengths) == T

    fwd = jax.jit(mst_oatd_forward)
    out, mu, logvar, z = fwd(params, trajs, times, lengths, zkey)
    jax.block_until_ready((out, mu, logvar, z))

    assert out.shape == (B, T, TOKEN_SIZE_OUT)
    assert mu.shape == (1, B, HID) and logvar.shape == (1, B, HID) and z.shape == (1, B, HID)
    print("KERNEL_OK")
</pallas_src>

<mosaic_0001>
module attributes {stable_mosaic.version = 11 : i64} {
  func.func @_mst_oatd_kernel(%arg0: memref<64x64xf32, #tpu.memory_space<vmem>>, %arg1: memref<64x1xf32, #tpu.memory_space<vmem>>, %arg2: memref<1x64xf32, #tpu.memory_space<vmem>>, %arg3: memref<64x16xf32, #tpu.memory_space<vmem>>, %arg4: memref<16x16xf32, #tpu.memory_space<vmem>>, %arg5: memref<16x1xi32, #tpu.memory_space<vmem>>, %arg6: memref<16x16xf32, #tpu.memory_space<vmem>>, %arg7: memref<32x32xf32, #tpu.memory_space<vmem>>, %arg8: memref<32x32xf32, #tpu.memory_space<vmem>>, %arg9: memref<1x32xf32, #tpu.memory_space<vmem>>, %arg10: memref<32x32xf32, #tpu.memory_space<vmem>>, %arg11: memref<1x32xf32, #tpu.memory_space<vmem>>, %arg12: memref<1x16xf32, #tpu.memory_space<vmem>>, %arg13: memref<1x16xf32, #tpu.memory_space<vmem>>, %arg14: memref<32x16xf32, #tpu.memory_space<vmem>>, %arg15: memref<16x16xf32, #tpu.memory_space<vmem>>, %arg16: memref<3x16x1xf32, #tpu.memory_space<vmem>>, %arg17: memref<2x96xi32, #tpu.memory_space<vmem>>, %arg18: memref<2x1xi32, #tpu.memory_space<vmem>>, %arg19: memref<32x32xf32, #tpu.memory_space<vmem>>, %arg20: memref<32x1xf32, #tpu.memory_space<vmem>>, %arg21: memref<96x384xf32, #tpu.memory_space<vmem>>, %arg22: memref<96x384xf32, #tpu.memory_space<vmem>>, %arg23: memref<1x384xf32, #tpu.memory_space<vmem>>, %arg24: memref<1x384xf32, #tpu.memory_space<vmem>>, %arg25: memref<1x96xf32, #tpu.memory_space<vmem>>, %arg26: memref<32x64xf32, #tpu.memory_space<vmem>>, %arg27: memref<1x64xf32, #tpu.memory_space<vmem>>, %arg28: memref<2x32xf32, #tpu.memory_space<vmem>>, %arg29: memref<32x96xf32, #tpu.memory_space<vmem>>, %arg30: memref<32x96xf32, #tpu.memory_space<vmem>>, %arg31: memref<1x96xf32, #tpu.memory_space<vmem>>, %arg32: memref<1x96xf32, #tpu.memory_space<vmem>>, %arg33: memref<1x32xf32, #tpu.memory_space<vmem>>, %arg34: memref<1x32xf32, #tpu.memory_space<vmem>>, %arg35: memref<32x64xf32, #tpu.memory_space<vmem>>, %arg36: memref<1x64xf32, #tpu.memory_space<vmem>>, %arg37: memref<16x64xf32, #tpu.memory_space<vmem>>, %arg38: memref<2x96xf32, #tpu.memory_space<vmem>>) attributes {dimension_semantics = [], scalar_prefetch = 0 : i64, scratch_operands = 0 : i64, tpu.core_type = #tpu.core_type<tc>} {
    %c0 = arith.constant 0 : index
    %c0_0 = arith.constant 0 : index
    %0 = vector.load %arg0[%c0, %c0_0] : memref<64x64xf32, #tpu.memory_space<vmem>>, vector<64x64xf32>
    %c0_1 = arith.constant 0 : index
    %c0_2 = arith.constant 0 : index
    %1 = vector.load %arg1[%c0_1, %c0_2] : memref<64x1xf32, #tpu.memory_space<vmem>>, vector<64x1xf32>
    %2 = vector.broadcast %1 : vector<64x1xf32> to vector<64x64xf32>
    %3 = arith.mulf %0, %2 : vector<64x64xf32>
    %c0_3 = arith.constant 0 : index
    %c0_4 = arith.constant 0 : index
    %4 = vector.load %arg2[%c0_3, %c0_4] : memref<1x64xf32, #tpu.memory_space<vmem>>, vector<1x64xf32>
    %5 = vector.broadcast %4 : vector<1x64xf32> to vector<64x64xf32>
    %6 = arith.mulf %3, %5 : vector<64x64xf32>
    %c0_5 = arith.constant 0 : index
    %c0_6 = arith.constant 0 : index
    %7 = vector.load %arg3[%c0_5, %c0_6] : memref<64x16xf32, #tpu.memory_space<vmem>>, vector<64x16xf32>
    %8 = arith.truncf %6 : vector<64x64xf32> to vector<64x64xbf16>
    %9 = arith.truncf %7 : vector<64x16xf32> to vector<64x16xbf16>
    %cst = arith.constant dense<0.000000e+00> : vector<64x16xf32>
    %10 = tpu.matmul %8, %9, %cst {dimension_numbers = #tpu.dot_dimension_numbers<[1], [0], [0], [1], [0, 0, 1, 1], [], []>} : vector<64x64xbf16>, vector<64x16xbf16>, vector<64x16xf32> -> vector<64x16xf32>
    %c0_7 = arith.constant 0 : index
    %c0_8 = arith.constant 0 : index
    %11 = vector.load %arg4[%c0_7, %c0_8] : memref<16x16xf32, #tpu.memory_space<vmem>>, vector<16x16xf32>
    %12 = arith.truncf %10 : vector<64x16xf32> to vector<64x16xbf16>
    %13 = arith.truncf %11 : vector<16x16xf32> to vector<16x16xbf16>
    %cst_9 = arith.constant dense<0.000000e+00> : vector<64x16xf32>
    %14 = tpu.matmul %12, %13, %cst_9 {dimension_numbers = #tpu.dot_dimension_numbers<[1], [0], [0], [1], [0, 0, 1, 1], [], []>} : vector<64x16xbf16>, vector<16x16xbf16>, vector<64x16xf32> -> vector<64x16xf32>
    %15 = tpu.iota {dimensions = array<i32: 1>} : vector<16x64xi32>
    %c0_10 = arith.constant 0 : index
    %c0_11 = arith.constant 0 : index
    %16 = vector.load %arg5[%c0_10, %c0_11] : memref<16x1xi32, #tpu.memory_space<vmem>>, vector<16x1xi32>
    %17 = vector.broadcast %16 : vector<16x1xi32> to vector<16x64xi32>
    %18 = arith.cmpi eq, %15, %17 : vector<16x64xi32>
    %19 = arith.extui %18 : vector<16x64xi1> to vector<16x64xi32>
    %20 = arith.sitofp %19 : vector<16x64xi32> to vector<16x64xf32>
    %21 = arith.truncf %20 : vector<16x64xf32> to vector<16x64xbf16>
    %22 = arith.truncf %14 : vector<64x16xf32> to vector<64x16xbf16>
    %cst_12 = arith.constant dense<0.000000e+00> : vector<16x16xf32>
    %23 = tpu.matmul %21, %22, %cst_12 {dimension_numbers = #tpu.dot_dimension_numbers<[1], [0], [0], [1], [0, 0, 1, 1], [], []>} : vector<16x64xbf16>, vector<64x16xbf16>, vector<16x16xf32> -> vector<16x16xf32>
    %c0_13 = arith.constant 0 : index
    %c0_14 = arith.constant 0 : index
    %24 = vector.load %arg6[%c0_13, %c0_14] : memref<16x16xf32, #tpu.memory_space<vmem>>, vector<16x16xf32>
    %25 = tpu.concatenate %23, %24 in 1 : vector<16x16xf32>, vector<16x16xf32> -> vector<16x32xf32>
    %c0_15 = arith.constant 0 : index
    %c0_16 = arith.constant 0 : index
    %26 = vector.load %arg7[%c0_15, %c0_16] : memref<32x32xf32, #tpu.memory_space<vmem>>, vector<32x32xf32>
    %27 = arith.truncf %25 : vector<16x32xf32> to vector<16x32xbf16>
    %28 = arith.truncf %26 : vector<32x32xf32> to vector<32x32xbf16>
    %cst_17 = arith.constant dense<0.000000e+00> : vector<16x32xf32>
    %29 = tpu.matmul %27, %28, %cst_17 {dimension_numbers = #tpu.dot_dimension_numbers<[1], [0], [0], [1], [0, 0, 1, 1], [], []>} : vector<16x32xbf16>, vector<32x32xbf16>, vector<16x32xf32> -> vector<16x32xf32>
    %c0_18 = arith.constant 0 : index
    %c0_19 = arith.constant 0 : index
    %30 = vector.load %arg8[%c0_18, %c0_19] : memref<32x32xf32, #tpu.memory_space<vmem>>, vector<32x32xf32>
    %31 = arith.truncf %29 : vector<16x32xf32> to vector<16x32xbf16>
    %32 = arith.truncf %30 : vector<32x32xf32> to vector<32x32xbf16>
    %cst_20 = arith.constant dense<0.000000e+00> : vector<16x32xf32>
    %33 = tpu.matmul %31, %32, %cst_20 {dimension_numbers = #tpu.dot_dimension_numbers<[1], [0], [0], [1], [0, 0, 1, 1], [], []>} : vector<16x32xbf16>, vector<32x32xbf16>, vector<16x32xf32> -> vector<16x32xf32>
    %c0_21 = arith.constant 0 : index
    %c0_22 = arith.constant 0 : index
    %34 = vector.load %arg9[%c0_21, %c0_22] : memref<1x32xf32, #tpu.memory_space<vmem>>, vector<1x32xf32>
    %35 = vector.broadcast %34 : vector<1x32xf32> to vector<16x32xf32>
    %36 = arith.addf %33, %35 : vector<16x32xf32>
    %cst_23 = arith.constant 0.000000e+00 : f32
    %37 = vector.broadcast %cst_23 : f32 to vector<16x32xf32>
    %38 = arith.maximumf %36, %37 : vector<16x32xf32>
    %c0_24 = arith.constant 0 : index
    %c0_25 = arith.constant 0 : index
    %39 = vector.load %arg10[%c0_24, %c0_25] : memref<32x32xf32, #tpu.memory_space<vmem>>, vector<32x32xf32>
    %40 = arith.truncf %38 : vector<16x32xf32> to vector<16x32xbf16>
    %41 = arith.truncf %39 : vector<32x32xf32> to vector<32x32xbf16>
    %cst_26 = arith.constant dense<0.000000e+00> : vector<16x32xf32>
    %42 = tpu.matmul %40, %41, %cst_26 {dimension_numbers = #tpu.dot_dimension_numbers<[1], [0], [0], [1], [0, 0, 1, 1], [], []>} : vector<16x32xbf16>, vector<32x32xbf16>, vector<16x32xf32> -> vector<16x32xf32>
    %c0_27 = arith.constant 0 : index
    %c0_28 = arith.constant 0 : index
    %43 = vector.load %arg11[%c0_27, %c0_28] : memref<1x32xf32, #tpu.memory_space<vmem>>, vector<1x32xf32>
    %44 = vector.broadcast %43 : vector<1x32xf32> to vector<16x32xf32>
    %45 = arith.addf %42, %44 : vector<16x32xf32>
    %46 = arith.addf %45, %29 : vector<16x32xf32>
    %c0_29 = arith.constant 0 : index
    %c0_30 = arith.constant 0 : index
    %47 = vector.load %arg12[%c0_29, %c0_30] : memref<1x16xf32, #tpu.memory_space<vmem>>, vector<1x16xf32>
    %c0_31 = arith.constant 0 : index
    %c0_32 = arith.constant 0 : index
    %48 = vector.load %arg13[%c0_31, %c0_32] : memref<1x16xf32, #tpu.memory_space<vmem>>, vector<1x16xf32>
    %49 = vector.extract_strided_slice %46 {offsets = [0, 0], sizes = [16, 16], strides = [1, 1]} : vector<16x32xf32> to vector<16x16xf32>
    %cst_33 = arith.constant dense<0.000000e+00> : vector<16xf32>
    %50 = vector.multi_reduction <add>, %49, %cst_33 [1] : vector<16x16xf32> to vector<16xf32>
    %51 = vector.shape_cast %50 : vector<16xf32> to vector<16x1xf32>
    %cst_34 = arith.constant 1.600000e+01 : f32
    %52 = vector.broadcast %cst_34 : f32 to vector<16x1xf32>
    %53 = arith.divf %51, %52 : vector<16x1xf32>
    %54 = vector.broadcast %53 : vector<16x1xf32> to vector<16x16xf32>
    %55 = arith.subf %49, %54 : vector<16x16xf32>
    %56 = arith.mulf %55, %55 : vector<16x16xf32>
    %cst_35 = arith.constant dense<0.000000e+00> : vector<16xf32>
    %57 = vector.multi_reduction <add>, %56, %cst_35 [1] : vector<16x16xf32> to vector<16xf32>
    %58 = vector.shape_cast %57 : vector<16xf32> to vector<16x1xf32>
    %cst_36 = arith.constant 1.600000e+01 : f32
    %59 = vector.broadcast %cst_36 : f32 to vector<16x1xf32>
    %60 = arith.divf %58, %59 : vector<16x1xf32>
    %61 = vector.broadcast %53 : vector<16x1xf32> to vector<16x16xf32>
    %62 = arith.subf %49, %61 : vector<16x16xf32>
    %cst_37 = arith.constant 9.99999997E-7 : f32
    %63 = vector.broadcast %cst_37 : f32 to vector<16x1xf32>
    %64 = arith.addf %60, %63 : vector<16x1xf32>
    %65 = math.rsqrt %64 : vector<16x1xf32>
    %66 = vector.broadcast %65 : vector<16x1xf32> to vector<16x16xf32>
    %67 = arith.mulf %62, %66 : vector<16x16xf32>
    %68 = vector.broadcast %47 : vector<1x16xf32> to vector<16x16xf32>
    %69 = arith.mulf %67, %68 : vector<16x16xf32>
    %70 = vector.broadcast %48 : vector<1x16xf32> to vector<16x16xf32>
    %71 = arith.addf %69, %70 : vector<16x16xf32>
    %72 = vector.extract_strided_slice %46 {offsets = [0, 16], sizes = [16, 16], strides = [1, 1]} : vector<16x32xf32> to vector<16x16xf32>
    %cst_38 = arith.constant dense<0.000000e+00> : vector<16xf32>
    %73 = vector.multi_reduction <add>, %72, %cst_38 [1] : vector<16x16xf32> to vector<16xf32>
    %74 = vector.shape_cast %73 : vector<16xf32> to vector<16x1xf32>
    %cst_39 = arith.constant 1.600000e+01 : f32
    %75 = vector.broadcast %cst_39 : f32 to vector<16x1xf32>
    %76 = arith.divf %74, %75 : vector<16x1xf32>
    %77 = vector.broadcast %76 : vector<16x1xf32> to vector<16x16xf32>
    %78 = arith.subf %72, %77 : vector<16x16xf32>
    %79 = arith.mulf %78, %78 : vector<16x16xf32>
    %cst_40 = arith.constant dense<0.000000e+00> : vector<16xf32>
    %80 = vector.multi_reduction <add>, %79, %cst_40 [1] : vector<16x16xf32> to vector<16xf32>
    %81 = vector.shape_cast %80 : vector<16xf32> to vector<16x1xf32>
    %cst_41 = arith.constant 1.600000e+01 : f32
    %82 = vector.broadcast %cst_41 : f32 to vector<16x1xf32>
    %83 = arith.divf %81, %82 : vector<16x1xf32>
    %84 = vector.broadcast %76 : vector<16x1xf32> to vector<16x16xf32>
    %85 = arith.subf %72, %84 : vector<16x16xf32>
    %cst_42 = arith.constant 9.99999997E-7 : f32
    %86 = vector.broadcast %cst_42 : f32 to vector<16x1xf32>
    %87 = arith.addf %83, %86 : vector<16x1xf32>
    %88 = math.rsqrt %87 : vector<16x1xf32>
    %89 = vector.broadcast %88 : vector<16x1xf32> to vector<16x16xf32>
    %90 = arith.mulf %85, %89 : vector<16x16xf32>
    %91 = vector.broadcast %47 : vector<1x16xf32> to vector<16x16xf32>
    %92 = arith.mulf %90, %91 : vector<16x16xf32>
    %93 = vector.broadcast %48 : vector<1x16xf32> to vector<16x16xf32>
    %94 = arith.addf %92, %93 : vector<16x16xf32>
    %95 = tpu.concatenate %71, %94 in 1 : vector<16x16xf32>, vector<16x16xf32> -> vector<16x32xf32>
    %c0_43 = arith.constant 0 : index
    %c0_44 = arith.constant 0 : index
    %96 = vector.load %arg14[%c0_43, %c0_44] : memref<32x16xf32, #tpu.memory_space<vmem>>, vector<32x16xf32>
    %97 = arith.truncf %96 : vector<32x16xf32> to vector<32x16xbf16>
    %98 = arith.truncf %95 : vector<16x32xf32> to vector<16x32xbf16>
    %cst_45 = arith.constant dense<0.000000e+00> : vector<32x32xf32>
    %99 = tpu.matmul %97, %98, %cst_45 {dimension_numbers = #tpu.dot_dimension_numbers<[1], [0], [0], [1], [0, 0, 1, 1], [], []>} : vector<32x16xbf16>, vector<16x32xbf16>, vector<32x32xf32> -> vector<32x32xf32>
    %100 = vector.extract_strided_slice %99 {offsets = [0, 0], sizes = [16, 32], strides = [1, 1]} : vector<32x32xf32> to vector<16x32xf32>
    %101 = vector.extract_strided_slice %99 {offsets = [16, 0], sizes = [16, 32], strides = [1, 1]} : vector<32x32xf32> to vector<16x32xf32>
    %c0_46 = arith.constant 0 : index
    %c0_47 = arith.constant 0 : index
    %102 = vector.load %arg19[%c0_46, %c0_47] : memref<32x32xf32, #tpu.memory_space<vmem>>, vector<32x32xf32>
    %c0_48 = arith.constant 0 : index
    %c0_49 = arith.constant 0 : index
    %103 = vector.load %arg20[%c0_48, %c0_49] : memref<32x1xf32, #tpu.memory_space<vmem>>, vector<32x1xf32>
    %c0_50 = arith.constant 0 : index
    %c0_51 = arith.constant 0 : index
    %104 = vector.load %arg15[%c0_50, %c0_51] : memref<16x16xf32, #tpu.memory_space<vmem>>, vector<16x16xf32>
    %105 = arith.truncf %95 : vector<16x32xf32> to vector<16x32xbf16>
    %106 = arith.truncf %102 : vector<32x32xf32> to vector<32x32xbf16>
    %cst_52 = arith.constant dense<0.000000e+00> : vector<16x32xf32>
    %107 = tpu.matmul %105, %106, %cst_52 {dimension_numbers = #tpu.dot_dimension_numbers<[1], [0], [0], [1], [0, 0, 1, 1], [], []>} : vector<16x32xbf16>, vector<32x32xbf16>, vector<16x32xf32> -> vector<16x32xf32>
    %108 = math.tanh %107 : vector<16x32xf32>
    %109 = arith.truncf %108 : vector<16x32xf32> to vector<16x32xbf16>
    %110 = arith.truncf %103 : vector<32x1xf32> to vector<32x1xbf16>
    %cst_53 = arith.constant dense<0.000000e+00> : vector<16x1xf32>
    %111 = tpu.matmul %109, %110, %cst_53 {dimension_numbers = #tpu.dot_dimension_numbers<[1], [0], [0], [1], [0, 0, 1, 1], [], []>} : vector<16x32xbf16>, vector<32x1xbf16>, vector<16x1xf32> -> vector<16x1xf32>
    %c0_54 = arith.constant 0 : index
    %c0_55 = arith.constant 0 : index
    %c0_56 = arith.constant 0 : index
    %112 = vector.load %arg16[%c0_54, %c0_55, %c0_56] : memref<3x16x1xf32, #tpu.memory_space<vmem>>, vector<1x16x1xf32>
    %113 = vector.shape_cast %112 : vector<1x16x1xf32> to vector<16x1xf32>
    %cst_57 = arith.constant 5.000000e-01 : f32
    %114 = vector.broadcast %cst_57 : f32 to vector<16x1xf32>
    %115 = arith.cmpf ogt, %113, %114 : vector<16x1xf32>
    %cst_58 = arith.constant -1.000000e+10 : f32
    %116 = vector.broadcast %cst_58 : f32 to vector<16x1xf32>
    %117 = arith.select %115, %111, %116 : vector<16x1xi1>, vector<16x1xf32>
    %118 = math.exp %117 : vector<16x1xf32>
    %cst_59 = arith.constant dense<0.000000e+00> : vector<16x1xf32>
    %119 = tpu.matmul %104, %118, %cst_59 {dimension_numbers = #tpu.dot_dimension_numbers<[1], [0], [0], [1], [0, 0, 1, 1], [], []>} : vector<16x16xf32>, vector<16x1xf32>, vector<16x1xf32> -> vector<16x1xf32>
    %120 = tpu.reciprocal %119 {approx = true} : vector<16x1xf32> -> vector<16x1xf32>
    %121 = arith.mulf %118, %120 : vector<16x1xf32>
    %122 = vector.broadcast %121 : vector<16x1xf32> to vector<16x32xf32>
    %123 = arith.mulf %95, %122 : vector<16x32xf32>
    %124 = arith.truncf %100 : vector<16x32xf32> to vector<16x32xbf16>
    %125 = arith.truncf %102 : vector<32x32xf32> to vector<32x32xbf16>
    %cst_60 = arith.constant dense<0.000000e+00> : vector<16x32xf32>
    %126 = tpu.matmul %124, %125, %cst_60 {dimension_numbers = #tpu.dot_dimension_numbers<[1], [0], [0], [1], [0, 0, 1, 1], [], []>} : vector<16x32xbf16>, vector<32x32xbf16>, vector<16x32xf32> -> vector<16x32xf32>
    %127 = math.tanh %126 : vector<16x32xf32>
    %128 = arith.truncf %127 : vector<16x32xf32> to vector<16x32xbf16>
    %129 = arith.truncf %103 : vector<32x1xf32> to vector<32x1xbf16>
    %cst_61 = arith.constant dense<0.000000e+00> : vector<16x1xf32>
    %130 = tpu.matmul %128, %129, %cst_61 {dimension_numbers = #tpu.dot_dimension_numbers<[1], [0], [0], [1], [0, 0, 1, 1], [], []>} : vector<16x32xbf16>, vector<32x1xbf16>, vector<16x1xf32> -> vector<16x1xf32>
    %c1 = arith.constant 1 : index
    %c0_62 = arith.constant 0 : index
    %c0_63 = arith.constant 0 : index
    %131 = vector.load %arg16[%c1, %c0_62, %c0_63] : memref<3x16x1xf32, #tpu.memory_space<vmem>>, vector<1x16x1xf32>
    %132 = vector.shape_cast %131 : vector<1x16x1xf32> to vector<16x1xf32>
    %cst_64 = arith.constant 5.000000e-01 : f32
    %133 = vector.broadcast %cst_64 : f32 to vector<16x1xf32>
    %134 = arith.cmpf ogt, %132, %133 : vector<16x1xf32>
    %cst_65 = arith.constant -1.000000e+10 : f32
    %135 = vector.broadcast %cst_65 : f32 to vector<16x1xf32>
    %136 = arith.select %134, %130, %135 : vector<16x1xi1>, vector<16x1xf32>
    %137 = math.exp %136 : vector<16x1xf32>
    %cst_66 = arith.constant dense<0.000000e+00> : vector<16x1xf32>
    %138 = tpu.matmul %104, %137, %cst_66 {dimension_numbers = #tpu.dot_dimension_numbers<[1], [0], [0], [1], [0, 0, 1, 1], [], []>} : vector<16x16xf32>, vector<16x1xf32>, vector<16x1xf32> -> vector<16x1xf32>
    %139 = tpu.reciprocal %138 {approx = true} : vector<16x1xf32> -> vector<16x1xf32>
    %140 = arith.mulf %137, %139 : vector<16x1xf32>
    %141 = vector.broadcast %140 : vector<16x1xf32> to vector<16x32xf32>
    %142 = arith.mulf %100, %141 : vector<16x32xf32>
    %143 = arith.truncf %101 : vector<16x32xf32> to vector<16x32xbf16>
    %144 = arith.truncf %102 : vector<32x32xf32> to vector<32x32xbf16>
    %cst_67 = arith.constant dense<0.000000e+00> : vector<16x32xf32>
    %145 = tpu.matmul %143, %144, %cst_67 {dimension_numbers = #tpu.dot_dimension_numbers<[1], [0], [0], [1], [0, 0, 1, 1], [], []>} : vector<16x32xbf16>, vector<32x32xbf16>, vector<16x32xf32> -> vector<16x32xf32>
    %146 = math.tanh %145 : vector<16x32xf32>
    %147 = arith.truncf %146 : vector<16x32xf32> to vector<16x32xbf16>
    %148 = arith.truncf %103 : vector<32x1xf32> to vector<32x1xbf16>
    %cst_68 = arith.constant dense<0.000000e+00> : vector<16x1xf32>
    %149 = tpu.matmul %147, %148, %cst_68 {dimension_numbers = #tpu.dot_dimension_numbers<[1], [0], [0], [1], [0, 0, 1, 1], [], []>} : vector<16x32xbf16>, vector<32x1xbf16>, vector<16x1xf32> -> vector<16x1xf32>
    %c2 = arith.constant 2 : index
    %c0_69 = arith.constant 0 : index
    %c0_70 = arith.constant 0 : index
    %150 = vector.load %arg16[%c2, %c0_69, %c0_70] : memref<3x16x1xf32, #tpu.memory_space<vmem>>, vector<1x16x1xf32>
    %151 = vector.shape_cast %150 : vector<1x16x1xf32> to vector<16x1xf32>
    %cst_71 = arith.constant 5.000000e-01 : f32
    %152 = vector.broadcast %cst_71 : f32 to vector<16x1xf32>
    %153 = arith.cmpf ogt, %151, %152 : vector<16x1xf32>
    %cst_72 = arith.constant -1.000000e+10 : f32
    %154 = vector.broadcast %cst_72 : f32 to vector<16x1xf32>
    %155 = arith.select %153, %149, %154 : vector<16x1xi1>, vector<16x1xf32>
    %156 = math.exp %155 : vector<16x1xf32>
    %cst_73 = arith.constant dense<0.000000e+00> : vector<16x1xf32>
    %157 = tpu.matmul %104, %156, %cst_73 {dimension_numbers = #tpu.dot_dimension_numbers<[1], [0], [0], [1], [0, 0, 1, 1], [], []>} : vector<16x16xf32>, vector<16x1xf32>, vector<16x1xf32> -> vector<16x1xf32>
    %158 = tpu.reciprocal %157 {approx = true} : vector<16x1xf32> -> vector<16x1xf32>
    %159 = arith.mulf %156, %158 : vector<16x1xf32>
    %160 = vector.broadcast %159 : vector<16x1xf32> to vector<16x32xf32>
    %161 = arith.mulf %101, %160 : vector<16x32xf32>
    %162 = tpu.concatenate %123, %142, %161 in 1 : vector<16x32xf32>, vector<16x32xf32>, vector<16x32xf32> -> vector<16x96xf32>
    %c0_74 = arith.constant 0 : index
    %c0_75 = arith.constant 0 : index
    %163 = vector.load %arg21[%c0_74, %c0_75] : memref<96x384xf32, #tpu.memory_space<vmem>>, vector<96x384xf32>
    %164 = arith.truncf %162 : vector<16x96xf32> to vector<16x96xbf16>
    %165 = arith.truncf %163 : vector<96x384xf32> to vector<96x384xbf16>
    %cst_76 = arith.constant dense<0.000000e+00> : vector<16x384xf32>
    %166 = tpu.matmul %164, %165, %cst_76 {dimension_numbers = #tpu.dot_dimension_numbers<[1], [0], [0], [1], [0, 0, 1, 1], [], []>} : vector<16x96xbf16>, vector<96x384xbf16>, vector<16x384xf32> -> vector<16x384xf32>
    %c0_77 = arith.constant 0 : index
    %c0_78 = arith.constant 0 : index
    %167 = vector.load %arg23[%c0_77, %c0_78] : memref<1x384xf32, #tpu.memory_space<vmem>>, vector<1x384xf32>
    %168 = vector.broadcast %167 : vector<1x384xf32> to vector<16x384xf32>
    %169 = arith.addf %166, %168 : vector<16x384xf32>
    %170 = vector.shape_cast %169 : vector<16x384xf32> to vector<2x8x384xf32>
    %171 = vector.extract_strided_slice %170 {offsets = [0, 0, 0], sizes = [2, 8, 96], strides = [1, 1, 1]} : vector<2x8x384xf32> to vector<2x8x96xf32>
    %172 = vector.extract_strided_slice %170 {offsets = [0, 0, 128], sizes = [2, 8, 96], strides = [1, 1, 1]} : vector<2x8x384xf32> to vector<2x8x96xf32>
    %173 = vector.extract_strided_slice %170 {offsets = [0, 0, 256], sizes = [2, 8, 96], strides = [1, 1, 1]} : vector<2x8x384xf32> to vector<2x8x96xf32>
    %c0_79 = arith.constant 0 : index
    %c0_80 = arith.constant 0 : index
    %174 = vector.load %arg22[%c0_79, %c0_80] : memref<96x384xf32, #tpu.memory_space<vmem>>, vector<96x384xf32>
    %175 = arith.truncf %174 : vector<96x384xf32> to vector<96x384xbf16>
    %c0_81 = arith.constant 0 : index
    %c0_82 = arith.constant 0 : index
    %176 = vector.load %arg24[%c0_81, %c0_82] : memref<1x384xf32, #tpu.memory_space<vmem>>, vector<1x384xf32>
    %c0_83 = arith.constant 0 : index
    %c0_84 = arith.constant 0 : index
    %177 = vector.load %arg17[%c0_83, %c0_84] : memref<2x96xi32, #tpu.memory_space<vmem>>, vector<2x96xi32>
    %cst_85 = arith.constant 0.000000e+00 : f32
    %178 = vector.broadcast %cst_85 : f32 to vector<2x96xf32>
    %179 = arith.truncf %178 : vector<2x96xf32> to vector<2x96xbf16>
    %cst_86 = arith.constant dense<0.000000e+00> : vector<2x384xf32>
    %180 = tpu.matmul %179, %175, %cst_86 {dimension_numbers = #tpu.dot_dimension_numbers<[1], [0], [0], [1], [0, 0, 1, 1], [], []>} : vector<2x96xbf16>, vector<96x384xbf16>, vector<2x384xf32> -> vector<2x384xf32>
    %181 = vector.broadcast %176 : vector<1x384xf32> to vector<2x384xf32>
    %182 = arith.addf %180, %181 : vector<2x384xf32>
    %183 = vector.extract_strided_slice %171 {offsets = [0, 0, 0], sizes = [2, 1, 96], strides = [1, 1, 1]} : vector<2x8x96xf32> to vector<2x1x96xf32>
    %184 = vector.shape_cast %183 : vector<2x1x96xf32> to vector<2x96xf32>
    %185 = vector.extract_strided_slice %182 {offsets = [0, 0], sizes = [2, 96], strides = [1, 1]} : vector<2x384xf32> to vector<2x96xf32>
    %186 = arith.addf %184, %185 : vector<2x96xf32>
    %187 = arith.negf %186 : vector<2x96xf32>
    %188 = math.exp %187 : vector<2x96xf32>
    %cst_87 = arith.constant 1.000000e+00 : f32
    %189 = vector.broadcast %cst_87 : f32 to vector<2x96xf32>
    %190 = arith.addf %189, %188 : vector<2x96xf32>
    %191 = arith.divf %189, %190 : vector<2x96xf32>
    %192 = vector.extract_strided_slice %172 {offsets = [0, 0, 0], sizes = [2, 1, 96], strides = [1, 1, 1]} : vector<2x8x96xf32> to vector<2x1x96xf32>
    %193 = vector.shape_cast %192 : vector<2x1x96xf32> to vector<2x96xf32>
    %194 = vector.extract_strided_slice %182 {offsets = [0, 128], sizes = [2, 96], strides = [1, 1]} : vector<2x384xf32> to vector<2x96xf32>
    %195 = arith.addf %193, %194 : vector<2x96xf32>
    %196 = arith.negf %195 : vector<2x96xf32>
    %197 = math.exp %196 : vector<2x96xf32>
    %cst_88 = arith.constant 1.000000e+00 : f32
    %198 = vector.broadcast %cst_88 : f32 to vector<2x96xf32>
    %199 = arith.addf %198, %197 : vector<2x96xf32>
    %200 = arith.divf %198, %199 : vector<2x96xf32>
    %201 = vector.extract_strided_slice %173 {offsets = [0, 0, 0], sizes = [2, 1, 96], strides = [1, 1, 1]} : vector<2x8x96xf32> to vector<2x1x96xf32>
    %202 = vector.shape_cast %201 : vector<2x1x96xf32> to vector<2x96xf32>
    %203 = vector.extract_strided_slice %182 {offsets = [0, 256], sizes = [2, 96], strides = [1, 1]} : vector<2x384xf32> to vector<2x96xf32>
    %204 = arith.mulf %191, %203 : vector<2x96xf32>
    %205 = arith.addf %202, %204 : vector<2x96xf32>
    %206 = math.tanh %205 : vector<2x96xf32>
    %cst_89 = arith.constant 1.000000e+00 : f32
    %207 = vector.broadcast %cst_89 : f32 to vector<2x96xf32>
    %208 = arith.subf %207, %200 : vector<2x96xf32>
    %209 = arith.mulf %208, %206 : vector<2x96xf32>
    %210 = arith.mulf %200, %178 : vector<2x96xf32>
    %211 = arith.addf %209, %210 : vector<2x96xf32>
    %c0_i32 = arith.constant 0 : i32
    %212 = vector.broadcast %c0_i32 : i32 to vector<2x96xi32>
    %213 = arith.cmpi sgt, %177, %212 : vector<2x96xi32>
    %214 = arith.select %213, %211, %178 : vector<2x96xi1>, vector<2x96xf32>
    %215 = arith.truncf %214 : vector<2x96xf32> to vector<2x96xbf16>
    %cst_90 = arith.constant dense<0.000000e+00> : vector<2x384xf32>
    %216 = tpu.matmul %215, %175, %cst_90 {dimension_numbers = #tpu.dot_dimension_numbers<[1], [0], [0], [1], [0, 0, 1, 1], [], []>} : vector<2x96xbf16>, vector<96x384xbf16>, vector<2x384xf32> -> vector<2x384xf32>
    %217 = vector.broadcast %176 : vector<1x384xf32> to vector<2x384xf32>
    %218 = arith.addf %216, %217 : vector<2x384xf32>
    %219 = vector.extract_strided_slice %171 {offsets = [0, 1, 0], sizes = [2, 1, 96], strides = [1, 1, 1]} : vector<2x8x96xf32> to vector<2x1x96xf32>
    %220 = vector.shape_cast %219 : vector<2x1x96xf32> to vector<2x96xf32>
    %221 = vector.extract_strided_slice %218 {offsets = [0, 0], sizes = [2, 96], strides = [1, 1]} : vector<2x384xf32> to vector<2x96xf32>
    %222 = arith.addf %220, %221 : vector<2x96xf32>
    %223 = arith.negf %222 : vector<2x96xf32>
    %224 = math.exp %223 : vector<2x96xf32>
    %cst_91 = arith.constant 1.000000e+00 : f32
    %225 = vector.broadcast %cst_91 : f32 to vector<2x96xf32>
    %226 = arith.addf %225, %224 : vector<2x96xf32>
    %227 = arith.divf %225, %226 : vector<2x96xf32>
    %228 = vector.extract_strided_slice %172 {offsets = [0, 1, 0], sizes = [2, 1, 96], strides = [1, 1, 1]} : vector<2x8x96xf32> to vector<2x1x96xf32>
    %229 = vector.shape_cast %228 : vector<2x1x96xf32> to vector<2x96xf32>
    %230 = vector.extract_strided_slice %218 {offsets = [0, 128], sizes = [2, 96], strides = [1, 1]} : vector<2x384xf32> to vector<2x96xf32>
    %231 = arith.addf %229, %230 : vector<2x96xf32>
    %232 = arith.negf %231 : vector<2x96xf32>
    %233 = math.exp %232 : vector<2x96xf32>
    %cst_92 = arith.constant 1.000000e+00 : f32
    %234 = vector.broadcast %cst_92 : f32 to vector<2x96xf32>
    %235 = arith.addf %234, %233 : vector<2x96xf32>
    %236 = arith.divf %234, %235 : vector<2x96xf32>
    %237 = vector.extract_strided_slice %173 {offsets = [0, 1, 0], sizes = [2, 1, 96], strides = [1, 1, 1]} : vector<2x8x96xf32> to vector<2x1x96xf32>
    %238 = vector.shape_cast %237 : vector<2x1x96xf32> to vector<2x96xf32>
    %239 = vector.extract_strided_slice %218 {offsets = [0, 256], sizes = [2, 96], strides = [1, 1]} : vector<2x384xf32> to vector<2x96xf32>
    %240 = arith.mulf %227, %239 : vector<2x96xf32>
    %241 = arith.addf %238, %240 : vector<2x96xf32>
    %242 = math.tanh %241 : vector<2x96xf32>
    %cst_93 = arith.constant 1.000000e+00 : f32
    %243 = vector.broadcast %cst_93 : f32 to vector<2x96xf32>
    %244 = arith.subf %243, %236 : vector<2x96xf32>
    %245 = arith.mulf %244, %242 : vector<2x96xf32>
    %246 = arith.mulf %236, %214 : vector<2x96xf32>
    %247 = arith.addf %245, %246 : vector<2x96xf32>
    %c1_i32 = arith.constant 1 : i32
    %248 = vector.broadcast %c1_i32 : i32 to vector<2x96xi32>
    %249 = arith.cmpi sgt, %177, %248 : vector<2x96xi32>
    %250 = arith.select %249, %247, %214 : vector<2x96xi1>, vector<2x96xf32>
    %251 = arith.truncf %250 : vector<2x96xf32> to vector<2x96xbf16>
    %cst_94 = arith.constant dense<0.000000e+00> : vector<2x384xf32>
    %252 = tpu.matmul %251, %175, %cst_94 {dimension_numbers = #tpu.dot_dimension_numbers<[1], [0], [0], [1], [0, 0, 1, 1], [], []>} : vector<2x96xbf16>, vector<96x384xbf16>, vector<2x384xf32> -> vector<2x384xf32>
    %253 = vector.broadcast %176 : vector<1x384xf32> to vector<2x384xf32>
    %254 = arith.addf %252, %253 : vector<2x384xf32>
    %255 = vector.extract_strided_slice %171 {offsets = [0, 2, 0], sizes = [2, 1, 96], strides = [1, 1, 1]} : vector<2x8x96xf32> to vector<2x1x96xf32>
    %256 = vector.shape_cast %255 : vector<2x1x96xf32> to vector<2x96xf32>
    %257 = vector.extract_strided_slice %254 {offsets = [0, 0], sizes = [2, 96], strides = [1, 1]} : vector<2x384xf32> to vector<2x96xf32>
    %258 = arith.addf %256, %257 : vector<2x96xf32>
    %259 = arith.negf %258 : vector<2x96xf32>
    %260 = math.exp %259 : vector<2x96xf32>
    %cst_95 = arith.constant 1.000000e+00 : f32
    %261 = vector.broadcast %cst_95 : f32 to vector<2x96xf32>
    %262 = arith.addf %261, %260 : vector<2x96xf32>
    %263 = arith.divf %261, %262 : vector<2x96xf32>
    %264 = vector.extract_strided_slice %172 {offsets = [0, 2, 0], sizes = [2, 1, 96], strides = [1, 1, 1]} : vector<2x8x96xf32> to vector<2x1x96xf32>
    %265 = vector.shape_cast %264 : vector<2x1x96xf32> to vector<2x96xf32>
    %266 = vector.extract_strided_slice %254 {offsets = [0, 128], sizes = [2, 96], strides = [1, 1]} : vector<2x384xf32> to vector<2x96xf32>
    %267 = arith.addf %265, %266 : vector<2x96xf32>
    %268 = arith.negf %267 : vector<2x96xf32>
    %269 = math.exp %268 : vector<2x96xf32>
    %cst_96 = arith.constant 1.000000e+00 : f32
    %270 = vector.broadcast %cst_96 : f32 to vector<2x96xf32>
    %271 = arith.addf %270, %269 : vector<2x96xf32>
    %272 = arith.divf %270, %271 : vector<2x96xf32>
    %273 = vector.extract_strided_slice %173 {offsets = [0, 2, 0], sizes = [2, 1, 96], strides = [1, 1, 1]} : vector<2x8x96xf32> to vector<2x1x96xf32>
    %274 = vector.shape_cast %273 : vector<2x1x96xf32> to vector<2x96xf32>
    %275 = vector.extract_strided_slice %254 {offsets = [0, 256], sizes = [2, 96], strides = [1, 1]} : vector<2x384xf32> to vector<2x96xf32>
    %276 = arith.mulf %263, %275 : vector<2x96xf32>
    %277 = arith.addf %274, %276 : vector<2x96xf32>
    %278 = math.tanh %277 : vector<2x96xf32>
    %cst_97 = arith.constant 1.000000e+00 : f32
    %279 = vector.broadcast %cst_97 : f32 to vector<2x96xf32>
    %280 = arith.subf %279, %272 : vector<2x96xf32>
    %281 = arith.mulf %280, %278 : vector<2x96xf32>
    %282 = arith.mulf %272, %250 : vector<2x96xf32>
    %283 = arith.addf %281, %282 : vector<2x96xf32>
    %c2_i32 = arith.constant 2 : i32
    %284 = vector.broadcast %c2_i32 : i32 to vector<2x96xi32>
    %285 = arith.cmpi sgt, %177, %284 : vector<2x96xi32>
    %286 = arith.select %285, %283, %250 : vector<2x96xi1>, vector<2x96xf32>
    %287 = arith.truncf %286 : vector<2x96xf32> to vector<2x96xbf16>
    %cst_98 = arith.constant dense<0.000000e+00> : vector<2x384xf32>
    %288 = tpu.matmul %287, %175, %cst_98 {dimension_numbers = #tpu.dot_dimension_numbers<[1], [0], [0], [1], [0, 0, 1, 1], [], []>} : vector<2x96xbf16>, vector<96x384xbf16>, vector<2x384xf32> -> vector<2x384xf32>
    %289 = vector.broadcast %176 : vector<1x384xf32> to vector<2x384xf32>
    %290 = arith.addf %288, %289 : vector<2x384xf32>
    %291 = vector.extract_strided_slice %171 {offsets = [0, 3, 0], sizes = [2, 1, 96], strides = [1, 1, 1]} : vector<2x8x96xf32> to vector<2x1x96xf32>
    %292 = vector.shape_cast %291 : vector<2x1x96xf32> to vector<2x96xf32>
    %293 = vector.extract_strided_slice %290 {offsets = [0, 0], sizes = [2, 96], strides = [1, 1]} : vector<2x384xf32> to vector<2x96xf32>
    %294 = arith.addf %292, %293 : vector<2x96xf32>
    %295 = arith.negf %294 : vector<2x96xf32>
    %296 = math.exp %295 : vector<2x96xf32>
    %cst_99 = arith.constant 1.000000e+00 : f32
    %297 = vector.broadcast %cst_99 : f32 to vector<2x96xf32>
    %298 = arith.addf %297, %296 : vector<2x96xf32>
    %299 = arith.divf %297, %298 : vector<2x96xf32>
    %300 = vector.extract_strided_slice %172 {offsets = [0, 3, 0], sizes = [2, 1, 96], strides = [1, 1, 1]} : vector<2x8x96xf32> to vector<2x1x96xf32>
    %301 = vector.shape_cast %300 : vector<2x1x96xf32> to vector<2x96xf32>
    %302 = vector.extract_strided_slice %290 {offsets = [0, 128], sizes = [2, 96], strides = [1, 1]} : vector<2x384xf32> to vector<2x96xf32>
    %303 = arith.addf %301, %302 : vector<2x96xf32>
    %304 = arith.negf %303 : vector<2x96xf32>
    %305 = math.exp %304 : vector<2x96xf32>
    %cst_100 = arith.constant 1.000000e+00 : f32
    %306 = vector.broadcast %cst_100 : f32 to vector<2x96xf32>
    %307 = arith.addf %306, %305 : vector<2x96xf32>
    %308 = arith.divf %306, %307 : vector<2x96xf32>
    %309 = vector.extract_strided_slice %173 {offsets = [0, 3, 0], sizes = [2, 1, 96], strides = [1, 1, 1]} : vector<2x8x96xf32> to vector<2x1x96xf32>
    %310 = vector.shape_cast %309 : vector<2x1x96xf32> to vector<2x96xf32>
    %311 = vector.extract_strided_slice %290 {offsets = [0, 256], sizes = [2, 96], strides = [1, 1]} : vector<2x384xf32> to vector<2x96xf32>
    %312 = arith.mulf %299, %311 : vector<2x96xf32>
    %313 = arith.addf %310, %312 : vector<2x96xf32>
    %314 = math.tanh %313 : vector<2x96xf32>
    %cst_101 = arith.constant 1.000000e+00 : f32
    %315 = vector.broadcast %cst_101 : f32 to vector<2x96xf32>
    %316 = arith.subf %315, %308 : vector<2x96xf32>
    %317 = arith.mulf %316, %314 : vector<2x96xf32>
    %318 = arith.mulf %308, %286 : vector<2x96xf32>
    %319 = arith.addf %317, %318 : vector<2x96xf32>
    %c3_i32 = arith.constant 3 : i32
    %320 = vector.broadcast %c3_i32 : i32 to vector<2x96xi32>
    %321 = arith.cmpi sgt, %177, %320 : vector<2x96xi32>
    %322 = arith.select %321, %319, %286 : vector<2x96xi1>, vector<2x96xf32>
    %323 = arith.truncf %322 : vector<2x96xf32> to vector<2x96xbf16>
    %cst_102 = arith.constant dense<0.000000e+00> : vector<2x384xf32>
    %324 = tpu.matmul %323, %175, %cst_102 {dimension_numbers = #tpu.dot_dimension_numbers<[1], [0], [0], [1], [0, 0, 1, 1], [], []>} : vector<2x96xbf16>, vector<96x384xbf16>, vector<2x384xf32> -> vector<2x384xf32>
    %325 = vector.broadcast %176 : vector<1x384xf32> to vector<2x384xf32>
    %326 = arith.addf %324, %325 : vector<2x384xf32>
    %327 = vector.extract_strided_slice %171 {offsets = [0, 4, 0], sizes = [2, 1, 96], strides = [1, 1, 1]} : vector<2x8x96xf32> to vector<2x1x96xf32>
    %328 = vector.shape_cast %327 : vector<2x1x96xf32> to vector<2x96xf32>
    %329 = vector.extract_strided_slice %326 {offsets = [0, 0], sizes = [2, 96], strides = [1, 1]} : vector<2x384xf32> to vector<2x96xf32>
    %330 = arith.addf %328, %329 : vector<2x96xf32>
    %331 = arith.negf %330 : vector<2x96xf32>
    %332 = math.exp %331 : vector<2x96xf32>
    %cst_103 = arith.constant 1.000000e+00 : f32
    %333 = vector.broadcast %cst_103 : f32 to vector<2x96xf32>
    %334 = arith.addf %333, %332 : vector<2x96xf32>
    %335 = arith.divf %333, %334 : vector<2x96xf32>
    %336 = vector.extract_strided_slice %172 {offsets = [0, 4, 0], sizes = [2, 1, 96], strides = [1, 1, 1]} : vector<2x8x96xf32> to vector<2x1x96xf32>
    %337 = vector.shape_cast %336 : vector<2x1x96xf32> to vector<2x96xf32>
    %338 = vector.extract_strided_slice %326 {offsets = [0, 128], sizes = [2, 96], strides = [1, 1]} : vector<2x384xf32> to vector<2x96xf32>
    %339 = arith.addf %337, %338 : vector<2x96xf32>
    %340 = arith.negf %339 : vector<2x96xf32>
    %341 = math.exp %340 : vector<2x96xf32>
    %cst_104 = arith.constant 1.000000e+00 : f32
    %342 = vector.broadcast %cst_104 : f32 to vector<2x96xf32>
    %343 = arith.addf %342, %341 : vector<2x96xf32>
    %344 = arith.divf %342, %343 : vector<2x96xf32>
    %345 = vector.extract_strided_slice %173 {offsets = [0, 4, 0], sizes = [2, 1, 96], strides = [1, 1, 1]} : vector<2x8x96xf32> to vector<2x1x96xf32>
    %346 = vector.shape_cast %345 : vector<2x1x96xf32> to vector<2x96xf32>
    %347 = vector.extract_strided_slice %326 {offsets = [0, 256], sizes = [2, 96], strides = [1, 1]} : vector<2x384xf32> to vector<2x96xf32>
    %348 = arith.mulf %335, %347 : vector<2x96xf32>
    %349 = arith.addf %346, %348 : vector<2x96xf32>
    %350 = math.tanh %349 : vector<2x96xf32>
    %cst_105 = arith.constant 1.000000e+00 : f32
    %351 = vector.broadcast %cst_105 : f32 to vector<2x96xf32>
    %352 = arith.subf %351, %344 : vector<2x96xf32>
    %353 = arith.mulf %352, %350 : vector<2x96xf32>
    %354 = arith.mulf %344, %322 : vector<2x96xf32>
    %355 = arith.addf %353, %354 : vector<2x96xf32>
    %c4_i32 = arith.constant 4 : i32
    %356 = vector.broadcast %c4_i32 : i32 to vector<2x96xi32>
    %357 = arith.cmpi sgt, %177, %356 : vector<2x96xi32>
    %358 = arith.select %357, %355, %322 : vector<2x96xi1>, vector<2x96xf32>
    %359 = arith.truncf %358 : vector<2x96xf32> to vector<2x96xbf16>
    %cst_106 = arith.constant dense<0.000000e+00> : vector<2x384xf32>
    %360 = tpu.matmul %359, %175, %cst_106 {dimension_numbers = #tpu.dot_dimension_numbers<[1], [0], [0], [1], [0, 0, 1, 1], [], []>} : vector<2x96xbf16>, vector<96x384xbf16>, vector<2x384xf32> -> vector<2x384xf32>
    %361 = vector.broadcast %176 : vector<1x384xf32> to vector<2x384xf32>
    %362 = arith.addf %360, %361 : vector<2x384xf32>
    %363 = vector.extract_strided_slice %171 {offsets = [0, 5, 0], sizes = [2, 1, 96], strides = [1, 1, 1]} : vector<2x8x96xf32> to vector<2x1x96xf32>
    %364 = vector.shape_cast %363 : vector<2x1x96xf32> to vector<2x96xf32>
    %365 = vector.extract_strided_slice %362 {offsets = [0, 0], sizes = [2, 96], strides = [1, 1]} : vector<2x384xf32> to vector<2x96xf32>
    %366 = arith.addf %364, %365 : vector<2x96xf32>
    %367 = arith.negf %366 : vector<2x96xf32>
    %368 = math.exp %367 : vector<2x96xf32>
    %cst_107 = arith.constant 1.000000e+00 : f32
    %369 = vector.broadcast %cst_107 : f32 to vector<2x96xf32>
    %370 = arith.addf %369, %368 : vector<2x96xf32>
    %371 = arith.divf %369, %370 : vector<2x96xf32>
    %372 = vector.extract_strided_slice %172 {offsets = [0, 5, 0], sizes = [2, 1, 96], strides = [1, 1, 1]} : vector<2x8x96xf32> to vector<2x1x96xf32>
    %373 = vector.shape_cast %372 : vector<2x1x96xf32> to vector<2x96xf32>
    %374 = vector.extract_strided_slice %362 {offsets = [0, 128], sizes = [2, 96], strides = [1, 1]} : vector<2x384xf32> to vector<2x96xf32>
    %375 = arith.addf %373, %374 : vector<2x96xf32>
    %376 = arith.negf %375 : vector<2x96xf32>
    %377 = math.exp %376 : vector<2x96xf32>
    %cst_108 = arith.constant 1.000000e+00 : f32
    %378 = vector.broadcast %cst_108 : f32 to vector<2x96xf32>
    %379 = arith.addf %378, %377 : vector<2x96xf32>
    %380 = arith.divf %378, %379 : vector<2x96xf32>
    %381 = vector.extract_strided_slice %173 {offsets = [0, 5, 0], sizes = [2, 1, 96], strides = [1, 1, 1]} : vector<2x8x96xf32> to vector<2x1x96xf32>
    %382 = vector.shape_cast %381 : vector<2x1x96xf32> to vector<2x96xf32>
    %383 = vector.extract_strided_slice %362 {offsets = [0, 256], sizes = [2, 96], strides = [1, 1]} : vector<2x384xf32> to vector<2x96xf32>
    %384 = arith.mulf %371, %383 : vector<2x96xf32>
    %385 = arith.addf %382, %384 : vector<2x96xf32>
    %386 = math.tanh %385 : vector<2x96xf32>
    %cst_109 = arith.constant 1.000000e+00 : f32
    %387 = vector.broadcast %cst_109 : f32 to vector<2x96xf32>
    %388 = arith.subf %387, %380 : vector<2x96xf32>
    %389 = arith.mulf %388, %386 : vector<2x96xf32>
    %390 = arith.mulf %380, %358 : vector<2x96xf32>
    %391 = arith.addf %389, %390 : vector<2x96xf32>
    %c5_i32 = arith.constant 5 : i32
    %392 = vector.broadcast %c5_i32 : i32 to vector<2x96xi32>
    %393 = arith.cmpi sgt, %177, %392 : vector<2x96xi32>
    %394 = arith.select %393, %391, %358 : vector<2x96xi1>, vector<2x96xf32>
    %395 = arith.truncf %394 : vector<2x96xf32> to vector<2x96xbf16>
    %cst_110 = arith.constant dense<0.000000e+00> : vector<2x384xf32>
    %396 = tpu.matmul %395, %175, %cst_110 {dimension_numbers = #tpu.dot_dimension_numbers<[1], [0], [0], [1], [0, 0, 1, 1], [], []>} : vector<2x96xbf16>, vector<96x384xbf16>, vector<2x384xf32> -> vector<2x384xf32>
    %397 = vector.broadcast %176 : vector<1x384xf32> to vector<2x384xf32>
    %398 = arith.addf %396, %397 : vector<2x384xf32>
    %399 = vector.extract_strided_slice %171 {offsets = [0, 6, 0], sizes = [2, 1, 96], strides = [1, 1, 1]} : vector<2x8x96xf32> to vector<2x1x96xf32>
    %400 = vector.shape_cast %399 : vector<2x1x96xf32> to vector<2x96xf32>
    %401 = vector.extract_strided_slice %398 {offsets = [0, 0], sizes = [2, 96], strides = [1, 1]} : vector<2x384xf32> to vector<2x96xf32>
    %402 = arith.addf %400, %401 : vector<2x96xf32>
    %403 = arith.negf %402 : vector<2x96xf32>
    %404 = math.exp %403 : vector<2x96xf32>
    %cst_111 = arith.constant 1.000000e+00 : f32
    %405 = vector.broadcast %cst_111 : f32 to vector<2x96xf32>
    %406 = arith.addf %405, %404 : vector<2x96xf32>
    %407 = arith.divf %405, %406 : vector<2x96xf32>
    %408 = vector.extract_strided_slice %172 {offsets = [0, 6, 0], sizes = [2, 1, 96], strides = [1, 1, 1]} : vector<2x8x96xf32> to vector<2x1x96xf32>
    %409 = vector.shape_cast %408 : vector<2x1x96xf32> to vector<2x96xf32>
    %410 = vector.extract_strided_slice %398 {offsets = [0, 128], sizes = [2, 96], strides = [1, 1]} : vector<2x384xf32> to vector<2x96xf32>
    %411 = arith.addf %409, %410 : vector<2x96xf32>
    %412 = arith.negf %411 : vector<2x96xf32>
    %413 = math.exp %412 : vector<2x96xf32>
    %cst_112 = arith.constant 1.000000e+00 : f32
    %414 = vector.broadcast %cst_112 : f32 to vector<2x96xf32>
    %415 = arith.addf %414, %413 : vector<2x96xf32>
    %416 = arith.divf %414, %415 : vector<2x96xf32>
    %417 = vector.extract_strided_slice %173 {offsets = [0, 6, 0], sizes = [2, 1, 96], strides = [1, 1, 1]} : vector<2x8x96xf32> to vector<2x1x96xf32>
    %418 = vector.shape_cast %417 : vector<2x1x96xf32> to vector<2x96xf32>
    %419 = vector.extract_strided_slice %398 {offsets = [0, 256], sizes = [2, 96], strides = [1, 1]} : vector<2x384xf32> to vector<2x96xf32>
    %420 = arith.mulf %407, %419 : vector<2x96xf32>
    %421 = arith.addf %418, %420 : vector<2x96xf32>
    %422 = math.tanh %421 : vector<2x96xf32>
    %cst_113 = arith.constant 1.000000e+00 : f32
    %423 = vector.broadcast %cst_113 : f32 to vector<2x96xf32>
    %424 = arith.subf %423, %416 : vector<2x96xf32>
    %425 = arith.mulf %424, %422 : vector<2x96xf32>
    %426 = arith.mulf %416, %394 : vector<2x96xf32>
    %427 = arith.addf %425, %426 : vector<2x96xf32>
    %c6_i32 = arith.constant 6 : i32
    %428 = vector.broadcast %c6_i32 : i32 to vector<2x96xi32>
    %429 = arith.cmpi sgt, %177, %428 : vector<2x96xi32>
    %430 = arith.select %429, %427, %394 : vector<2x96xi1>, vector<2x96xf32>
    %431 = arith.truncf %430 : vector<2x96xf32> to vector<2x96xbf16>
    %cst_114 = arith.constant dense<0.000000e+00> : vector<2x384xf32>
    %432 = tpu.matmul %431, %175, %cst_114 {dimension_numbers = #tpu.dot_dimension_numbers<[1], [0], [0], [1], [0, 0, 1, 1], [], []>} : vector<2x96xbf16>, vector<96x384xbf16>, vector<2x384xf32> -> vector<2x384xf32>
    %433 = vector.broadcast %176 : vector<1x384xf32> to vector<2x384xf32>
    %434 = arith.addf %432, %433 : vector<2x384xf32>
    %435 = vector.extract_strided_slice %171 {offsets = [0, 7, 0], sizes = [2, 1, 96], strides = [1, 1, 1]} : vector<2x8x96xf32> to vector<2x1x96xf32>
    %436 = vector.shape_cast %435 : vector<2x1x96xf32> to vector<2x96xf32>
    %437 = vector.extract_strided_slice %434 {offsets = [0, 0], sizes = [2, 96], strides = [1, 1]} : vector<2x384xf32> to vector<2x96xf32>
    %438 = arith.addf %436, %437 : vector<2x96xf32>
    %439 = arith.negf %438 : vector<2x96xf32>
    %440 = math.exp %439 : vector<2x96xf32>
    %cst_115 = arith.constant 1.000000e+00 : f32
    %441 = vector.broadcast %cst_115 : f32 to vector<2x96xf32>
    %442 = arith.addf %441, %440 : vector<2x96xf32>
    %443 = arith.divf %441, %442 : vector<2x96xf32>
    %444 = vector.extract_strided_slice %172 {offsets = [0, 7, 0], sizes = [2, 1, 96], strides = [1, 1, 1]} : vector<2x8x96xf32> to vector<2x1x96xf32>
    %445 = vector.shape_cast %444 : vector<2x1x96xf32> to vector<2x96xf32>
    %446 = vector.extract_strided_slice %434 {offsets = [0, 128], sizes = [2, 96], strides = [1, 1]} : vector<2x384xf32> to vector<2x96xf32>
    %447 = arith.addf %445, %446 : vector<2x96xf32>
    %448 = arith.negf %447 : vector<2x96xf32>
    %449 = math.exp %448 : vector<2x96xf32>
    %cst_116 = arith.constant 1.000000e+00 : f32
    %450 = vector.broadcast %cst_116 : f32 to vector<2x96xf32>
    %451 = arith.addf %450, %449 : vector<2x96xf32>
    %452 = arith.divf %450, %451 : vector<2x96xf32>
    %453 = vector.extract_strided_slice %173 {offsets = [0, 7, 0], sizes = [2, 1, 96], strides = [1, 1, 1]} : vector<2x8x96xf32> to vector<2x1x96xf32>
    %454 = vector.shape_cast %453 : vector<2x1x96xf32> to vector<2x96xf32>
    %455 = vector.extract_strided_slice %434 {offsets = [0, 256], sizes = [2, 96], strides = [1, 1]} : vector<2x384xf32> to vector<2x96xf32>
    %456 = arith.mulf %443, %455 : vector<2x96xf32>
    %457 = arith.addf %454, %456 : vector<2x96xf32>
    %458 = math.tanh %457 : vector<2x96xf32>
    %cst_117 = arith.constant 1.000000e+00 : f32
    %459 = vector.broadcast %cst_117 : f32 to vector<2x96xf32>
    %460 = arith.subf %459, %452 : vector<2x96xf32>
    %461 = arith.mulf %460, %458 : vector<2x96xf32>
    %462 = arith.mulf %452, %430 : vector<2x96xf32>
    %463 = arith.addf %461, %462 : vector<2x96xf32>
    %c7_i32 = arith.constant 7 : i32
    %464 = vector.broadcast %c7_i32 : i32 to vector<2x96xi32>
    %465 = arith.cmpi sgt, %177, %464 : vector<2x96xi32>
    %466 = arith.select %465, %463, %430 : vector<2x96xi1>, vector<2x96xf32>
    %c0_118 = arith.constant 0 : index
    %c0_119 = arith.constant 0 : index
    %467 = vector.load %arg25[%c0_118, %c0_119] : memref<1x96xf32, #tpu.memory_space<vmem>>, vector<1x96xf32>
    %468 = vector.broadcast %467 : vector<1x96xf32> to vector<2x96xf32>
    %469 = arith.mulf %466, %468 : vector<2x96xf32>
    %470 = vector.extract_strided_slice %469 {offsets = [0, 0], sizes = [2, 32], strides = [1, 1]} : vector<2x96xf32> to vector<2x32xf32>
    %471 = vector.extract_strided_slice %469 {offsets = [0, 32], sizes = [2, 32], strides = [1, 1]} : vector<2x96xf32> to vector<2x32xf32>
    %472 = arith.addf %470, %471 : vector<2x32xf32>
    %473 = vector.extract_strided_slice %469 {offsets = [0, 64], sizes = [2, 32], strides = [1, 1]} : vector<2x96xf32> to vector<2x32xf32>
    %474 = arith.addf %472, %473 : vector<2x32xf32>
    %c0_120 = arith.constant 0 : index
    %c0_121 = arith.constant 0 : index
    %475 = vector.load %arg26[%c0_120, %c0_121] : memref<32x64xf32, #tpu.memory_space<vmem>>, vector<32x64xf32>
    %476 = arith.truncf %474 : vector<2x32xf32> to vector<2x32xbf16>
    %477 = arith.truncf %475 : vector<32x64xf32> to vector<32x64xbf16>
    %cst_122 = arith.constant dense<0.000000e+00> : vector<2x64xf32>
    %478 = tpu.matmul %476, %477, %cst_122 {dimension_numbers = #tpu.dot_dimension_numbers<[1], [0], [0], [1], [0, 0, 1, 1], [], []>} : vector<2x32xbf16>, vector<32x64xbf16>, vector<2x64xf32> -> vector<2x64xf32>
    %c0_123 = arith.constant 0 : index
    %c0_124 = arith.constant 0 : index
    %479 = vector.load %arg27[%c0_123, %c0_124] : memref<1x64xf32, #tpu.memory_space<vmem>>, vector<1x64xf32>
    %480 = vector.broadcast %479 : vector<1x64xf32> to vector<2x64xf32>
    %481 = arith.addf %478, %480 : vector<2x64xf32>
    %482 = vector.extract_strided_slice %481 {offsets = [0, 0], sizes = [2, 32], strides = [1, 1]} : vector<2x64xf32> to vector<2x32xf32>
    %c0_125 = arith.constant 0 : index
    %c0_126 = arith.constant 0 : index
    %483 = vector.load %arg28[%c0_125, %c0_126] : memref<2x32xf32, #tpu.memory_space<vmem>>, vector<2x32xf32>
    %484 = vector.extract_strided_slice %481 {offsets = [0, 32], sizes = [2, 32], strides = [1, 1]} : vector<2x64xf32> to vector<2x32xf32>
    %cst_127 = arith.constant 5.000000e-01 : f32
    %485 = vector.broadcast %cst_127 : f32 to vector<2x32xf32>
    %486 = arith.mulf %485, %484 : vector<2x32xf32>
    %487 = math.exp %486 : vector<2x32xf32>
    %488 = arith.mulf %483, %487 : vector<2x32xf32>
    %489 = arith.addf %482, %488 : vector<2x32xf32>
    %490 = tpu.concatenate %481, %489 in 1 : vector<2x64xf32>, vector<2x32xf32> -> vector<2x96xf32>
    %c0_128 = arith.constant 0 : index
    %c0_129 = arith.constant 0 : index
    %491 = vector.load %arg38[%c0_128, %c0_129] : memref<2x96xf32, #tpu.memory_space<vmem>>, vector<2x96xf32>
    tpu.vector_store %arg38[%c0_128, %c0_129], %490 {strides = array<i32>} : memref<2x96xf32, #tpu.memory_space<vmem>>, vector<2x96xf32>,
    %c0_130 = arith.constant 0 : index
    %c0_131 = arith.constant 0 : index
    %492 = vector.load %arg29[%c0_130, %c0_131] : memref<32x96xf32, #tpu.memory_space<vmem>>, vector<32x96xf32>
    %493 = arith.truncf %95 : vector<16x32xf32> to vector<16x32xbf16>
    %494 = arith.truncf %492 : vector<32x96xf32> to vector<32x96xbf16>
    %cst_132 = arith.constant dense<0.000000e+00> : vector<16x96xf32>
    %495 = tpu.matmul %493, %494, %cst_132 {dimension_numbers = #tpu.dot_dimension_numbers<[1], [0], [0], [1], [0, 0, 1, 1], [], []>} : vector<16x32xbf16>, vector<32x96xbf16>, vector<16x96xf32> -> vector<16x96xf32>
    %c0_133 = arith.constant 0 : index
    %c0_134 = arith.constant 0 : index
    %496 = vector.load %arg31[%c0_133, %c0_134] : memref<1x96xf32, #tpu.memory_space<vmem>>, vector<1x96xf32>
    %497 = vector.broadcast %496 : vector<1x96xf32> to vector<16x96xf32>
    %498 = arith.addf %495, %497 : vector<16x96xf32>
    %499 = vector.shape_cast %498 : vector<16x96xf32> to vector<2x8x96xf32>
    %500 = vector.extract_strided_slice %499 {offsets = [0, 0, 0], sizes = [2, 8, 32], strides = [1, 1, 1]} : vector<2x8x96xf32> to vector<2x8x32xf32>
    %501 = vector.extract_strided_slice %499 {offsets = [0, 0, 32], sizes = [2, 8, 32], strides = [1, 1, 1]} : vector<2x8x96xf32> to vector<2x8x32xf32>
    %502 = vector.extract_strided_slice %499 {offsets = [0, 0, 64], sizes = [2, 8, 32], strides = [1, 1, 1]} : vector<2x8x96xf32> to vector<2x8x32xf32>
    %c0_135 = arith.constant 0 : index
    %c0_136 = arith.constant 0 : index
    %503 = vector.load %arg31[%c0_135, %c0_136] : memref<1x96xf32, #tpu.memory_space<vmem>>, vector<1x96xf32>
    %504 = vector.extract_strided_slice %503 {offsets = [0, 0], sizes = [1, 32], strides = [1, 1]} : vector<1x96xf32> to vector<1x32xf32>
    %505 = vector.extract_strided_slice %503 {offsets = [0, 32], sizes = [1, 32], strides = [1, 1]} : vector<1x96xf32> to vector<1x32xf32>
    %506 = vector.extract_strided_slice %503 {offsets = [0, 64], sizes = [1, 32], strides = [1, 1]} : vector<1x96xf32> to vector<1x32xf32>
    %c0_137 = arith.constant 0 : index
    %c0_138 = arith.constant 0 : index
    %507 = vector.load %arg30[%c0_137, %c0_138] : memref<32x96xf32, #tpu.memory_space<vmem>>, vector<32x96xf32>
    %508 = arith.truncf %507 : vector<32x96xf32> to vector<32x96xbf16>
    %c0_139 = arith.constant 0 : index
    %c0_140 = arith.constant 0 : index
    %509 = vector.load %arg32[%c0_139, %c0_140] : memref<1x96xf32, #tpu.memory_space<vmem>>, vector<1x96xf32>
    %c0_141 = arith.constant 0 : index
    %c0_142 = arith.constant 0 : index
    %510 = vector.load %arg18[%c0_141, %c0_142] : memref<2x1xi32, #tpu.memory_space<vmem>>, vector<2x1xi32>
    %511 = arith.truncf %489 : vector<2x32xf32> to vector<2x32xbf16>
    %cst_143 = arith.constant dense<0.000000e+00> : vector<2x96xf32>
    %512 = tpu.matmul %511, %508, %cst_143 {dimension_numbers = #tpu.dot_dimension_numbers<[1], [0], [0], [1], [0, 0, 1, 1], [], []>} : vector<2x32xbf16>, vector<32x96xbf16>, vector<2x96xf32> -> vector<2x96xf32>
    %513 = vector.broadcast %509 : vector<1x96xf32> to vector<2x96xf32>
    %514 = arith.addf %512, %513 : vector<2x96xf32>
    %515 = vector.extract_strided_slice %514 {offsets = [0, 0], sizes = [2, 32], strides = [1, 1]} : vector<2x96xf32> to vector<2x32xf32>
    %516 = vector.broadcast %504 : vector<1x32xf32> to vector<2x32xf32>
    %517 = arith.addf %516, %515 : vector<2x32xf32>
    %518 = arith.negf %517 : vector<2x32xf32>
    %519 = math.exp %518 : vector<2x32xf32>
    %cst_144 = arith.constant 1.000000e+00 : f32
    %520 = vector.broadcast %cst_144 : f32 to vector<2x32xf32>
    %521 = arith.addf %520, %519 : vector<2x32xf32>
    %522 = arith.divf %520, %521 : vector<2x32xf32>
    %523 = vector.extract_strided_slice %514 {offsets = [0, 32], sizes = [2, 32], strides = [1, 1]} : vector<2x96xf32> to vector<2x32xf32>
    %524 = vector.broadcast %505 : vector<1x32xf32> to vector<2x32xf32>
    %525 = arith.addf %524, %523 : vector<2x32xf32>
    %526 = arith.negf %525 : vector<2x32xf32>
    %527 = math.exp %526 : vector<2x32xf32>
    %cst_145 = arith.constant 1.000000e+00 : f32
    %528 = vector.broadcast %cst_145 : f32 to vector<2x32xf32>
    %529 = arith.addf %528, %527 : vector<2x32xf32>
    %530 = arith.divf %528, %529 : vector<2x32xf32>
    %531 = vector.extract_strided_slice %514 {offsets = [0, 64], sizes = [2, 32], strides = [1, 1]} : vector<2x96xf32> to vector<2x32xf32>
    %532 = arith.mulf %522, %531 : vector<2x32xf32>
    %533 = vector.broadcast %506 : vector<1x32xf32> to vector<2x32xf32>
    %534 = arith.addf %533, %532 : vector<2x32xf32>
    %535 = math.tanh %534 : vector<2x32xf32>
    %cst_146 = arith.constant 1.000000e+00 : f32
    %536 = vector.broadcast %cst_146 : f32 to vector<2x32xf32>
    %537 = arith.subf %536, %530 : vector<2x32xf32>
    %538 = arith.mulf %537, %535 : vector<2x32xf32>
    %539 = arith.mulf %530, %489 : vector<2x32xf32>
    %540 = arith.addf %538, %539 : vector<2x32xf32>
    %c0_i32_147 = arith.constant 0 : i32
    %541 = vector.broadcast %c0_i32_147 : i32 to vector<2x1xi32>
    %542 = arith.cmpi sgt, %510, %541 : vector<2x1xi32>
    %543 = vector.shape_cast %542 : vector<2x1xi1> to vector<2x1xi1>
    %544 = vector.broadcast %543 : vector<2x1xi1> to vector<2x32xi1>
    %545 = arith.select %544, %540, %489 : vector<2x32xi1>, vector<2x32xf32>
    %cst_148 = arith.constant 0.000000e+00 : f32
    %546 = vector.shape_cast %542 : vector<2x1xi1> to vector<2x1xi1>
    %547 = vector.broadcast %546 : vector<2x1xi1> to vector<2x32xi1>
    %548 = vector.broadcast %cst_148 : f32 to vector<2x32xf32>
    %549 = arith.select %547, %540, %548 : vector<2x32xi1>, vector<2x32xf32>
    %550 = arith.truncf %545 : vector<2x32xf32> to vector<2x32xbf16>
    %cst_149 = arith.constant dense<0.000000e+00> : vector<2x96xf32>
    %551 = tpu.matmul %550, %508, %cst_149 {dimension_numbers = #tpu.dot_dimension_numbers<[1], [0], [0], [1], [0, 0, 1, 1], [], []>} : vector<2x32xbf16>, vector<32x96xbf16>, vector<2x96xf32> -> vector<2x96xf32>
    %552 = vector.broadcast %509 : vector<1x96xf32> to vector<2x96xf32>
    %553 = arith.addf %551, %552 : vector<2x96xf32>
    %554 = vector.extract_strided_slice %500 {offsets = [0, 0, 0], sizes = [2, 1, 32], strides = [1, 1, 1]} : vector<2x8x32xf32> to vector<2x1x32xf32>
    %555 = vector.shape_cast %554 : vector<2x1x32xf32> to vector<2x32xf32>
    %556 = vector.extract_strided_slice %501 {offsets = [0, 0, 0], sizes = [2, 1, 32], strides = [1, 1, 1]} : vector<2x8x32xf32> to vector<2x1x32xf32>
    %557 = vector.shape_cast %556 : vector<2x1x32xf32> to vector<2x32xf32>
    %558 = vector.extract_strided_slice %502 {offsets = [0, 0, 0], sizes = [2, 1, 32], strides = [1, 1, 1]} : vector<2x8x32xf32> to vector<2x1x32xf32>
    %559 = vector.shape_cast %558 : vector<2x1x32xf32> to vector<2x32xf32>
    %560 = vector.extract_strided_slice %553 {offsets = [0, 0], sizes = [2, 32], strides = [1, 1]} : vector<2x96xf32> to vector<2x32xf32>
    %561 = arith.addf %555, %560 : vector<2x32xf32>
    %562 = arith.negf %561 : vector<2x32xf32>
    %563 = math.exp %562 : vector<2x32xf32>
    %cst_150 = arith.constant 1.000000e+00 : f32
    %564 = vector.broadcast %cst_150 : f32 to vector<2x32xf32>
    %565 = arith.addf %564, %563 : vector<2x32xf32>
    %566 = arith.divf %564, %565 : vector<2x32xf32>
    %567 = vector.extract_strided_slice %553 {offsets = [0, 32], sizes = [2, 32], strides = [1, 1]} : vector<2x96xf32> to vector<2x32xf32>
    %568 = arith.addf %557, %567 : vector<2x32xf32>
    %569 = arith.negf %568 : vector<2x32xf32>
    %570 = math.exp %569 : vector<2x32xf32>
    %cst_151 = arith.constant 1.000000e+00 : f32
    %571 = vector.broadcast %cst_151 : f32 to vector<2x32xf32>
    %572 = arith.addf %571, %570 : vector<2x32xf32>
    %573 = arith.divf %571, %572 : vector<2x32xf32>
    %574 = vector.extract_strided_slice %553 {offsets = [0, 64], sizes = [2, 32], strides = [1, 1]} : vector<2x96xf32> to vector<2x32xf32>
    %575 = arith.mulf %566, %574 : vector<2x32xf32>
    %576 = arith.addf %559, %575 : vector<2x32xf32>
    %577 = math.tanh %576 : vector<2x32xf32>
    %cst_152 = arith.constant 1.000000e+00 : f32
    %578 = vector.broadcast %cst_152 : f32 to vector<2x32xf32>
    %579 = arith.subf %578, %573 : vector<2x32xf32>
    %580 = arith.mulf %579, %577 : vector<2x32xf32>
    %581 = arith.mulf %573, %545 : vector<2x32xf32>
    %582 = arith.addf %580, %581 : vector<2x32xf32>
    %c1_i32_153 = arith.constant 1 : i32
    %583 = vector.broadcast %c1_i32_153 : i32 to vector<2x1xi32>
    %584 = arith.cmpi sgt, %510, %583 : vector<2x1xi32>
    %585 = vector.shape_cast %584 : vector<2x1xi1> to vector<2x1xi1>
    %586 = vector.broadcast %585 : vector<2x1xi1> to vector<2x32xi1>
    %587 = arith.select %586, %582, %545 : vector<2x32xi1>, vector<2x32xf32>
    %cst_154 = arith.constant 0.000000e+00 : f32
    %588 = vector.shape_cast %584 : vector<2x1xi1> to vector<2x1xi1>
    %589 = vector.broadcast %588 : vector<2x1xi1> to vector<2x32xi1>
    %590 = vector.broadcast %cst_154 : f32 to vector<2x32xf32>
    %591 = arith.select %589, %582, %590 : vector<2x32xi1>, vector<2x32xf32>
    %592 = arith.truncf %587 : vector<2x32xf32> to vector<2x32xbf16>
    %cst_155 = arith.constant dense<0.000000e+00> : vector<2x96xf32>
    %593 = tpu.matmul %592, %508, %cst_155 {dimension_numbers = #tpu.dot_dimension_numbers<[1], [0], [0], [1], [0, 0, 1, 1], [], []>} : vector<2x32xbf16>, vector<32x96xbf16>, vector<2x96xf32> -> vector<2x96xf32>
    %594 = vector.broadcast %509 : vector<1x96xf32> to vector<2x96xf32>
    %595 = arith.addf %593, %594 : vector<2x96xf32>
    %596 = vector.extract_strided_slice %500 {offsets = [0, 1, 0], sizes = [2, 1, 32], strides = [1, 1, 1]} : vector<2x8x32xf32> to vector<2x1x32xf32>
    %597 = vector.shape_cast %596 : vector<2x1x32xf32> to vector<2x32xf32>
    %598 = vector.extract_strided_slice %501 {offsets = [0, 1, 0], sizes = [2, 1, 32], strides = [1, 1, 1]} : vector<2x8x32xf32> to vector<2x1x32xf32>
    %599 = vector.shape_cast %598 : vector<2x1x32xf32> to vector<2x32xf32>
    %600 = vector.extract_strided_slice %502 {offsets = [0, 1, 0], sizes = [2, 1, 32], strides = [1, 1, 1]} : vector<2x8x32xf32> to vector<2x1x32xf32>
    %601 = vector.shape_cast %600 : vector<2x1x32xf32> to vector<2x32xf32>
    %602 = vector.extract_strided_slice %595 {offsets = [0, 0], sizes = [2, 32], strides = [1, 1]} : vector<2x96xf32> to vector<2x32xf32>
    %603 = arith.addf %597, %602 : vector<2x32xf32>
    %604 = arith.negf %603 : vector<2x32xf32>
    %605 = math.exp %604 : vector<2x32xf32>
    %cst_156 = arith.constant 1.000000e+00 : f32
    %606 = vector.broadcast %cst_156 : f32 to vector<2x32xf32>
    %607 = arith.addf %606, %605 : vector<2x32xf32>
    %608 = arith.divf %606, %607 : vector<2x32xf32>
    %609 = vector.extract_strided_slice %595 {offsets = [0, 32], sizes = [2, 32], strides = [1, 1]} : vector<2x96xf32> to vector<2x32xf32>
    %610 = arith.addf %599, %609 : vector<2x32xf32>
    %611 = arith.negf %610 : vector<2x32xf32>
    %612 = math.exp %611 : vector<2x32xf32>
    %cst_157 = arith.constant 1.000000e+00 : f32
    %613 = vector.broadcast %cst_157 : f32 to vector<2x32xf32>
    %614 = arith.addf %613, %612 : vector<2x32xf32>
    %615 = arith.divf %613, %614 : vector<2x32xf32>
    %616 = vector.extract_strided_slice %595 {offsets = [0, 64], sizes = [2, 32], strides = [1, 1]} : vector<2x96xf32> to vector<2x32xf32>
    %617 = arith.mulf %608, %616 : vector<2x32xf32>
    %618 = arith.addf %601, %617 : vector<2x32xf32>
    %619 = math.tanh %618 : vector<2x32xf32>
    %cst_158 = arith.constant 1.000000e+00 : f32
    %620 = vector.broadcast %cst_158 : f32 to vector<2x32xf32>
    %621 = arith.subf %620, %615 : vector<2x32xf32>
    %622 = arith.mulf %621, %619 : vector<2x32xf32>
    %623 = arith.mulf %615, %587 : vector<2x32xf32>
    %624 = arith.addf %622, %623 : vector<2x32xf32>
    %c2_i32_159 = arith.constant 2 : i32
    %625 = vector.broadcast %c2_i32_159 : i32 to vector<2x1xi32>
    %626 = arith.cmpi sgt, %510, %625 : vector<2x1xi32>
    %627 = vector.shape_cast %626 : vector<2x1xi1> to vector<2x1xi1>
    %628 = vector.broadcast %627 : vector<2x1xi1> to vector<2x32xi1>
    %629 = arith.select %628, %624, %587 : vector<2x32xi1>, vector<2x32xf32>
    %cst_160 = arith.constant 0.000000e+00 : f32
    %630 = vector.shape_cast %626 : vector<2x1xi1> to vector<2x1xi1>
    %631 = vector.broadcast %630 : vector<2x1xi1> to vector<2x32xi1>
    %632 = vector.broadcast %cst_160 : f32 to vector<2x32xf32>
    %633 = arith.select %631, %624, %632 : vector<2x32xi1>, vector<2x32xf32>
    %634 = arith.truncf %629 : vector<2x32xf32> to vector<2x32xbf16>
    %cst_161 = arith.constant dense<0.000000e+00> : vector<2x96xf32>
    %635 = tpu.matmul %634, %508, %cst_161 {dimension_numbers = #tpu.dot_dimension_numbers<[1], [0], [0], [1], [0, 0, 1, 1], [], []>} : vector<2x32xbf16>, vector<32x96xbf16>, vector<2x96xf32> -> vector<2x96xf32>
    %636 = vector.broadcast %509 : vector<1x96xf32> to vector<2x96xf32>
    %637 = arith.addf %635, %636 : vector<2x96xf32>
    %638 = vector.extract_strided_slice %500 {offsets = [0, 2, 0], sizes = [2, 1, 32], strides = [1, 1, 1]} : vector<2x8x32xf32> to vector<2x1x32xf32>
    %639 = vector.shape_cast %638 : vector<2x1x32xf32> to vector<2x32xf32>
    %640 = vector.extract_strided_slice %501 {offsets = [0, 2, 0], sizes = [2, 1, 32], strides = [1, 1, 1]} : vector<2x8x32xf32> to vector<2x1x32xf32>
    %641 = vector.shape_cast %640 : vector<2x1x32xf32> to vector<2x32xf32>
    %642 = vector.extract_strided_slice %502 {offsets = [0, 2, 0], sizes = [2, 1, 32], strides = [1, 1, 1]} : vector<2x8x32xf32> to vector<2x1x32xf32>
    %643 = vector.shape_cast %642 : vector<2x1x32xf32> to vector<2x32xf32>
    %644 = vector.extract_strided_slice %637 {offsets = [0, 0], sizes = [2, 32], strides = [1, 1]} : vector<2x96xf32> to vector<2x32xf32>
    %645 = arith.addf %639, %644 : vector<2x32xf32>
    %646 = arith.negf %645 : vector<2x32xf32>
    %647 = math.exp %646 : vector<2x32xf32>
    %cst_162 = arith.constant 1.000000e+00 : f32
    %648 = vector.broadcast %cst_162 : f32 to vector<2x32xf32>
    %649 = arith.addf %648, %647 : vector<2x32xf32>
    %650 = arith.divf %648, %649 : vector<2x32xf32>
    %651 = vector.extract_strided_slice %637 {offsets = [0, 32], sizes = [2, 32], strides = [1, 1]} : vector<2x96xf32> to vector<2x32xf32>
    %652 = arith.addf %641, %651 : vector<2x32xf32>
    %653 = arith.negf %652 : vector<2x32xf32>
    %654 = math.exp %653 : vector<2x32xf32>
    %cst_163 = arith.constant 1.000000e+00 : f32
    %655 = vector.broadcast %cst_163 : f32 to vector<2x32xf32>
    %656 = arith.addf %655, %654 : vector<2x32xf32>
    %657 = arith.divf %655, %656 : vector<2x32xf32>
    %658 = vector.extract_strided_slice %637 {offsets = [0, 64], sizes = [2, 32], strides = [1, 1]} : vector<2x96xf32> to vector<2x32xf32>
    %659 = arith.mulf %650, %658 : vector<2x32xf32>
    %660 = arith.addf %643, %659 : vector<2x32xf32>
    %661 = math.tanh %660 : vector<2x32xf32>
    %cst_164 = arith.constant 1.000000e+00 : f32
    %662 = vector.broadcast %cst_164 : f32 to vector<2x32xf32>
    %663 = arith.subf %662, %657 : vector<2x32xf32>
    %664 = arith.mulf %663, %661 : vector<2x32xf32>
    %665 = arith.mulf %657, %629 : vector<2x32xf32>
    %666 = arith.addf %664, %665 : vector<2x32xf32>
    %c3_i32_165 = arith.constant 3 : i32
    %667 = vector.broadcast %c3_i32_165 : i32 to vector<2x1xi32>
    %668 = arith.cmpi sgt, %510, %667 : vector<2x1xi32>
    %669 = vector.shape_cast %668 : vector<2x1xi1> to vector<2x1xi1>
    %670 = vector.broadcast %669 : vector<2x1xi1> to vector<2x32xi1>
    %671 = arith.select %670, %666, %629 : vector<2x32xi1>, vector<2x32xf32>
    %cst_166 = arith.constant 0.000000e+00 : f32
    %672 = vector.shape_cast %668 : vector<2x1xi1> to vector<2x1xi1>
    %673 = vector.broadcast %672 : vector<2x1xi1> to vector<2x32xi1>
    %674 = vector.broadcast %cst_166 : f32 to vector<2x32xf32>
    %675 = arith.select %673, %666, %674 : vector<2x32xi1>, vector<2x32xf32>
    %676 = arith.truncf %671 : vector<2x32xf32> to vector<2x32xbf16>
    %cst_167 = arith.constant dense<0.000000e+00> : vector<2x96xf32>
    %677 = tpu.matmul %676, %508, %cst_167 {dimension_numbers = #tpu.dot_dimension_numbers<[1], [0], [0], [1], [0, 0, 1, 1], [], []>} : vector<2x32xbf16>, vector<32x96xbf16>, vector<2x96xf32> -> vector<2x96xf32>
    %678 = vector.broadcast %509 : vector<1x96xf32> to vector<2x96xf32>
    %679 = arith.addf %677, %678 : vector<2x96xf32>
    %680 = vector.extract_strided_slice %500 {offsets = [0, 3, 0], sizes = [2, 1, 32], strides = [1, 1, 1]} : vector<2x8x32xf32> to vector<2x1x32xf32>
    %681 = vector.shape_cast %680 : vector<2x1x32xf32> to vector<2x32xf32>
    %682 = vector.extract_strided_slice %501 {offsets = [0, 3, 0], sizes = [2, 1, 32], strides = [1, 1, 1]} : vector<2x8x32xf32> to vector<2x1x32xf32>
    %683 = vector.shape_cast %682 : vector<2x1x32xf32> to vector<2x32xf32>
    %684 = vector.extract_strided_slice %502 {offsets = [0, 3, 0], sizes = [2, 1, 32], strides = [1, 1, 1]} : vector<2x8x32xf32> to vector<2x1x32xf32>
    %685 = vector.shape_cast %684 : vector<2x1x32xf32> to vector<2x32xf32>
    %686 = vector.extract_strided_slice %679 {offsets = [0, 0], sizes = [2, 32], strides = [1, 1]} : vector<2x96xf32> to vector<2x32xf32>
    %687 = arith.addf %681, %686 : vector<2x32xf32>
    %688 = arith.negf %687 : vector<2x32xf32>
    %689 = math.exp %688 : vector<2x32xf32>
    %cst_168 = arith.constant 1.000000e+00 : f32
    %690 = vector.broadcast %cst_168 : f32 to vector<2x32xf32>
    %691 = arith.addf %690, %689 : vector<2x32xf32>
    %692 = arith.divf %690, %691 : vector<2x32xf32>
    %693 = vector.extract_strided_slice %679 {offsets = [0, 32], sizes = [2, 32], strides = [1, 1]} : vector<2x96xf32> to vector<2x32xf32>
    %694 = arith.addf %683, %693 : vector<2x32xf32>
    %695 = arith.negf %694 : vector<2x32xf32>
    %696 = math.exp %695 : vector<2x32xf32>
    %cst_169 = arith.constant 1.000000e+00 : f32
    %697 = vector.broadcast %cst_169 : f32 to vector<2x32xf32>
    %698 = arith.addf %697, %696 : vector<2x32xf32>
    %699 = arith.divf %697, %698 : vector<2x32xf32>
    %700 = vector.extract_strided_slice %679 {offsets = [0, 64], sizes = [2, 32], strides = [1, 1]} : vector<2x96xf32> to vector<2x32xf32>
    %701 = arith.mulf %692, %700 : vector<2x32xf32>
    %702 = arith.addf %685, %701 : vector<2x32xf32>
    %703 = math.tanh %702 : vector<2x32xf32>
    %cst_170 = arith.constant 1.000000e+00 : f32
    %704 = vector.broadcast %cst_170 : f32 to vector<2x32xf32>
    %705 = arith.subf %704, %699 : vector<2x32xf32>
    %706 = arith.mulf %705, %703 : vector<2x32xf32>
    %707 = arith.mulf %699, %671 : vector<2x32xf32>
    %708 = arith.addf %706, %707 : vector<2x32xf32>
    %c4_i32_171 = arith.constant 4 : i32
    %709 = vector.broadcast %c4_i32_171 : i32 to vector<2x1xi32>
    %710 = arith.cmpi sgt, %510, %709 : vector<2x1xi32>
    %711 = vector.shape_cast %710 : vector<2x1xi1> to vector<2x1xi1>
    %712 = vector.broadcast %711 : vector<2x1xi1> to vector<2x32xi1>
    %713 = arith.select %712, %708, %671 : vector<2x32xi1>, vector<2x32xf32>
    %cst_172 = arith.constant 0.000000e+00 : f32
    %714 = vector.shape_cast %710 : vector<2x1xi1> to vector<2x1xi1>
    %715 = vector.broadcast %714 : vector<2x1xi1> to vector<2x32xi1>
    %716 = vector.broadcast %cst_172 : f32 to vector<2x32xf32>
    %717 = arith.select %715, %708, %716 : vector<2x32xi1>, vector<2x32xf32>
    %718 = arith.truncf %713 : vector<2x32xf32> to vector<2x32xbf16>
    %cst_173 = arith.constant dense<0.000000e+00> : vector<2x96xf32>
    %719 = tpu.matmul %718, %508, %cst_173 {dimension_numbers = #tpu.dot_dimension_numbers<[1], [0], [0], [1], [0, 0, 1, 1], [], []>} : vector<2x32xbf16>, vector<32x96xbf16>, vector<2x96xf32> -> vector<2x96xf32>
    %720 = vector.broadcast %509 : vector<1x96xf32> to vector<2x96xf32>
    %721 = arith.addf %719, %720 : vector<2x96xf32>
    %722 = vector.extract_strided_slice %500 {offsets = [0, 4, 0], sizes = [2, 1, 32], strides = [1, 1, 1]} : vector<2x8x32xf32> to vector<2x1x32xf32>
    %723 = vector.shape_cast %722 : vector<2x1x32xf32> to vector<2x32xf32>
    %724 = vector.extract_strided_slice %501 {offsets = [0, 4, 0], sizes = [2, 1, 32], strides = [1, 1, 1]} : vector<2x8x32xf32> to vector<2x1x32xf32>
    %725 = vector.shape_cast %724 : vector<2x1x32xf32> to vector<2x32xf32>
    %726 = vector.extract_strided_slice %502 {offsets = [0, 4, 0], sizes = [2, 1, 32], strides = [1, 1, 1]} : vector<2x8x32xf32> to vector<2x1x32xf32>
    %727 = vector.shape_cast %726 : vector<2x1x32xf32> to vector<2x32xf32>
    %728 = vector.extract_strided_slice %721 {offsets = [0, 0], sizes = [2, 32], strides = [1, 1]} : vector<2x96xf32> to vector<2x32xf32>
    %729 = arith.addf %723, %728 : vector<2x32xf32>
    %730 = arith.negf %729 : vector<2x32xf32>
    %731 = math.exp %730 : vector<2x32xf32>
    %cst_174 = arith.constant 1.000000e+00 : f32
    %732 = vector.broadcast %cst_174 : f32 to vector<2x32xf32>
    %733 = arith.addf %732, %731 : vector<2x32xf32>
    %734 = arith.divf %732, %733 : vector<2x32xf32>
    %735 = vector.extract_strided_slice %721 {offsets = [0, 32], sizes = [2, 32], strides = [1, 1]} : vector<2x96xf32> to vector<2x32xf32>
    %736 = arith.addf %725, %735 : vector<2x32xf32>
    %737 = arith.negf %736 : vector<2x32xf32>
    %738 = math.exp %737 : vector<2x32xf32>
    %cst_175 = arith.constant 1.000000e+00 : f32
    %739 = vector.broadcast %cst_175 : f32 to vector<2x32xf32>
    %740 = arith.addf %739, %738 : vector<2x32xf32>
    %741 = arith.divf %739, %740 : vector<2x32xf32>
    %742 = vector.extract_strided_slice %721 {offsets = [0, 64], sizes = [2, 32], strides = [1, 1]} : vector<2x96xf32> to vector<2x32xf32>
    %743 = arith.mulf %734, %742 : vector<2x32xf32>
    %744 = arith.addf %727, %743 : vector<2x32xf32>
    %745 = math.tanh %744 : vector<2x32xf32>
    %cst_176 = arith.constant 1.000000e+00 : f32
    %746 = vector.broadcast %cst_176 : f32 to vector<2x32xf32>
    %747 = arith.subf %746, %741 : vector<2x32xf32>
    %748 = arith.mulf %747, %745 : vector<2x32xf32>
    %749 = arith.mulf %741, %713 : vector<2x32xf32>
    %750 = arith.addf %748, %749 : vector<2x32xf32>
    %c5_i32_177 = arith.constant 5 : i32
    %751 = vector.broadcast %c5_i32_177 : i32 to vector<2x1xi32>
    %752 = arith.cmpi sgt, %510, %751 : vector<2x1xi32>
    %753 = vector.shape_cast %752 : vector<2x1xi1> to vector<2x1xi1>
    %754 = vector.broadcast %753 : vector<2x1xi1> to vector<2x32xi1>
    %755 = arith.select %754, %750, %713 : vector<2x32xi1>, vector<2x32xf32>
    %cst_178 = arith.constant 0.000000e+00 : f32
    %756 = vector.shape_cast %752 : vector<2x1xi1> to vector<2x1xi1>
    %757 = vector.broadcast %756 : vector<2x1xi1> to vector<2x32xi1>
    %758 = vector.broadcast %cst_178 : f32 to vector<2x32xf32>
    %759 = arith.select %757, %750, %758 : vector<2x32xi1>, vector<2x32xf32>
    %760 = arith.truncf %755 : vector<2x32xf32> to vector<2x32xbf16>
    %cst_179 = arith.constant dense<0.000000e+00> : vector<2x96xf32>
    %761 = tpu.matmul %760, %508, %cst_179 {dimension_numbers = #tpu.dot_dimension_numbers<[1], [0], [0], [1], [0, 0, 1, 1], [], []>} : vector<2x32xbf16>, vector<32x96xbf16>, vector<2x96xf32> -> vector<2x96xf32>
    %762 = vector.broadcast %509 : vector<1x96xf32> to vector<2x96xf32>
    %763 = arith.addf %761, %762 : vector<2x96xf32>
    %764 = vector.extract_strided_slice %500 {offsets = [0, 5, 0], sizes = [2, 1, 32], strides = [1, 1, 1]} : vector<2x8x32xf32> to vector<2x1x32xf32>
    %765 = vector.shape_cast %764 : vector<2x1x32xf32> to vector<2x32xf32>
    %766 = vector.extract_strided_slice %501 {offsets = [0, 5, 0], sizes = [2, 1, 32], strides = [1, 1, 1]} : vector<2x8x32xf32> to vector<2x1x32xf32>
    %767 = vector.shape_cast %766 : vector<2x1x32xf32> to vector<2x32xf32>
    %768 = vector.extract_strided_slice %502 {offsets = [0, 5, 0], sizes = [2, 1, 32], strides = [1, 1, 1]} : vector<2x8x32xf32> to vector<2x1x32xf32>
    %769 = vector.shape_cast %768 : vector<2x1x32xf32> to vector<2x32xf32>
    %770 = vector.extract_strided_slice %763 {offsets = [0, 0], sizes = [2, 32], strides = [1, 1]} : vector<2x96xf32> to vector<2x32xf32>
    %771 = arith.addf %765, %770 : vector<2x32xf32>
    %772 = arith.negf %771 : vector<2x32xf32>
    %773 = math.exp %772 : vector<2x32xf32>
    %cst_180 = arith.constant 1.000000e+00 : f32
    %774 = vector.broadcast %cst_180 : f32 to vector<2x32xf32>
    %775 = arith.addf %774, %773 : vector<2x32xf32>
    %776 = arith.divf %774, %775 : vector<2x32xf32>
    %777 = vector.extract_strided_slice %763 {offsets = [0, 32], sizes = [2, 32], strides = [1, 1]} : vector<2x96xf32> to vector<2x32xf32>
    %778 = arith.addf %767, %777 : vector<2x32xf32>
    %779 = arith.negf %778 : vector<2x32xf32>
    %780 = math.exp %779 : vector<2x32xf32>
    %cst_181 = arith.constant 1.000000e+00 : f32
    %781 = vector.broadcast %cst_181 : f32 to vector<2x32xf32>
    %782 = arith.addf %781, %780 : vector<2x32xf32>
    %783 = arith.divf %781, %782 : vector<2x32xf32>
    %784 = vector.extract_strided_slice %763 {offsets = [0, 64], sizes = [2, 32], strides = [1, 1]} : vector<2x96xf32> to vector<2x32xf32>
    %785 = arith.mulf %776, %784 : vector<2x32xf32>
    %786 = arith.addf %769, %785 : vector<2x32xf32>
    %787 = math.tanh %786 : vector<2x32xf32>
    %cst_182 = arith.constant 1.000000e+00 : f32
    %788 = vector.broadcast %cst_182 : f32 to vector<2x32xf32>
    %789 = arith.subf %788, %783 : vector<2x32xf32>
    %790 = arith.mulf %789, %787 : vector<2x32xf32>
    %791 = arith.mulf %783, %755 : vector<2x32xf32>
    %792 = arith.addf %790, %791 : vector<2x32xf32>
    %c6_i32_183 = arith.constant 6 : i32
    %793 = vector.broadcast %c6_i32_183 : i32 to vector<2x1xi32>
    %794 = arith.cmpi sgt, %510, %793 : vector<2x1xi32>
    %795 = vector.shape_cast %794 : vector<2x1xi1> to vector<2x1xi1>
    %796 = vector.broadcast %795 : vector<2x1xi1> to vector<2x32xi1>
    %797 = arith.select %796, %792, %755 : vector<2x32xi1>, vector<2x32xf32>
    %cst_184 = arith.constant 0.000000e+00 : f32
    %798 = vector.shape_cast %794 : vector<2x1xi1> to vector<2x1xi1>
    %799 = vector.broadcast %798 : vector<2x1xi1> to vector<2x32xi1>
    %800 = vector.broadcast %cst_184 : f32 to vector<2x32xf32>
    %801 = arith.select %799, %792, %800 : vector<2x32xi1>, vector<2x32xf32>
    %802 = arith.truncf %797 : vector<2x32xf32> to vector<2x32xbf16>
    %cst_185 = arith.constant dense<0.000000e+00> : vector<2x96xf32>
    %803 = tpu.matmul %802, %508, %cst_185 {dimension_numbers = #tpu.dot_dimension_numbers<[1], [0], [0], [1], [0, 0, 1, 1], [], []>} : vector<2x32xbf16>, vector<32x96xbf16>, vector<2x96xf32> -> vector<2x96xf32>
    %804 = vector.broadcast %509 : vector<1x96xf32> to vector<2x96xf32>
    %805 = arith.addf %803, %804 : vector<2x96xf32>
    %806 = vector.extract_strided_slice %500 {offsets = [0, 6, 0], sizes = [2, 1, 32], strides = [1, 1, 1]} : vector<2x8x32xf32> to vector<2x1x32xf32>
    %807 = vector.shape_cast %806 : vector<2x1x32xf32> to vector<2x32xf32>
    %808 = vector.extract_strided_slice %501 {offsets = [0, 6, 0], sizes = [2, 1, 32], strides = [1, 1, 1]} : vector<2x8x32xf32> to vector<2x1x32xf32>
    %809 = vector.shape_cast %808 : vector<2x1x32xf32> to vector<2x32xf32>
    %810 = vector.extract_strided_slice %502 {offsets = [0, 6, 0], sizes = [2, 1, 32], strides = [1, 1, 1]} : vector<2x8x32xf32> to vector<2x1x32xf32>
    %811 = vector.shape_cast %810 : vector<2x1x32xf32> to vector<2x32xf32>
    %812 = vector.extract_strided_slice %805 {offsets = [0, 0], sizes = [2, 32], strides = [1, 1]} : vector<2x96xf32> to vector<2x32xf32>
    %813 = arith.addf %807, %812 : vector<2x32xf32>
    %814 = arith.negf %813 : vector<2x32xf32>
    %815 = math.exp %814 : vector<2x32xf32>
    %cst_186 = arith.constant 1.000000e+00 : f32
    %816 = vector.broadcast %cst_186 : f32 to vector<2x32xf32>
    %817 = arith.addf %816, %815 : vector<2x32xf32>
    %818 = arith.divf %816, %817 : vector<2x32xf32>
    %819 = vector.extract_strided_slice %805 {offsets = [0, 32], sizes = [2, 32], strides = [1, 1]} : vector<2x96xf32> to vector<2x32xf32>
    %820 = arith.addf %809, %819 : vector<2x32xf32>
    %821 = arith.negf %820 : vector<2x32xf32>
    %822 = math.exp %821 : vector<2x32xf32>
    %cst_187 = arith.constant 1.000000e+00 : f32
    %823 = vector.broadcast %cst_187 : f32 to vector<2x32xf32>
    %824 = arith.addf %823, %822 : vector<2x32xf32>
    %825 = arith.divf %823, %824 : vector<2x32xf32>
    %826 = vector.extract_strided_slice %805 {offsets = [0, 64], sizes = [2, 32], strides = [1, 1]} : vector<2x96xf32> to vector<2x32xf32>
    %827 = arith.mulf %818, %826 : vector<2x32xf32>
    %828 = arith.addf %811, %827 : vector<2x32xf32>
    %829 = math.tanh %828 : vector<2x32xf32>
    %cst_188 = arith.constant 1.000000e+00 : f32
    %830 = vector.broadcast %cst_188 : f32 to vector<2x32xf32>
    %831 = arith.subf %830, %825 : vector<2x32xf32>
    %832 = arith.mulf %831, %829 : vector<2x32xf32>
    %833 = arith.mulf %825, %797 : vector<2x32xf32>
    %834 = arith.addf %832, %833 : vector<2x32xf32>
    %c7_i32_189 = arith.constant 7 : i32
    %835 = vector.broadcast %c7_i32_189 : i32 to vector<2x1xi32>
    %836 = arith.cmpi sgt, %510, %835 : vector<2x1xi32>
    %cst_190 = arith.constant 0.000000e+00 : f32
    %837 = vector.shape_cast %836 : vector<2x1xi1> to vector<2x1xi1>
    %838 = vector.broadcast %837 : vector<2x1xi1> to vector<2x32xi1>
    %839 = vector.broadcast %cst_190 : f32 to vector<2x32xf32>
    %840 = arith.select %838, %834, %839 : vector<2x32xi1>, vector<2x32xf32>
    %841 = vector.shape_cast %549 : vector<2x32xf32> to vector<2x1x32xf32>
    %842 = vector.shape_cast %591 : vector<2x32xf32> to vector<2x1x32xf32>
    %843 = vector.shape_cast %633 : vector<2x32xf32> to vector<2x1x32xf32>
    %844 = vector.shape_cast %675 : vector<2x32xf32> to vector<2x1x32xf32>
    %845 = vector.shape_cast %717 : vector<2x32xf32> to vector<2x1x32xf32>
    %846 = vector.shape_cast %759 : vector<2x32xf32> to vector<2x1x32xf32>
    %847 = vector.shape_cast %801 : vector<2x32xf32> to vector<2x1x32xf32>
    %848 = vector.shape_cast %840 : vector<2x32xf32> to vector<2x1x32xf32>
    %849 = tpu.concatenate %841, %842, %843, %844, %845, %846, %847, %848 in 1 : vector<2x1x32xf32>, vector<2x1x32xf32>, vector<2x1x32xf32>, vector<2x1x32xf32>, vector<2x1x32xf32>, vector<2x1x32xf32>, vector<2x1x32xf32>, vector<2x1x32xf32> -> vector<2x8x32xf32>
    %850 = vector.shape_cast %849 : vector<2x8x32xf32> to vector<16x32xf32>
    %cst_191 = arith.constant dense<0.000000e+00> : vector<16xf32>
    %851 = vector.multi_reduction <add>, %850, %cst_191 [1] : vector<16x32xf32> to vector<16xf32>
    %852 = vector.shape_cast %851 : vector<16xf32> to vector<16x1xf32>
    %cst_192 = arith.constant 3.200000e+01 : f32
    %853 = vector.broadcast %cst_192 : f32 to vector<16x1xf32>
    %854 = arith.divf %852, %853 : vector<16x1xf32>
    %855 = vector.broadcast %854 : vector<16x1xf32> to vector<16x32xf32>
    %856 = arith.subf %850, %855 : vector<16x32xf32>
    %857 = arith.mulf %856, %856 : vector<16x32xf32>
    %cst_193 = arith.constant dense<0.000000e+00> : vector<16xf32>
    %858 = vector.multi_reduction <add>, %857, %cst_193 [1] : vector<16x32xf32> to vector<16xf32>
    %859 = vector.shape_cast %858 : vector<16xf32> to vector<16x1xf32>
    %cst_194 = arith.constant 3.200000e+01 : f32
    %860 = vector.broadcast %cst_194 : f32 to vector<16x1xf32>
    %861 = arith.divf %859, %860 : vector<16x1xf32>
    %862 = vector.broadcast %854 : vector<16x1xf32> to vector<16x32xf32>
    %863 = arith.subf %850, %862 : vector<16x32xf32>
    %cst_195 = arith.constant 9.99999974E-6 : f32
    %864 = vector.broadcast %cst_195 : f32 to vector<16x1xf32>
    %865 = arith.addf %861, %864 : vector<16x1xf32>
    %866 = math.rsqrt %865 : vector<16x1xf32>
    %867 = vector.broadcast %866 : vector<16x1xf32> to vector<16x32xf32>
    %868 = arith.mulf %863, %867 : vector<16x32xf32>
    %c0_196 = arith.constant 0 : index
    %c0_197 = arith.constant 0 : index
    %869 = vector.load %arg33[%c0_196, %c0_197] : memref<1x32xf32, #tpu.memory_space<vmem>>, vector<1x32xf32>
    %870 = vector.broadcast %869 : vector<1x32xf32> to vector<16x32xf32>
    %871 = arith.mulf %868, %870 : vector<16x32xf32>
    %c0_198 = arith.constant 0 : index
    %c0_199 = arith.constant 0 : index
    %872 = vector.load %arg34[%c0_198, %c0_199] : memref<1x32xf32, #tpu.memory_space<vmem>>, vector<1x32xf32>
    %873 = vector.broadcast %872 : vector<1x32xf32> to vector<16x32xf32>
    %874 = arith.addf %871, %873 : vector<16x32xf32>
    %c0_200 = arith.constant 0 : index
    %c0_201 = arith.constant 0 : index
    %875 = vector.load %arg35[%c0_200, %c0_201] : memref<32x64xf32, #tpu.memory_space<vmem>>, vector<32x64xf32>
    %876 = arith.truncf %874 : vector<16x32xf32> to vector<16x32xbf16>
    %877 = arith.truncf %875 : vector<32x64xf32> to vector<32x64xbf16>
    %cst_202 = arith.constant dense<0.000000e+00> : vector<16x64xf32>
    %878 = tpu.matmul %876, %877, %cst_202 {dimension_numbers = #tpu.dot_dimension_numbers<[1], [0], [0], [1], [0, 0, 1, 1], [], []>} : vector<16x32xbf16>, vector<32x64xbf16>, vector<16x64xf32> -> vector<16x64xf32>
    %c0_203 = arith.constant 0 : index
    %c0_204 = arith.constant 0 : index
    %879 = vector.load %arg36[%c0_203, %c0_204] : memref<1x64xf32, #tpu.memory_space<vmem>>, vector<1x64xf32>
    %880 = vector.broadcast %879 : vector<1x64xf32> to vector<16x64xf32>
    %881 = arith.addf %878, %880 : vector<16x64xf32>
    %c0_205 = arith.constant 0 : index
    %c0_206 = arith.constant 0 : index
    %882 = vector.load %arg37[%c0_205, %c0_206] : memref<16x64xf32, #tpu.memory_space<vmem>>, vector<16x64xf32>
    tpu.vector_store %arg37[%c0_205, %c0_206], %881 {strides = array<i32>} : memref<16x64xf32, #tpu.memory_space<vmem>>, vector<16x64xf32>,
    return
  }
}

</mosaic_0001>

<llo_original>
// kernel: mst_oatd_forward.1
$region0: #{mst_oatd_forward.1}
  #allocation0 [shape = 'u32[]', space=smem, size = 0x4, offset = 0x4, fixed_abs, tag = 'smem constant byte address 0x4 - core index']
  #allocation1 [shape = 'u32[144,128]{1,0:T(1,128)}', space=vmem, size = 0x12000, scoped, tag = 'internal scratch']
  %s0 = inlined_call_operand.smem [shape: u32[39], index: -1, kind: input, shape index: {}]
  %s1 = sld [smem:[%s0]]
  %s2 = scalar_lea.smem %s0, 1
  %s3 = sld [smem:[%s2]]
  %s4 = scalar_lea.smem %s0, 2
  %s5 = sld [smem:[%s4]]
  %s6 = scalar_lea.smem %s0, 3
  %s7 = sld [smem:[%s6]]
  %s8 = scalar_lea.smem %s0, 4
  %s9 = sld [smem:[%s8]]
  %s10 = scalar_lea.smem %s0, 5
  %s11 = sld [smem:[%s10]]
  %s12 = scalar_lea.smem %s0, 6
  %s13 = sld [smem:[%s12]]
  %s14 = scalar_lea.smem %s0, 7
  %s15 = sld [smem:[%s14]]
  %s16 = scalar_lea.smem %s0, 8
  %s17 = sld [smem:[%s16]]
  %s18 = scalar_lea.smem %s0, 9
  %s19 = sld [smem:[%s18]]
  %s20 = scalar_lea.smem %s0, 10
  %s21 = sld [smem:[%s20]]
  %s22 = scalar_lea.smem %s0, 11
  %s23 = sld [smem:[%s22]]
  %s24 = scalar_lea.smem %s0, 12
  %s25 = sld [smem:[%s24]]
  %s26 = scalar_lea.smem %s0, 13
  %s27 = sld [smem:[%s26]]
  %s28 = scalar_lea.smem %s0, 14
  %s29 = sld [smem:[%s28]]
  %s30 = scalar_lea.smem %s0, 15
  %s31 = sld [smem:[%s30]]
  %s32 = scalar_lea.smem %s0, 16
  %s33 = sld [smem:[%s32]]
  %s34 = scalar_lea.smem %s0, 17
  %s35 = sld [smem:[%s34]]
  %s36 = scalar_lea.smem %s0, 18
  %s37 = sld [smem:[%s36]]
  %s38 = scalar_lea.smem %s0, 19
  %s39 = sld [smem:[%s38]]
  %s40 = scalar_lea.smem %s0, 20
  %s41 = sld [smem:[%s40]]
  %s42 = scalar_lea.smem %s0, 21
  %s43 = sld [smem:[%s42]]
  %s44 = scalar_lea.smem %s0, 22
  %s45 = sld [smem:[%s44]]
  %s46 = scalar_lea.smem %s0, 23
  %s47 = sld [smem:[%s46]]
  %s48 = scalar_lea.smem %s0, 24
  %s49 = sld [smem:[%s48]]
  %s50 = scalar_lea.smem %s0, 25
  %s51 = sld [smem:[%s50]]
  %s52 = scalar_lea.smem %s0, 26
  %s53 = sld [smem:[%s52]]
  %s54 = scalar_lea.smem %s0, 27
  %s55 = sld [smem:[%s54]]
  %s56 = scalar_lea.smem %s0, 28
  %s57 = sld [smem:[%s56]]
  %s58 = scalar_lea.smem %s0, 29
  %s59 = sld [smem:[%s58]]
  %s60 = scalar_lea.smem %s0, 30
  %s61 = sld [smem:[%s60]]
  %s62 = scalar_lea.smem %s0, 31
  %s63 = sld [smem:[%s62]]
  %s64 = scalar_lea.smem %s0, 32
  %s65 = sld [smem:[%s64]]
  %s66 = scalar_lea.smem %s0, 33
  %s67 = sld [smem:[%s66]]
  %s68 = scalar_lea.smem %s0, 34
  %s69 = sld [smem:[%s68]]
  %s70 = scalar_lea.smem %s0, 35
  %s71 = sld [smem:[%s70]]
  %s72 = scalar_lea.smem %s0, 36
  %s73 = sld [smem:[%s72]]
  %s74 = scalar_lea.smem %s0, 37
  %s75 = sld [smem:[%s74]]
  %s76 = scalar_lea.smem %s0, 38
  %s77 = sld [smem:[%s76]]
  %78 = xla_tuple %s75, %s77
  %s79 = sld [smem:[#allocation0]]
  $region266: #{mst_oatd_forward.1} parent=0
    _
  %s81 = ssub.s32 1, %s79
  %s82 = scalar_select 0, %s81, %s79
  $region1: #{mst_oatd_forward.1} parent=0
    #allocation2 [shape = 'u8[32768]{0}', space=vmem, size = 0x8000, scoped, tag = 'input window, operand 0, single buffered']
    #allocation3 [shape = 's32[1]{0}', space=sflag, size = 0x4, scoped, tag = 'scoped memory for mst_oatd_forward.1']
    #allocation4 [shape = 's32[1]{0}', space=sflag, size = 0x4, scoped, tag = 'scoped memory for mst_oatd_forward.1']
    #allocation5 [shape = 'u8[512]{0}', space=vmem, size = 0x400, scoped, tag = 'input window, operand 2, single buffered']
    #allocation6 [shape = 's32[1]{0}', space=sflag, size = 0x4, scoped, tag = 'scoped memory for mst_oatd_forward.1']
    #allocation7 [shape = 'u8[8192]{0}', space=vmem, size = 0x2000, scoped, tag = 'input window, operand 4, single buffered']
    #allocation8 [shape = 'u8[16384]{0}', space=vmem, size = 0x4000, scoped, tag = 'input window, operand 7, single buffered']
    #allocation9 [shape = 's32[1]{0}', space=sflag, size = 0x4, scoped, tag = 'scoped memory for mst_oatd_forward.1']
    #allocation10 [shape = 'u8[16384]{0}', space=vmem, size = 0x4000, scoped, tag = 'input window, operand 8, single buffered']
    #allocation11 [shape = 'u8[512]{0}', space=vmem, size = 0x400, scoped, tag = 'input window, operand 9, single buffered']
    #allocation12 [shape = 's32[1]{0}', space=sflag, size = 0x4, scoped, tag = 'scoped memory for mst_oatd_forward.1']
    #allocation13 [shape = 'u8[16384]{0}', space=vmem, size = 0x4000, scoped, tag = 'input window, operand 10, single buffered']
    #allocation14 [shape = 'u8[512]{0}', space=vmem, size = 0x400, scoped, tag = 'input window, operand 11, single buffered']
    #allocation15 [shape = 's32[1]{0}', space=sflag, size = 0x4, scoped, tag = 'scoped memory for mst_oatd_forward.1']
    #allocation16 [shape = 'u8[512]{0}', space=vmem, size = 0x400, scoped, tag = 'input window, operand 12, single buffered']
    #allocation17 [shape = 'u8[512]{0}', space=vmem, size = 0x400, scoped, tag = 'input window, operand 13, single buffered']
    #allocation18 [shape = 's32[1]{0}', space=sflag, size = 0x4, scoped, tag = 'scoped memory for mst_oatd_forward.1']
    #allocation19 [shape = 'u8[8192]{0}', space=vmem, size = 0x2000, scoped, tag = 'input window, operand 15, single buffered']
    #allocation20 [shape = 'u8[16384]{0}', space=vmem, size = 0x4000, scoped, tag = 'input window, operand 19, single buffered']
    #allocation21 [shape = 's32[1]{0}', space=sflag, size = 0x4, scoped, tag = 'scoped memory for mst_oatd_forward.1']
    #allocation22 [shape = 'u8[1536]{0}', space=vmem, size = 0x800, scoped, tag = 'input window, operand 23, single buffered']
    #allocation23 [shape = 'u8[1536]{0}', space=vmem, size = 0x800, scoped, tag = 'input window, operand 24, single buffered']
    #allocation24 [shape = 's32[1]{0}', space=sflag, size = 0x4, scoped, tag = 'scoped memory for mst_oatd_forward.1']
    #allocation25 [shape = 'u8[512]{0}', space=vmem, size = 0x400, scoped, tag = 'input window, operand 25, single buffered']
    #allocation26 [shape = 'u8[16384]{0}', space=vmem, size = 0x4000, scoped, tag = 'input window, operand 26, single buffered']
    #allocation27 [shape = 's32[1]{0}', space=sflag, size = 0x4, scoped, tag = 'scoped memory for mst_oatd_forward.1']
    #allocation28 [shape = 'u8[512]{0}', space=vmem, size = 0x400, scoped, tag = 'input window, operand 27, single buffered']
    #allocation29 [shape = 'u8[16384]{0}', space=vmem, size = 0x4000, scoped, tag = 'input window, operand 29, single buffered']
    #allocation30 [shape = 's32[1]{0}', space=sflag, size = 0x4, scoped, tag = 'scoped memory for mst_oatd_forward.1']
    #allocation31 [shape = 'u8[16384]{0}', space=vmem, size = 0x4000, scoped, tag = 'input window, operand 30, single buffered']
    #allocation32 [shape = 'u8[512]{0}', space=vmem, size = 0x400, scoped, tag = 'input window, operand 31, single buffered']
    #allocation33 [shape = 's32[1]{0}', space=sflag, size = 0x4, scoped, tag = 'scoped memory for mst_oatd_forward.1']
    #allocation34 [shape = 'u8[512]{0}', space=vmem, size = 0x400, scoped, tag = 'input window, operand 32, single buffered']
    #allocation35 [shape = 'u8[512]{0}', space=vmem, size = 0x400, scoped, tag = 'input window, operand 33, single buffered']
    #allocation36 [shape = 's32[1]{0}', space=sflag, size = 0x4, scoped, tag = 'scoped memory for mst_oatd_forward.1']
    #allocation37 [shape = 'u8[512]{0}', space=vmem, size = 0x400, scoped, tag = 'input window, operand 34, single buffered']
    #allocation38 [shape = 'u8[16384]{0}', space=vmem, size = 0x4000, scoped, tag = 'input window, operand 35, single buffered']
    #allocation39 [shape = 's32[1]{0}', space=sflag, size = 0x4, scoped, tag = 'scoped memory for mst_oatd_forward.1']
    #allocation40 [shape = 'u8[512]{0}', space=vmem, size = 0x400, scoped, tag = 'input window, operand 36, single buffered']
    #allocation41 [shape = 'u8[8192]{0}', space=vmem, size = 0x2000, scoped, tag = 'output window, operand 0, single buffered']
    %83 = vsyncpa [#allocation3], 0
    %84 = vsyncpa [#allocation6], 0
    %85 = vsyncpa [#allocation9], 0
    %86 = vsyncpa [#allocation12], 0
    %87 = vsyncpa [#allocation15], 0
    %88 = vsyncpa [#allocation18], 0
    %89 = vsyncpa [#allocation21], 0
    %90 = vsyncpa [#allocation24], 0
    %91 = vsyncpa [#allocation27], 0
    %92 = vsyncpa [#allocation30], 0
    %93 = vsyncpa [#allocation33], 0
    %94 = vsyncpa [#allocation36], 0
    %95 = vsyncpa [#allocation39], 0
    %96 = vsyncpa [#allocation4], 0
    // Predicated region
    $region2: #{mst_oatd_forward.1} parent=1 // pred_check
      _
    $region3: #{mst_oatd_forward.1} parent=1 // pred_check_branch
      %98 = sbr.rel (0) target = $region5
    $region4: #{mst_oatd_forward.1} parent=1 // pred_region
      %s100 = ssub.s32 1024, 1024
      %101 = vsyncadd [#allocation3], %s100
      %s102 = sshll.u32 [#allocation2], 4
      %s103 = int_to_ptr.vmem [resolvable:$true] %s102
      %108 = dma.hbm_to_vmem [thread:$0]  %s1, 1024, %s103, [#allocation3], 128, 128, 8
    $region5: #{mst_oatd_forward.1} parent=1 // pred_fallthru
      _
    // Predicated region
    $region6: #{mst_oatd_forward.1} parent=1 // pred_check
      _
    $region7: #{mst_oatd_forward.1} parent=1 // pred_check_branch
      %110 = sbr.rel (0) target = $region9
    $region8: #{mst_oatd_forward.1} parent=1 // pred_region
      _
    $region9: #{mst_oatd_forward.1} parent=1 // pred_fallthru
      _
    // Predicated region
    $region10: #{mst_oatd_forward.1} parent=1 // pred_check
      _
    $region11: #{mst_oatd_forward.1} parent=1 // pred_check_branch
      %112 = sbr.rel (0) target = $region13
    $region12: #{mst_oatd_forward.1} parent=1 // pred_region
      %s114 = ssub.s32 16, 16
      %115 = vsyncadd [#allocation6], %s114
      %s117 = sshll.u32 [#allocation5], 4
      %s118 = int_to_ptr.vmem [resolvable:$true] %s117
      %120 = dma.hbm_to_vmem [thread:$0]  %s5, 16, %s118, [#allocation6]
    $region13: #{mst_oatd_forward.1} parent=1 // pred_fallthru
      _
    // Predicated region
    $region14: #{mst_oatd_forward.1} parent=1 // pred_check
      _
    $region15: #{mst_oatd_forward.1} parent=1 // pred_check_branch
      %122 = sbr.rel (0) target = $region17
    $region16: #{mst_oatd_forward.1} parent=1 // pred_region
      _
    $region17: #{mst_oatd_forward.1} parent=1 // pred_fallthru
      _
    // Predicated region
    $region18: #{mst_oatd_forward.1} parent=1 // pred_check
      _
    $region19: #{mst_oatd_forward.1} parent=1 // pred_check_branch
      %124 = sbr.rel (0) target = $region21
    $region20: #{mst_oatd_forward.1} parent=1 // pred_region
      %s126 = ssub.s32 256, 256
      %127 = vsyncadd [#allocation6], %s126
      %s128 = sshll.u32 [#allocation7], 4
      %s129 = int_to_ptr.vmem [resolvable:$true] %s128
      %134 = dma.hbm_to_vmem [thread:$0]  %s9, 256, %s129, [#allocation6], 128, 128, 8
    $region21: #{mst_oatd_forward.1} parent=1 // pred_fallthru
      _
    // Predicated region
    $region22: #{mst_oatd_forward.1} parent=1 // pred_check
      _
    $region23: #{mst_oatd_forward.1} parent=1 // pred_check_branch
      %136 = sbr.rel (0) target = $region25
    $region24: #{mst_oatd_forward.1} parent=1 // pred_region
      _
    $region25: #{mst_oatd_forward.1} parent=1 // pred_fallthru
      _
    // Predicated region
    $region26: #{mst_oatd_forward.1} parent=1 // pred_check
      _
    $region27: #{mst_oatd_forward.1} parent=1 // pred_check_branch
      %138 = sbr.rel (0) target = $region29
    $region28: #{mst_oatd_forward.1} parent=1 // pred_region
      _
    $region29: #{mst_oatd_forward.1} parent=1 // pred_fallthru
      _
    // Predicated region
    $region30: #{mst_oatd_forward.1} parent=1 // pred_check
      _
    $region31: #{mst_oatd_forward.1} parent=1 // pred_check_branch
      %140 = sbr.rel (0) target = $region33
    $region32: #{mst_oatd_forward.1} parent=1 // pred_region
      %s142 = ssub.s32 512, 512
      %143 = vsyncadd [#allocation9], %s142
      %s144 = sshll.u32 [#allocation8], 4
      %s145 = int_to_ptr.vmem [resolvable:$true] %s144
      %150 = dma.hbm_to_vmem [thread:$0]  %s15, 512, %s145, [#allocation9], 128, 128, 8
    $region33: #{mst_oatd_forward.1} parent=1 // pred_fallthru
      _
    // Predicated region
    $region34: #{mst_oatd_forward.1} parent=1 // pred_check
      _
    $region35: #{mst_oatd_forward.1} parent=1 // pred_check_branch
      %152 = sbr.rel (0) target = $region37
    $region36: #{mst_oatd_forward.1} parent=1 // pred_region
      %s154 = ssub.s32 512, 512
      %155 = vsyncadd [#allocation9], %s154
      %s156 = sshll.u32 [#allocation10], 4
      %s157 = int_to_ptr.vmem [resolvable:$true] %s156
      %162 = dma.hbm_to_vmem [thread:$0]  %s17, 512, %s157, [#allocation9], 128, 128, 8
    $region37: #{mst_oatd_forward.1} parent=1 // pred_fallthru
      _
    // Predicated region
    $region38: #{mst_oatd_forward.1} parent=1 // pred_check
      _
    $region39: #{mst_oatd_forward.1} parent=1 // pred_check_branch
      %164 = sbr.rel (0) target = $region41
    $region40: #{mst_oatd_forward.1} parent=1 // pred_region
      %s166 = ssub.s32 16, 16
      %167 = vsyncadd [#allocation12], %s166
      %s169 = sshll.u32 [#allocation11], 4
      %s170 = int_to_ptr.vmem [resolvable:$true] %s169
      %172 = dma.hbm_to_vmem [thread:$0]  %s19, 16, %s170, [#allocation12]
    $region41: #{mst_oatd_forward.1} parent=1 // pred_fallthru
      _
    // Predicated region
    $region42: #{mst_oatd_forward.1} parent=1 // pred_check
      _
    $region43: #{mst_oatd_forward.1} parent=1 // pred_check_branch
      %174 = sbr.rel (0) target = $region45
    $region44: #{mst_oatd_forward.1} parent=1 // pred_region
      %s176 = ssub.s32 512, 512
      %177 = vsyncadd [#allocation12], %s176
      %s178 = sshll.u32 [#allocation13], 4
      %s179 = int_to_ptr.vmem [resolvable:$true] %s178
      %184 = dma.hbm_to_vmem [thread:$0]  %s21, 512, %s179, [#allocation12], 128, 128, 8
    $region45: #{mst_oatd_forward.1} parent=1 // pred_fallthru
      _
    // Predicated region
    $region46: #{mst_oatd_forward.1} parent=1 // pred_check
      _
    $region47: #{mst_oatd_forward.1} parent=1 // pred_check_branch
      %186 = sbr.rel (0) target = $region49
    $region48: #{mst_oatd_forward.1} parent=1 // pred_region
      %s188 = ssub.s32 16, 16
      %189 = vsyncadd [#allocation15], %s188
      %s191 = sshll.u32 [#allocation14], 4
      %s192 = int_to_ptr.vmem [resolvable:$true] %s191
      %194 = dma.hbm_to_vmem [thread:$0]  %s23, 16, %s192, [#allocation15]
    $region49: #{mst_oatd_forward.1} parent=1 // pred_fallthru
      _
    // Predicated region
    $region50: #{mst_oatd_forward.1} parent=1 // pred_check
      _
    $region51: #{mst_oatd_forward.1} parent=1 // pred_check_branch
      %196 = sbr.rel (0) target = $region53
    $region52: #{mst_oatd_forward.1} parent=1 // pred_region
      %s198 = ssub.s32 16, 16
      %199 = vsyncadd [#allocation15], %s198
      %s201 = sshll.u32 [#allocation16], 4
      %s202 = int_to_ptr.vmem [resolvable:$true] %s201
      %204 = dma.hbm_to_vmem [thread:$0]  %s25, 16, %s202, [#allocation15]
    $region53: #{mst_oatd_forward.1} parent=1 // pred_fallthru
      _
    // Predicated region
    $region54: #{mst_oatd_forward.1} parent=1 // pred_check
      _
    $region55: #{mst_oatd_forward.1} parent=1 // pred_check_branch
      %206 = sbr.rel (0) target = $region57
    $region56: #{mst_oatd_forward.1} parent=1 // pred_region
      %s208 = ssub.s32 16, 16
      %209 = vsyncadd [#allocation18], %s208
      %s211 = sshll.u32 [#allocation17], 4
      %s212 = int_to_ptr.vmem [resolvable:$true] %s211
      %214 = dma.hbm_to_vmem [thread:$0]  %s27, 16, %s212, [#allocation18]
    $region57: #{mst_oatd_forward.1} parent=1 // pred_fallthru
      _
    // Predicated region
    $region58: #{mst_oatd_forward.1} parent=1 // pred_check
      _
    $region59: #{mst_oatd_forward.1} parent=1 // pred_check_branch
      %216 = sbr.rel (0) target = $region61
    $region60: #{mst_oatd_forward.1} parent=1 // pred_region
      _
    $region61: #{mst_oatd_forward.1} parent=1 // pred_fallthru
      _
    // Predicated region
    $region62: #{mst_oatd_forward.1} parent=1 // pred_check
      _
    $region63: #{mst_oatd_forward.1} parent=1 // pred_check_branch
      %218 = sbr.rel (0) target = $region65
    $region64: #{mst_oatd_forward.1} parent=1 // pred_region
      %s220 = ssub.s32 256, 256
      %221 = vsyncadd [#allocation18], %s220
      %s222 = sshll.u32 [#allocation19], 4
      %s223 = int_to_ptr.vmem [resolvable:$true] %s222
      %228 = dma.hbm_to_vmem [thread:$0]  %s31, 256, %s223, [#allocation18], 128, 128, 8
    $region65: #{mst_oatd_forward.1} parent=1 // pred_fallthru
      _
    // Predicated region
    $region66: #{mst_oatd_forward.1} parent=1 // pred_check
      _
    $region67: #{mst_oatd_forward.1} parent=1 // pred_check_branch
      %230 = sbr.rel (0) target = $region69
    $region68: #{mst_oatd_forward.1} parent=1 // pred_region
      _
    $region69: #{mst_oatd_forward.1} parent=1 // pred_fallthru
      _
    // Predicated region
    $region70: #{mst_oatd_forward.1} parent=1 // pred_check
      _
    $region71: #{mst_oatd_forward.1} parent=1 // pred_check_branch
      %232 = sbr.rel (0) target = $region73
    $region72: #{mst_oatd_forward.1} parent=1 // pred_region
      _
    $region73: #{mst_oatd_forward.1} parent=1 // pred_fallthru
      _
    // Predicated region
    $region74: #{mst_oatd_forward.1} parent=1 // pred_check
      _
    $region75: #{mst_oatd_forward.1} parent=1 // pred_check_branch
      %234 = sbr.rel (0) target = $region77
    $region76: #{mst_oatd_forward.1} parent=1 // pred_region
      _
    $region77: #{mst_oatd_forward.1} parent=1 // pred_fallthru
      _
    // Predicated region
    $region78: #{mst_oatd_forward.1} parent=1 // pred_check
      _
    $region79: #{mst_oatd_forward.1} parent=1 // pred_check_branch
      %236 = sbr.rel (0) target = $region81
    $region80: #{mst_oatd_forward.1} parent=1 // pred_region
      %s238 = ssub.s32 512, 512
      %239 = vsyncadd [#allocation21], %s238
      %s240 = sshll.u32 [#allocation20], 4
      %s241 = int_to_ptr.vmem [resolvable:$true] %s240
      %246 = dma.hbm_to_vmem [thread:$0]  %s39, 512, %s241, [#allocation21], 128, 128, 8
    $region81: #{mst_oatd_forward.1} parent=1 // pred_fallthru
      _
    // Predicated region
    $region82: #{mst_oatd_forward.1} parent=1 // pred_check
      _
    $region83: #{mst_oatd_forward.1} parent=1 // pred_check_branch
      %248 = sbr.rel (0) target = $region85
    $region84: #{mst_oatd_forward.1} parent=1 // pred_region
      _
    $region85: #{mst_oatd_forward.1} parent=1 // pred_fallthru
      _
    // Predicated region
    $region86: #{mst_oatd_forward.1} parent=1 // pred_check
      _
    $region87: #{mst_oatd_forward.1} parent=1 // pred_check_branch
      %250 = sbr.rel (0) target = $region89
    $region88: #{mst_oatd_forward.1} parent=1 // pred_region
      _
    $region89: #{mst_oatd_forward.1} parent=1 // pred_fallthru
      _
    // Predicated region
    $region90: #{mst_oatd_forward.1} parent=1 // pred_check
      _
    $region91: #{mst_oatd_forward.1} parent=1 // pred_check_branch
      %252 = sbr.rel (0) target = $region93
    $region92: #{mst_oatd_forward.1} parent=1 // pred_region
      _
    $region93: #{mst_oatd_forward.1} parent=1 // pred_fallthru
      _
    // Predicated region
    $region94: #{mst_oatd_forward.1} parent=1 // pred_check
      _
    $region95: #{mst_oatd_forward.1} parent=1 // pred_check_branch
      %254 = sbr.rel (0) target = $region97
    $region96: #{mst_oatd_forward.1} parent=1 // pred_region
      %s256 = ssub.s32 48, 48
      %257 = vsyncadd [#allocation21], %s256
      %s259 = sshll.u32 [#allocation22], 4
      %s260 = int_to_ptr.vmem [resolvable:$true] %s259
      %262 = dma.hbm_to_vmem [thread:$0]  %s47, 48, %s260, [#allocation21]
    $region97: #{mst_oatd_forward.1} parent=1 // pred_fallthru
      _
    // Predicated region
    $region98: #{mst_oatd_forward.1} parent=1 // pred_check
      _
    $region99: #{mst_oatd_forward.1} parent=1 // pred_check_branch
      %264 = sbr.rel (0) target = $region101
    $region100: #{mst_oatd_forward.1} parent=1 // pred_region
      %s266 = ssub.s32 48, 48
      %267 = vsyncadd [#allocation24], %s266
      %s269 = sshll.u32 [#allocation23], 4
      %s270 = int_to_ptr.vmem [resolvable:$true] %s269
      %272 = dma.hbm_to_vmem [thread:$0]  %s49, 48, %s270, [#allocation24]
    $region101: #{mst_oatd_forward.1} parent=1 // pred_fallthru
      _
    // Predicated region
    $region102: #{mst_oatd_forward.1} parent=1 // pred_check
      _
    $region103: #{mst_oatd_forward.1} parent=1 // pred_check_branch
      %274 = sbr.rel (0) target = $region105
    $region104: #{mst_oatd_forward.1} parent=1 // pred_region
      %s276 = ssub.s32 16, 16
      %277 = vsyncadd [#allocation24], %s276
      %s279 = sshll.u32 [#allocation25], 4
      %s280 = int_to_ptr.vmem [resolvable:$true] %s279
      %282 = dma.hbm_to_vmem [thread:$0]  %s51, 16, %s280, [#allocation24]
    $region105: #{mst_oatd_forward.1} parent=1 // pred_fallthru
      _
    // Predicated region
    $region106: #{mst_oatd_forward.1} parent=1 // pred_check
      _
    $region107: #{mst_oatd_forward.1} parent=1 // pred_check_branch
      %284 = sbr.rel (0) target = $region109
    $region108: #{mst_oatd_forward.1} parent=1 // pred_region
      %s286 = ssub.s32 512, 512
      %287 = vsyncadd [#allocation27], %s286
      %s288 = sshll.u32 [#allocation26], 4
      %s289 = int_to_ptr.vmem [resolvable:$true] %s288
      %294 = dma.hbm_to_vmem [thread:$0]  %s53, 512, %s289, [#allocation27], 128, 128, 8
    $region109: #{mst_oatd_forward.1} parent=1 // pred_fallthru
      _
    // Predicated region
    $region110: #{mst_oatd_forward.1} parent=1 // pred_check
      _
    $region111: #{mst_oatd_forward.1} parent=1 // pred_check_branch
      %296 = sbr.rel (0) target = $region113
    $region112: #{mst_oatd_forward.1} parent=1 // pred_region
      %s298 = ssub.s32 16, 16
      %299 = vsyncadd [#allocation27], %s298
      %s301 = sshll.u32 [#allocation28], 4
      %s302 = int_to_ptr.vmem [resolvable:$true] %s301
      %304 = dma.hbm_to_vmem [thread:$0]  %s55, 16, %s302, [#allocation27]
    $region113: #{mst_oatd_forward.1} parent=1 // pred_fallthru
      _
    // Predicated region
    $region114: #{mst_oatd_forward.1} parent=1 // pred_check
      _
    $region115: #{mst_oatd_forward.1} parent=1 // pred_check_branch
      %306 = sbr.rel (0) target = $region117
    $region116: #{mst_oatd_forward.1} parent=1 // pred_region
      _
    $region117: #{mst_oatd_forward.1} parent=1 // pred_fallthru
      _
    // Predicated region
    $region118: #{mst_oatd_forward.1} parent=1 // pred_check
      _
    $region119: #{mst_oatd_forward.1} parent=1 // pred_check_branch
      %308 = sbr.rel (0) target = $region121
    $region120: #{mst_oatd_forward.1} parent=1 // pred_region
      %s310 = ssub.s32 512, 512
      %311 = vsyncadd [#allocation30], %s310
      %s312 = sshll.u32 [#allocation29], 4
      %s313 = int_to_ptr.vmem [resolvable:$true] %s312
      %318 = dma.hbm_to_vmem [thread:$0]  %s59, 512, %s313, [#allocation30], 128, 128, 8
    $region121: #{mst_oatd_forward.1} parent=1 // pred_fallthru
      _
    // Predicated region
    $region122: #{mst_oatd_forward.1} parent=1 // pred_check
      _
    $region123: #{mst_oatd_forward.1} parent=1 // pred_check_branch
      %320 = sbr.rel (0) target = $region125
    $region124: #{mst_oatd_forward.1} parent=1 // pred_region
      %s322 = ssub.s32 512, 512
      %323 = vsyncadd [#allocation30], %s322
      %s324 = sshll.u32 [#allocation31], 4
      %s325 = int_to_ptr.vmem [resolvable:$true] %s324
      %330 = dma.hbm_to_vmem [thread:$0]  %s61, 512, %s325, [#allocation30], 128, 128, 8
    $region125: #{mst_oatd_forward.1} parent=1 // pred_fallthru
      _
    // Predicated region
    $region126: #{mst_oatd_forward.1} parent=1 // pred_check
      _
    $region127: #{mst_oatd_forward.1} parent=1 // pred_check_branch
      %332 = sbr.rel (0) target = $region129
    $region128: #{mst_oatd_forward.1} parent=1 // pred_region
      %s334 = ssub.s32 16, 16
      %335 = vsyncadd [#allocation33], %s334
      %s337 = sshll.u32 [#allocation32], 4
      %s338 = int_to_ptr.vmem [resolvable:$true] %s337
      %340 = dma.hbm_to_vmem [thread:$0]  %s63, 16, %s338, [#allocation33]
    $region129: #{mst_oatd_forward.1} parent=1 // pred_fallthru
      _
    // Predicated region
    $region130: #{mst_oatd_forward.1} parent=1 // pred_check
      _
    $region131: #{mst_oatd_forward.1} parent=1 // pred_check_branch
      %342 = sbr.rel (0) target = $region133
    $region132: #{mst_oatd_forward.1} parent=1 // pred_region
      %s344 = ssub.s32 16, 16
      %345 = vsyncadd [#allocation33], %s344
      %s347 = sshll.u32 [#allocation34], 4
      %s348 = int_to_ptr.vmem [resolvable:$true] %s347
      %350 = dma.hbm_to_vmem [thread:$0]  %s65, 16, %s348, [#allocation33]
    $region133: #{mst_oatd_forward.1} parent=1 // pred_fallthru
      _
    // Predicated region
    $region134: #{mst_oatd_forward.1} parent=1 // pred_check
      _
    $region135: #{mst_oatd_forward.1} parent=1 // pred_check_branch
      %352 = sbr.rel (0) target = $region137
    $region136: #{mst_oatd_forward.1} parent=1 // pred_region
      %s354 = ssub.s32 16, 16
      %355 = vsyncadd [#allocation36], %s354
      %s357 = sshll.u32 [#allocation35], 4
      %s358 = int_to_ptr.vmem [resolvable:$true] %s357
      %360 = dma.hbm_to_vmem [thread:$0]  %s67, 16, %s358, [#allocation36]
    $region137: #{mst_oatd_forward.1} parent=1 // pred_fallthru
      _
    // Predicated region
    $region138: #{mst_oatd_forward.1} parent=1 // pred_check
      _
    $region139: #{mst_oatd_forward.1} parent=1 // pred_check_branch
      %362 = sbr.rel (0) target = $region141
    $region140: #{mst_oatd_forward.1} parent=1 // pred_region
      %s364 = ssub.s32 16, 16
      %365 = vsyncadd [#allocation36], %s364
      %s367 = sshll.u32 [#allocation37], 4
      %s368 = int_to_ptr.vmem [resolvable:$true] %s367
      %370 = dma.hbm_to_vmem [thread:$0]  %s69, 16, %s368, [#allocation36]
    $region141: #{mst_oatd_forward.1} parent=1 // pred_fallthru
      _
    // Predicated region
    $region142: #{mst_oatd_forward.1} parent=1 // pred_check
      _
    $region143: #{mst_oatd_forward.1} parent=1 // pred_check_branch
      %372 = sbr.rel (0) target = $region145
    $region144: #{mst_oatd_forward.1} parent=1 // pred_region
      %s374 = ssub.s32 512, 512
      %375 = vsyncadd [#allocation39], %s374
      %s376 = sshll.u32 [#allocation38], 4
      %s377 = int_to_ptr.vmem [resolvable:$true] %s376
      %382 = dma.hbm_to_vmem [thread:$0]  %s71, 512, %s377, [#allocation39], 128, 128, 8
    $region145: #{mst_oatd_forward.1} parent=1 // pred_fallthru
      _
    // Predicated region
    $region146: #{mst_oatd_forward.1} parent=1 // pred_check
      _
    $region147: #{mst_oatd_forward.1} parent=1 // pred_check_branch
      %384 = sbr.rel (0) target = $region149
    $region148: #{mst_oatd_forward.1} parent=1 // pred_region
      %s386 = ssub.s32 16, 16
      %387 = vsyncadd [#allocation39], %s386
      %s389 = sshll.u32 [#allocation40], 4
      %s390 = int_to_ptr.vmem [resolvable:$true] %s389
      %392 = dma.hbm_to_vmem [thread:$0]  %s73, 16, %s390, [#allocation39]
    $region149: #{mst_oatd_forward.1} parent=1 // pred_fallthru
      _
    // Predicated region
    $region150: #{mst_oatd_forward.1} parent=1 // pred_check
      _
    $region151: #{mst_oatd_forward.1} parent=1 // pred_check_branch
      %394 = sbr.rel (0) target = $region153
    $region152: #{mst_oatd_forward.1} parent=1 // pred_region
      %395 = dma.done [#allocation3], 1024
    $region153: #{mst_oatd_forward.1} parent=1 // pred_fallthru
      _
    // Predicated region
    $region154: #{mst_oatd_forward.1} parent=1 // pred_check
      _
    $region155: #{mst_oatd_forward.1} parent=1 // pred_check_branch
      %397 = sbr.rel (0) target = $region157
    $region156: #{mst_oatd_forward.1} parent=1 // pred_region
      %398 = dma.done [#allocation6], 16
    $region157: #{mst_oatd_forward.1} parent=1 // pred_fallthru
      _
    // Predicated region
    $region158: #{mst_oatd_forward.1} parent=1 // pred_check
      _
    $region159: #{mst_oatd_forward.1} parent=1 // pred_check_branch
      %400 = sbr.rel (0) target = $region161
    $region160: #{mst_oatd_forward.1} parent=1 // pred_region
      %401 = dma.done [#allocation6], 256
    $region161: #{mst_oatd_forward.1} parent=1 // pred_fallthru
      _
    // Predicated region
    $region162: #{mst_oatd_forward.1} parent=1 // pred_check
      _
    $region163: #{mst_oatd_forward.1} parent=1 // pred_check_branch
      %403 = sbr.rel (0) target = $region165
    $region164: #{mst_oatd_forward.1} parent=1 // pred_region
      %404 = dma.done [#allocation9], 512
    $region165: #{mst_oatd_forward.1} parent=1 // pred_fallthru
      _
    // Predicated region
    $region166: #{mst_oatd_forward.1} parent=1 // pred_check
      _
    $region167: #{mst_oatd_forward.1} parent=1 // pred_check_branch
      %406 = sbr.rel (0) target = $region169
    $region168: #{mst_oatd_forward.1} parent=1 // pred_region
      %407 = dma.done [#allocation9], 512
    $region169: #{mst_oatd_forward.1} parent=1 // pred_fallthru
      _
    // Predicated region
    $region170: #{mst_oatd_forward.1} parent=1 // pred_check
      _
    $region171: #{mst_oatd_forward.1} parent=1 // pred_check_branch
      %409 = sbr.rel (0) target = $region173
    $region172: #{mst_oatd_forward.1} parent=1 // pred_region
      %410 = dma.done [#allocation12], 16
    $region173: #{mst_oatd_forward.1} parent=1 // pred_fallthru
      _
    // Predicated region
    $region174: #{mst_oatd_forward.1} parent=1 // pred_check
      _
    $region175: #{mst_oatd_forward.1} parent=1 // pred_check_branch
      %412 = sbr.rel (0) target = $region177
    $region176: #{mst_oatd_forward.1} parent=1 // pred_region
      %413 = dma.done [#allocation12], 512
    $region177: #{mst_oatd_forward.1} parent=1 // pred_fallthru
      _
    // Predicated region
    $region178: #{mst_oatd_forward.1} parent=1 // pred_check
      _
    $region179: #{mst_oatd_forward.1} parent=1 // pred_check_branch
      %415 = sbr.rel (0) target = $region181
    $region180: #{mst_oatd_forward.1} parent=1 // pred_region
      %416 = dma.done [#allocation15], 16
    $region181: #{mst_oatd_forward.1} parent=1 // pred_fallthru
      _
    // Predicated region
    $region182: #{mst_oatd_forward.1} parent=1 // pred_check
      _
    $region183: #{mst_oatd_forward.1} parent=1 // pred_check_branch
      %418 = sbr.rel (0) target = $region185
    $region184: #{mst_oatd_forward.1} parent=1 // pred_region
      %419 = dma.done [#allocation15], 16
    $region185: #{mst_oatd_forward.1} parent=1 // pred_fallthru
      _
    // Predicated region
    $region186: #{mst_oatd_forward.1} parent=1 // pred_check
      _
    $region187: #{mst_oatd_forward.1} parent=1 // pred_check_branch
      %421 = sbr.rel (0) target = $region189
    $region188: #{mst_oatd_forward.1} parent=1 // pred_region
      %422 = dma.done [#allocation18], 16
    $region189: #{mst_oatd_forward.1} parent=1 // pred_fallthru
      _
    // Predicated region
    $region190: #{mst_oatd_forward.1} parent=1 // pred_check
      _
    $region191: #{mst_oatd_forward.1} parent=1 // pred_check_branch
      %424 = sbr.rel (0) target = $region193
    $region192: #{mst_oatd_forward.1} parent=1 // pred_region
      %425 = dma.done [#allocation18], 256
    $region193: #{mst_oatd_forward.1} parent=1 // pred_fallthru
      _
    // Predicated region
    $region194: #{mst_oatd_forward.1} parent=1 // pred_check
      _
    $region195: #{mst_oatd_forward.1} parent=1 // pred_check_branch
      %427 = sbr.rel (0) target = $region197
    $region196: #{mst_oatd_forward.1} parent=1 // pred_region
      %428 = dma.done [#allocation21], 512
    $region197: #{mst_oatd_forward.1} parent=1 // pred_fallthru
      _
    // Predicated region
    $region198: #{mst_oatd_forward.1} parent=1 // pred_check
      _
    $region199: #{mst_oatd_forward.1} parent=1 // pred_check_branch
      %430 = sbr.rel (0) target = $region201
    $region200: #{mst_oatd_forward.1} parent=1 // pred_region
      %431 = dma.done [#allocation21], 48
    $region201: #{mst_oatd_forward.1} parent=1 // pred_fallthru
      _
    // Predicated region
    $region202: #{mst_oatd_forward.1} parent=1 // pred_check
      _
    $region203: #{mst_oatd_forward.1} parent=1 // pred_check_branch
      %433 = sbr.rel (0) target = $region205
    $region204: #{mst_oatd_forward.1} parent=1 // pred_region
      %434 = dma.done [#allocation24], 48
    $region205: #{mst_oatd_forward.1} parent=1 // pred_fallthru
      _
    // Predicated region
    $region206: #{mst_oatd_forward.1} parent=1 // pred_check
      _
    $region207: #{mst_oatd_forward.1} parent=1 // pred_check_branch
      %436 = sbr.rel (0) target = $region209
    $region208: #{mst_oatd_forward.1} parent=1 // pred_region
      %437 = dma.done [#allocation24], 16
    $region209: #{mst_oatd_forward.1} parent=1 // pred_fallthru
      _
    // Predicated region
    $region210: #{mst_oatd_forward.1} parent=1 // pred_check
      _
    $region211: #{mst_oatd_forward.1} parent=1 // pred_check_branch
      %439 = sbr.rel (0) target = $region213
    $region212: #{mst_oatd_forward.1} parent=1 // pred_region
      %440 = dma.done [#allocation27], 512
    $region213: #{mst_oatd_forward.1} parent=1 // pred_fallthru
      _
    // Predicated region
    $region214: #{mst_oatd_forward.1} parent=1 // pred_check
      _
    $region215: #{mst_oatd_forward.1} parent=1 // pred_check_branch
      %442 = sbr.rel (0) target = $region217
    $region216: #{mst_oatd_forward.1} parent=1 // pred_region
      %443 = dma.done [#allocation27], 16
    $region217: #{mst_oatd_forward.1} parent=1 // pred_fallthru
      _
    // Predicated region
    $region218: #{mst_oatd_forward.1} parent=1 // pred_check
      _
    $region219: #{mst_oatd_forward.1} parent=1 // pred_check_branch
      %445 = sbr.rel (0) target = $region221
    $region220: #{mst_oatd_forward.1} parent=1 // pred_region
      %446 = dma.done [#allocation30], 512
    $region221: #{mst_oatd_forward.1} parent=1 // pred_fallthru
      _
    // Predicated region
    $region222: #{mst_oatd_forward.1} parent=1 // pred_check
      _
    $region223: #{mst_oatd_forward.1} parent=1 // pred_check_branch
      %448 = sbr.rel (0) target = $region225
    $region224: #{mst_oatd_forward.1} parent=1 // pred_region
      %449 = dma.done [#allocation30], 512
    $region225: #{mst_oatd_forward.1} parent=1 // pred_fallthru
      _
    // Predicated region
    $region226: #{mst_oatd_forward.1} parent=1 // pred_check
      _
    $region227: #{mst_oatd_forward.1} parent=1 // pred_check_branch
      %451 = sbr.rel (0) target = $region229
    $region228: #{mst_oatd_forward.1} parent=1 // pred_region
      %452 = dma.done [#allocation33], 16
    $region229: #{mst_oatd_forward.1} parent=1 // pred_fallthru
      _
    // Predicated region
    $region230: #{mst_oatd_forward.1} parent=1 // pred_check
      _
    $region231: #{mst_oatd_forward.1} parent=1 // pred_check_branch
      %454 = sbr.rel (0) target = $region233
    $region232: #{mst_oatd_forward.1} parent=1 // pred_region
      %455 = dma.done [#allocation33], 16
    $region233: #{mst_oatd_forward.1} parent=1 // pred_fallthru
      _
    // Predicated region
    $region234: #{mst_oatd_forward.1} parent=1 // pred_check
      _
    $region235: #{mst_oatd_forward.1} parent=1 // pred_check_branch
      %457 = sbr.rel (0) target = $region237
    $region236: #{mst_oatd_forward.1} parent=1 // pred_region
      %458 = dma.done [#allocation36], 16
    $region237: #{mst_oatd_forward.1} parent=1 // pred_fallthru
      _
    // Predicated region
    $region238: #{mst_oatd_forward.1} parent=1 // pred_check
      _
    $region239: #{mst_oatd_forward.1} parent=1 // pred_check_branch
      %460 = sbr.rel (0) target = $region241
    $region240: #{mst_oatd_forward.1} parent=1 // pred_region
      %461 = dma.done [#allocation36], 16
    $region241: #{mst_oatd_forward.1} parent=1 // pred_fallthru
      _
    // Predicated region
    $region242: #{mst_oatd_forward.1} parent=1 // pred_check
      _
    $region243: #{mst_oatd_forward.1} parent=1 // pred_check_branch
      %463 = sbr.rel (0) target = $region245
    $region244: #{mst_oatd_forward.1} parent=1 // pred_region
      %464 = dma.done [#allocation39], 512
    $region245: #{mst_oatd_forward.1} parent=1 // pred_fallthru
      _
    // Predicated region
    $region246: #{mst_oatd_forward.1} parent=1 // pred_check
      _
    $region247: #{mst_oatd_forward.1} parent=1 // pred_check_branch
      %466 = sbr.rel (0) target = $region249
    $region248: #{mst_oatd_forward.1} parent=1 // pred_region
      %467 = dma.done [#allocation39], 16
    $region249: #{mst_oatd_forward.1} parent=1 // pred_fallthru
      _
    %v469 = vld [vmem:[#allocation2] sm:$0xff]
    %v470 = vld [vmem:[#allocation2 + $0x8] sm:$0xff]
    %v471 = vld [vmem:[#allocation2 + $0x10] sm:$0xff]
    %v472 = vld [vmem:[#allocation2 + $0x18] sm:$0xff]
    %v473 = vld [vmem:[#allocation2 + $0x20] sm:$0xff]
    %v474 = vld [vmem:[#allocation2 + $0x28] sm:$0xff]
    %v475 = vld [vmem:[#allocation2 + $0x30] sm:$0xff]
    %v476 = vld [vmem:[#allocation2 + $0x38] sm:$0xff]
    %v477 = vld [vmem:[%s3] sm:$0xff]
    %v478 = vld [vmem:[%s3 + $0x8] sm:$0xff]
    %v479 = vld [vmem:[%s3 + $0x10] sm:$0xff]
    %v480 = vld [vmem:[%s3 + $0x18] sm:$0xff]
    %v481 = vld [vmem:[%s3 + $0x20] sm:$0xff]
    %v482 = vld [vmem:[%s3 + $0x28] sm:$0xff]
    %v483 = vld [vmem:[%s3 + $0x30] sm:$0xff]
    %v484 = vld [vmem:[%s3 + $0x38] sm:$0xff]
    %486 = vset.pattern.permute.xlu0 0
    %487 = vperm.xlu0 %486, %v477
    %v488 = vpop.permute.xlu0 %487
    %491 = vset.pattern.permute.xlu0 0
    %492 = vperm.xlu0 %491, %v478
    %v493 = vpop.permute.xlu0 %492
    %496 = vset.pattern.permute.xlu0 0
    %497 = vperm.xlu0 %496, %v479
    %v498 = vpop.permute.xlu0 %497
    %501 = vset.pattern.permute.xlu0 0
    %502 = vperm.xlu0 %501, %v480
    %v503 = vpop.permute.xlu0 %502
    %506 = vset.pattern.permute.xlu0 0
    %507 = vperm.xlu0 %506, %v481
    %v508 = vpop.permute.xlu0 %507
    %511 = vset.pattern.permute.xlu0 0
    %512 = vperm.xlu0 %511, %v482
    %v513 = vpop.permute.xlu0 %512
    %516 = vset.pattern.permute.xlu0 0
    %517 = vperm.xlu0 %516, %v483
    %v518 = vpop.permute.xlu0 %517
    %521 = vset.pattern.permute.xlu0 0
    %522 = vperm.xlu0 %521, %v484
    %v523 = vpop.permute.xlu0 %522
    %v525 = vmul.f32 %v469, %v488
    %v526 = vmul.f32 %v470, %v493
    %v527 = vmul.f32 %v471, %v498
    %v528 = vmul.f32 %v472, %v503
    %v529 = vmul.f32 %v473, %v508
    %v530 = vmul.f32 %v474, %v513
    %v531 = vmul.f32 %v475, %v518
    %v532 = vmul.f32 %v476, %v523
    %v533 = vld [vmem:[#allocation5] sm:$0x1]
    %v535 = vlaneseq
    %v536 = vshrl.u32 %v535, 7
    %v537 = vsub.s32 0, %v536
    %v538 = vrot.slane %v533, %v537
    %v540 = vmul.f32 %v525, %v538
    %v541 = vmul.f32 %v526, %v538
    %v542 = vmul.f32 %v527, %v538
    %v543 = vmul.f32 %v528, %v538
    %v544 = vmul.f32 %v529, %v538
    %v545 = vmul.f32 %v530, %v538
    %v546 = vmul.f32 %v531, %v538
    %v547 = vmul.f32 %v532, %v538
    %v548 = vld [vmem:[%s7] sm:$0xff]
    %v549 = vld [vmem:[%s7 + $0x8] sm:$0xff]
    %v550 = vld [vmem:[%s7 + $0x10] sm:$0xff]
    %v551 = vld [vmem:[%s7 + $0x18] sm:$0xff]
    %v552 = vld [vmem:[%s7 + $0x20] sm:$0xff]
    %v553 = vld [vmem:[%s7 + $0x28] sm:$0xff]
    %v554 = vld [vmem:[%s7 + $0x30] sm:$0xff]
    %v555 = vld [vmem:[%s7 + $0x38] sm:$0xff]
    %v556 = vpack.c.bf16 %v541, %v540
    %v557 = vpack.c.bf16 %v543, %v542
    %v558 = vpack.c.bf16 %v545, %v544
    %v559 = vpack.c.bf16 %v547, %v546
    %v560 = vpack.c.bf16 %v549, %v548
    %v561 = vpack.c.bf16 %v551, %v550
    %v562 = vpack.c.bf16 %v553, %v552
    %v563 = vpack.c.bf16 %v555, %v554
    %vm564 = vcmask 523264
    %v566 = vsel %vm564, %v556, 0
    %v569 = vsel %vm564, %v557, 0
    %v572 = vsel %vm564, %v558, 0
    %v575 = vsel %vm564, %v559, 0
    %577 = vmatprep.subr.bf16.mxu0 0
    %578 = vmatpush1.bf16.msra.mxu0 0
    %579 = vmatprep.subr.bf16.mxu0 0
    %580 = vmatpush1.bf16.msra.mxu0 0
    %581 = vmatprep.subr.bf16.mxu0 0
    %582 = vmatpush1.bf16.msra.mxu0 0
    %583 = vmatprep.subr.bf16.mxu0 0
    %584 = vmatpush1.bf16.msra.mxu0 0
    %585 = vmatprep.subr.bf16.mxu0 0
    %586 = vmatpush1.bf16.msra.mxu0 %v563
    %587 = vmatprep.subr.bf16.mxu0 0
    %588 = vmatpush1.bf16.msra.mxu0 %v562
    %589 = vmatprep.subr.bf16.mxu0 0
    %590 = vmatpush1.bf16.msra.mxu0 %v561
    %591 = vmatprep.subr.bf16.mxu0 0
    %592 = vmatpush1.bf16.msra.mxu0 %v560
    %593 = vmatprep.subr.bf16.mxu0 0
    %594 = vmatpush2.bf16.msra.mxu0 0
    %595 = vmatprep.subr.bf16.mxu0 0
    %596 = vmatpush2.bf16.msra.mxu0 0
    %597 = vmatprep.subr.bf16.mxu0 0
    %598 = vmatpush2.bf16.msra.mxu0 0
    %599 = vmatprep.subr.bf16.mxu0 0
    %600 = vmatpush2.bf16.msra.mxu0 0
    %601 = vmatprep.subr.bf16.mxu0 0
    %602 = vmatpush2.bf16.msra.mxu0 0
    %603 = vmatprep.subr.bf16.mxu0 0
    %604 = vmatpush2.bf16.msra.mxu0 0
    %605 = vmatprep.subr.bf16.mxu0 0
    %606 = vmatpush2.bf16.msra.mxu0 0
    %607 = vmatprep.subr.bf16.mxu0 0
    %608 = vmatpush2.bf16.msra.mxu0 0
    %609 = vmatprep.mubr.bf16.mxu0 0
    %610 = vmatmul.mubr.bf16.gmra.mxu0 %v566
    %v611 = vpop.f32.mrf.mxu0
    %v612 = vadd.f32 0.0, %v611
    %v613 = vpop.f32.mrf.mxu0
    %v614 = vpop.f32.mrf.mxu0
    %v615 = vadd.f32 0.0, %v614
    %v616 = vpop.f32.mrf.mxu0
    %617 = vmatprep.mubr.bf16.mxu0 0
    %618 = vmatmul.mubr.bf16.gmra.mxu0 %v569
    %v619 = vpop.f32.mrf.mxu0
    %v620 = vadd.f32 0.0, %v619
    %v621 = vpop.f32.mrf.mxu0
    %v622 = vpop.f32.mrf.mxu0
    %v623 = vadd.f32 0.0, %v622
    %v624 = vpop.f32.mrf.mxu0
    %625 = vmatprep.mubr.bf16.mxu0 0
    %626 = vmatmul.mubr.bf16.gmra.mxu0 %v572
    %v627 = vpop.f32.mrf.mxu0
    %v628 = vadd.f32 0.0, %v627
    %v629 = vpop.f32.mrf.mxu0
    %v630 = vpop.f32.mrf.mxu0
    %v631 = vadd.f32 0.0, %v630
    %v632 = vpop.f32.mrf.mxu0
    %633 = vmatprep.mubr.bf16.mxu0 0
    %634 = vmatmul.mubr.bf16.gmra.mxu0 %v575
    %v635 = vpop.f32.mrf.mxu0
    %v636 = vadd.f32 0.0, %v635
    %v637 = vpop.f32.mrf.mxu0
    %v638 = vpop.f32.mrf.mxu0
    %v639 = vadd.f32 0.0, %v638
    %v640 = vpop.f32.mrf.mxu0
    %641 = vdwg.mxu0
    %v642 = vld [vmem:[#allocation7] sm:$0xff]
    %v643 = vld [vmem:[#allocation7 + $0x8] sm:$0xff]
    %v644 = vpack.c.bf16 %v615, %v612
    %v645 = vpack.c.bf16 %v623, %v620
    %v646 = vpack.c.bf16 %v631, %v628
    %v647 = vpack.c.bf16 %v639, %v636
    %v648 = vpack.c.bf16 %v643, %v642
    %vm649 = vcmask 130048
    %v651 = vsel %vm649, %v644, 0
    %v654 = vsel %vm649, %v645, 0
    %v657 = vsel %vm649, %v646, 0
    %v660 = vsel %vm649, %v647, 0
    %662 = vmatprep.subr.bf16.mxu0 0
    %663 = vmatpush1.bf16.msra.mxu0 0
    %664 = vmatprep.subr.bf16.mxu0 0
    %665 = vmatpush1.bf16.msra.mxu0 0
    %666 = vmatprep.subr.bf16.mxu0 0
    %667 = vmatpush1.bf16.msra.mxu0 0
    %668 = vmatprep.subr.bf16.mxu0 0
    %669 = vmatpush1.bf16.msra.mxu0 0
    %670 = vmatprep.subr.bf16.mxu0 0
    %671 = vmatpush1.bf16.msra.mxu0 0
    %672 = vmatprep.subr.bf16.mxu0 0
    %673 = vmatpush1.bf16.msra.mxu0 0
    %674 = vmatprep.subr.bf16.mxu0 0
    %675 = vmatpush1.bf16.msra.mxu0 0
    %676 = vmatprep.subr.bf16.mxu0 0
    %677 = vmatpush1.bf16.msra.mxu0 %v648
    %678 = vmatprep.subr.bf16.mxu0 0
    %679 = vmatpush2.bf16.msra.mxu0 0
    %680 = vmatprep.subr.bf16.mxu0 0
    %681 = vmatpush2.bf16.msra.mxu0 0
    %682 = vmatprep.subr.bf16.mxu0 0
    %683 = vmatpush2.bf16.msra.mxu0 0
    %684 = vmatprep.subr.bf16.mxu0 0
    %685 = vmatpush2.bf16.msra.mxu0 0
    %686 = vmatprep.subr.bf16.mxu0 0
    %687 = vmatpush2.bf16.msra.mxu0 0
    %688 = vmatprep.subr.bf16.mxu0 0
    %689 = vmatpush2.bf16.msra.mxu0 0
    %690 = vmatprep.subr.bf16.mxu0 0
    %691 = vmatpush2.bf16.msra.mxu0 0
    %692 = vmatprep.subr.bf16.mxu0 0
    %693 = vmatpush2.bf16.msra.mxu0 0
    %694 = vmatprep.mubr.bf16.mxu0 0
    %695 = vmatmul.mubr.bf16.gmra.mxu0 %v651
    %v696 = vpop.f32.mrf.mxu0
    %v697 = vadd.f32 0.0, %v696
    %v698 = vpop.f32.mrf.mxu0
    %v699 = vpop.f32.mrf.mxu0
    %v700 = vadd.f32 0.0, %v699
    %v701 = vpop.f32.mrf.mxu0
    %702 = vmatprep.mubr.bf16.mxu0 0
    %703 = vmatmul.mubr.bf16.gmra.mxu0 %v654
    %v704 = vpop.f32.mrf.mxu0
    %v705 = vadd.f32 0.0, %v704
    %v706 = vpop.f32.mrf.mxu0
    %v707 = vpop.f32.mrf.mxu0
    %v708 = vadd.f32 0.0, %v707
    %v709 = vpop.f32.mrf.mxu0
    %710 = vmatprep.mubr.bf16.mxu0 0
    %711 = vmatmul.mubr.bf16.gmra.mxu0 %v657
    %v712 = vpop.f32.mrf.mxu0
    %v713 = vadd.f32 0.0, %v712
    %v714 = vpop.f32.mrf.mxu0
    %v715 = vpop.f32.mrf.mxu0
    %v716 = vadd.f32 0.0, %v715
    %v717 = vpop.f32.mrf.mxu0
    %718 = vmatprep.mubr.bf16.mxu0 0
    %719 = vmatmul.mubr.bf16.gmra.mxu0 %v660
    %v720 = vpop.f32.mrf.mxu0
    %v721 = vadd.f32 0.0, %v720
    %v722 = vpop.f32.mrf.mxu0
    %v723 = vpop.f32.mrf.mxu0
    %v724 = vadd.f32 0.0, %v723
    %v725 = vpop.f32.mrf.mxu0
    %726 = vdwg.mxu0
    %v727 = vlaneseq
    %v728 = vand.u32 %v727, 127
    %v729 = vld [vmem:[%s11] sm:$0xff]
    %v730 = vld [vmem:[%s11 + $0x8] sm:$0xff]
    %731 = vset.pattern.permute.xlu0 0
    %732 = vperm.xlu0 %731, %v729
    %v733 = vpop.permute.xlu0 %732
    %734 = vset.pattern.permute.xlu0 0
    %735 = vperm.xlu0 %734, %v730
    %v736 = vpop.permute.xlu0 %735
    %vm737 = vcmp.eq.s32.totalorder %v728, %v733
    %vm738 = vcmp.eq.s32.totalorder %v728, %v736
    %v739 = vsel %vm737, 1, 0
    %v740 = vsel %vm738, 1, 0
    %v741 = vcvt.s32.f32 %v739
    %v742 = vcvt.s32.f32 %v740
    %v743 = vpack.c.bf16 %v742, %v741
    %v744 = vpack.c.bf16 %v700, %v697
    %v745 = vpack.c.bf16 %v708, %v705
    %v746 = vpack.c.bf16 %v716, %v713
    %v747 = vpack.c.bf16 %v724, %v721
    %v749 = vsel %vm564, %v743, 0
    %751 = vmatprep.subr.bf16.mxu0 0
    %752 = vmatpush1.bf16.msra.mxu0 0
    %753 = vmatprep.subr.bf16.mxu0 0
    %754 = vmatpush1.bf16.msra.mxu0 0
    %755 = vmatprep.subr.bf16.mxu0 0
    %756 = vmatpush1.bf16.msra.mxu0 0
    %757 = vmatprep.subr.bf16.mxu0 0
    %758 = vmatpush1.bf16.msra.mxu0 0
    %759 = vmatprep.subr.bf16.mxu0 0
    %760 = vmatpush1.bf16.msra.mxu0 %v747
    %761 = vmatprep.subr.bf16.mxu0 0
    %762 = vmatpush1.bf16.msra.mxu0 %v746
    %763 = vmatprep.subr.bf16.mxu0 0
    %764 = vmatpush1.bf16.msra.mxu0 %v745
    %765 = vmatprep.subr.bf16.mxu0 0
    %766 = vmatpush1.bf16.msra.mxu0 %v744
    %767 = vmatprep.subr.bf16.mxu0 0
    %768 = vmatpush2.bf16.msra.mxu0 0
    %769 = vmatprep.subr.bf16.mxu0 0
    %770 = vmatpush2.bf16.msra.mxu0 0
    %771 = vmatprep.subr.bf16.mxu0 0
    %772 = vmatpush2.bf16.msra.mxu0 0
    %773 = vmatprep.subr.bf16.mxu0 0
    %774 = vmatpush2.bf16.msra.mxu0 0
    %775 = vmatprep.subr.bf16.mxu0 0
    %776 = vmatpush2.bf16.msra.mxu0 0
    %777 = vmatprep.subr.bf16.mxu0 0
    %778 = vmatpush2.bf16.msra.mxu0 0
    %779 = vmatprep.subr.bf16.mxu0 0
    %780 = vmatpush2.bf16.msra.mxu0 0
    %781 = vmatprep.subr.bf16.mxu0 0
    %782 = vmatpush2.bf16.msra.mxu0 0
    %783 = vmatprep.mubr.bf16.mxu0 0
    %784 = vmatmul.mubr.bf16.gmra.mxu0 %v749
    %v785 = vpop.f32.mrf.mxu0
    %v786 = vadd.f32 0.0, %v785
    %v787 = vpop.f32.mrf.mxu0
    %v788 = vpop.f32.mrf.mxu0
    %v789 = vadd.f32 0.0, %v788
    %v790 = vpop.f32.mrf.mxu0
    %791 = vdwg.mxu0
    %v792 = vld [vmem:[%s13] sm:$0xff]
    %v793 = vld [vmem:[%s13 + $0x8] sm:$0xff]
    %796 = vrot.lane.b32.xlu0 %v792, 16
    %v797 = vpop.permute.xlu0 %796
    %798 = vrot.lane.b32.xlu0 %v793, 16
    %v799 = vpop.permute.xlu0 %798
    %v802 = vsel %vm649, %v786, %v797
    %v803 = vsel %vm649, %v789, %v799
    %v804 = vld [vmem:[#allocation8] sm:$0xff]
    %v805 = vld [vmem:[#allocation8 + $0x8] sm:$0xff]
    %v806 = vld [vmem:[#allocation8 + $0x10] sm:$0xff]
    %v807 = vld [vmem:[#allocation8 + $0x18] sm:$0xff]
    %v808 = vpack.c.bf16 %v803, %v802
    %v809 = vpack.c.bf16 %v805, %v804
    %v810 = vpack.c.bf16 %v807, %v806
    %vm811 = vcmask 261120
    %v813 = vsel %vm811, %v808, 0
    %815 = vmatprep.subr.bf16.mxu0 0
    %816 = vmatpush1.bf16.msra.mxu0 0
    %817 = vmatprep.subr.bf16.mxu0 0
    %818 = vmatpush1.bf16.msra.mxu0 0
    %819 = vmatprep.subr.bf16.mxu0 0
    %820 = vmatpush1.bf16.msra.mxu0 0
    %821 = vmatprep.subr.bf16.mxu0 0
    %822 = vmatpush1.bf16.msra.mxu0 0
    %823 = vmatprep.subr.bf16.mxu0 0
    %824 = vmatpush1.bf16.msra.mxu0 0
    %825 = vmatprep.subr.bf16.mxu0 0
    %826 = vmatpush1.bf16.msra.mxu0 0
    %827 = vmatprep.subr.bf16.mxu0 0
    %828 = vmatpush1.bf16.msra.mxu0 %v810
    %829 = vmatprep.subr.bf16.mxu0 0
    %830 = vmatpush1.bf16.msra.mxu0 %v809
    %831 = vmatprep.subr.bf16.mxu0 0
    %832 = vmatpush2.bf16.msra.mxu0 0
    %833 = vmatprep.subr.bf16.mxu0 0
    %834 = vmatpush2.bf16.msra.mxu0 0
    %835 = vmatprep.subr.bf16.mxu0 0
    %836 = vmatpush2.bf16.msra.mxu0 0
    %837 = vmatprep.subr.bf16.mxu0 0
    %838 = vmatpush2.bf16.msra.mxu0 0
    %839 = vmatprep.subr.bf16.mxu0 0
    %840 = vmatpush2.bf16.msra.mxu0 0
    %841 = vmatprep.subr.bf16.mxu0 0
    %842 = vmatpush2.bf16.msra.mxu0 0
    %843 = vmatprep.subr.bf16.mxu0 0
    %844 = vmatpush2.bf16.msra.mxu0 0
    %845 = vmatprep.subr.bf16.mxu0 0
    %846 = vmatpush2.bf16.msra.mxu0 0
    %847 = vmatprep.mubr.bf16.mxu0 0
    %848 = vmatmul.mubr.bf16.gmra.mxu0 %v813
    %v849 = vpop.f32.mrf.mxu0
    %v850 = vadd.f32 0.0, %v849
    %v851 = vpop.f32.mrf.mxu0
    %v852 = vpop.f32.mrf.mxu0
    %v853 = vadd.f32 0.0, %v852
    %v854 = vpop.f32.mrf.mxu0
    %855 = vdwg.mxu0
    %v856 = vld [vmem:[#allocation10] sm:$0xff]
    %v857 = vld [vmem:[#allocation10 + $0x8] sm:$0xff]
    %v858 = vld [vmem:[#allocation10 + $0x10] sm:$0xff]
    %v859 = vld [vmem:[#allocation10 + $0x18] sm:$0xff]
    %v860 = vpack.c.bf16 %v853, %v850
    %v861 = vpack.c.bf16 %v857, %v856
    %v862 = vpack.c.bf16 %v859, %v858
    %v863 = vld [vmem:[#allocation11] sm:$0x1]
    %v865 = vlaneseq
    %v866 = vshrl.u32 %v865, 7
    %v867 = vsub.s32 0, %v866
    %v868 = vrot.slane %v863, %v867
    %v871 = vsel %vm811, %v860, 0
    %873 = vmatprep.subr.bf16.mxu0 0
    %874 = vmatpush1.bf16.msra.mxu0 0
    %875 = vmatprep.subr.bf16.mxu0 0
    %876 = vmatpush1.bf16.msra.mxu0 0
    %877 = vmatprep.subr.bf16.mxu0 0
    %878 = vmatpush1.bf16.msra.mxu0 0
    %879 = vmatprep.subr.bf16.mxu0 0
    %880 = vmatpush1.bf16.msra.mxu0 0
    %881 = vmatprep.subr.bf16.mxu0 0
    %882 = vmatpush1.bf16.msra.mxu0 0
    %883 = vmatprep.subr.bf16.mxu0 0
    %884 = vmatpush1.bf16.msra.mxu0 0
    %885 = vmatprep.subr.bf16.mxu0 0
    %886 = vmatpush1.bf16.msra.mxu0 %v862
    %887 = vmatprep.subr.bf16.mxu0 0
    %888 = vmatpush1.bf16.msra.mxu0 %v861
    %889 = vmatprep.subr.bf16.mxu0 0
    %890 = vmatpush2.bf16.msra.mxu0 0
    %891 = vmatprep.subr.bf16.mxu0 0
    %892 = vmatpush2.bf16.msra.mxu0 0
    %893 = vmatprep.subr.bf16.mxu0 0
    %894 = vmatpush2.bf16.msra.mxu0 0
    %895 = vmatprep.subr.bf16.mxu0 0
    %896 = vmatpush2.bf16.msra.mxu0 0
    %897 = vmatprep.subr.bf16.mxu0 0
    %898 = vmatpush2.bf16.msra.mxu0 0
    %899 = vmatprep.subr.bf16.mxu0 0
    %900 = vmatpush2.bf16.msra.mxu0 0
    %901 = vmatprep.subr.bf16.mxu0 0
    %902 = vmatpush2.bf16.msra.mxu0 0
    %903 = vmatprep.subr.bf16.mxu0 0
    %904 = vmatpush2.bf16.msra.mxu0 0
    %905 = vmatprep.mubr.bf16.mxu0 0
    %906 = vmatmul.mubr.bf16.gmra.mxu0 %v871
    %v907 = vpop.f32.mrf.mxu0
    %v908 = vadd.f32 %v868, %v907
    %v909 = vpop.f32.mrf.mxu0
    %v910 = vpop.f32.mrf.mxu0
    %v911 = vadd.f32 %v868, %v910
    %v912 = vpop.f32.mrf.mxu0
    %913 = vdwg.mxu0
    %v914 = vmax.f32 %v908, 0.0
    %v915 = vmax.f32 %v911, 0.0
    %v916 = vld [vmem:[#allocation13] sm:$0xff]
    %v917 = vld [vmem:[#allocation13 + $0x8] sm:$0xff]
    %v918 = vld [vmem:[#allocation13 + $0x10] sm:$0xff]
    %v919 = vld [vmem:[#allocation13 + $0x18] sm:$0xff]
    %v920 = vpack.c.bf16 %v915, %v914
    %v921 = vpack.c.bf16 %v917, %v916
    %v922 = vpack.c.bf16 %v919, %v918
    %v923 = vld [vmem:[#allocation14] sm:$0x1]
    %v925 = vlaneseq
    %v926 = vshrl.u32 %v925, 7
    %v927 = vsub.s32 0, %v926
    %v928 = vrot.slane %v923, %v927
    %v931 = vsel %vm811, %v920, 0
    %933 = vmatprep.subr.bf16.mxu0 0
    %934 = vmatpush1.bf16.msra.mxu0 0
    %935 = vmatprep.subr.bf16.mxu0 0
    %936 = vmatpush1.bf16.msra.mxu0 0
    %937 = vmatprep.subr.bf16.mxu0 0
    %938 = vmatpush1.bf16.msra.mxu0 0
    %939 = vmatprep.subr.bf16.mxu0 0
    %940 = vmatpush1.bf16.msra.mxu0 0
    %941 = vmatprep.subr.bf16.mxu0 0
    %942 = vmatpush1.bf16.msra.mxu0 0
    %943 = vmatprep.subr.bf16.mxu0 0
    %944 = vmatpush1.bf16.msra.mxu0 0
    %945 = vmatprep.subr.bf16.mxu0 0
    %946 = vmatpush1.bf16.msra.mxu0 %v922
    %947 = vmatprep.subr.bf16.mxu0 0
    %948 = vmatpush1.bf16.msra.mxu0 %v921
    %949 = vmatprep.subr.bf16.mxu0 0
    %950 = vmatpush2.bf16.msra.mxu0 0
    %951 = vmatprep.subr.bf16.mxu0 0
    %952 = vmatpush2.bf16.msra.mxu0 0
    %953 = vmatprep.subr.bf16.mxu0 0
    %954 = vmatpush2.bf16.msra.mxu0 0
    %955 = vmatprep.subr.bf16.mxu0 0
    %956 = vmatpush2.bf16.msra.mxu0 0
    %957 = vmatprep.subr.bf16.mxu0 0
    %958 = vmatpush2.bf16.msra.mxu0 0
    %959 = vmatprep.subr.bf16.mxu0 0
    %960 = vmatpush2.bf16.msra.mxu0 0
    %961 = vmatprep.subr.bf16.mxu0 0
    %962 = vmatpush2.bf16.msra.mxu0 0
    %963 = vmatprep.subr.bf16.mxu0 0
    %964 = vmatpush2.bf16.msra.mxu0 0
    %965 = vmatprep.mubr.bf16.mxu0 0
    %966 = vmatmul.mubr.bf16.gmra.mxu0 %v931
    %v967 = vpop.f32.mrf.mxu0
    %v968 = vadd.f32 %v928, %v967
    %v969 = vpop.f32.mrf.mxu0
    %v970 = vpop.f32.mrf.mxu0
    %v971 = vadd.f32 %v928, %v970
    %v972 = vpop.f32.mrf.mxu0
    %973 = vdwg.mxu0
    %v974 = vadd.f32 %v968, %v850
    %v975 = vadd.f32 %v971, %v853
    %v976 = vld [vmem:[#allocation16] sm:$0x1]
    %v977 = vld [vmem:[#allocation17] sm:$0x1]
    %v978 = vsel %vm649, %v974, 0.0
    %979 = vadd.xlane.f32.xlu0 %v978
    %v980 = vpop.xlane.xlu0 %979
    %v981 = vsel %vm649, %v975, 0.0
    %982 = vadd.xlane.f32.xlu0 %v981
    %v983 = vpop.xlane.xlu0 %982
    %v984 = vrcp.pop 16.0
    %v985 = vmul.f32 %v980, %v984
    %v986 = vmul.f32 %v983, %v984
    %v987 = vsub.f32 %v974, %v985
    %v988 = vsub.f32 %v975, %v986
    %v989 = vmul.f32 %v987, %v987
    %v990 = vmul.f32 %v988, %v988
    %v991 = vsel %vm649, %v989, 0.0
    %992 = vadd.xlane.f32.xlu0 %v991
    %v993 = vpop.xlane.xlu0 %992
    %v994 = vsel %vm649, %v990, 0.0
    %995 = vadd.xlane.f32.xlu0 %v994
    %v996 = vpop.xlane.xlu0 %995
    %v997 = vmul.f32 %v993, %v984
    %v998 = vmul.f32 %v996, %v984
    %v999 = vadd.f32 %v997, 1e-06
    %v1000 = vadd.f32 %v998, 1e-06
    %v1001 = vrsqrt.pop %v999
    %v1002 = vrsqrt.pop %v1000
    %v1003 = vmul.f32 %v987, %v1001
    %v1004 = vmul.f32 %v988, %v1002
    %v1006 = vlaneseq
    %v1007 = vshrl.u32 %v1006, 7
    %v1008 = vsub.s32 0, %v1007
    %v1009 = vrot.slane %v976, %v1008
    %v1011 = vmul.f32 %v1003, %v1009
    %v1012 = vmul.f32 %v1004, %v1009
    %v1014 = vlaneseq
    %v1015 = vshrl.u32 %v1014, 7
    %v1016 = vsub.s32 0, %v1015
    %v1017 = vrot.slane %v977, %v1016
    %v1019 = vadd.f32 %v1011, %v1017
    %v1020 = vadd.f32 %v1012, %v1017
    %1023 = vrot.lane.b32.xlu0 %v974, 112
    %v1024 = vpop.permute.xlu0 %1023
    %1025 = vrot.lane.b32.xlu0 %v975, 112
    %v1026 = vpop.permute.xlu0 %1025
    %v1029 = vsel %vm649, %v1024, 0.0
    %1030 = vadd.xlane.f32.xlu0 %v1029
    %v1031 = vpop.xlane.xlu0 %1030
    %v1032 = vsel %vm649, %v1026, 0.0
    %1033 = vadd.xlane.f32.xlu0 %v1032
    %v1034 = vpop.xlane.xlu0 %1033
    %v1035 = vmul.f32 %v1031, %v984
    %v1036 = vmul.f32 %v1034, %v984
    %v1037 = vsub.f32 %v974, %v1035
    %v1038 = vsub.f32 %v975, %v1036
    %v1039 = vmul.f32 %v1037, %v1037
    %v1040 = vmul.f32 %v1038, %v1038
    %1043 = vrot.lane.b32.xlu0 %v1039, 112
    %v1044 = vpop.permute.xlu0 %1043
    %1045 = vrot.lane.b32.xlu0 %v1040, 112
    %v1046 = vpop.permute.xlu0 %1045
    %v1049 = vsel %vm649, %v1044, 0.0
    %1050 = vadd.xlane.f32.xlu0 %v1049
    %v1051 = vpop.xlane.xlu0 %1050
    %v1052 = vsel %vm649, %v1046, 0.0
    %1053 = vadd.xlane.f32.xlu0 %v1052
    %v1054 = vpop.xlane.xlu0 %1053
    %v1055 = vmul.f32 %v1051, %v984
    %v1056 = vmul.f32 %v1054, %v984
    %v1057 = vadd.f32 %v1055, 1e-06
    %v1058 = vadd.f32 %v1056, 1e-06
    %v1059 = vrsqrt.pop %v1057
    %v1060 = vrsqrt.pop %v1058
    %v1061 = vmul.f32 %v1037, %v1059
    %v1062 = vmul.f32 %v1038, %v1060
    %1063 = vrot.lane.b32.xlu0 %v1009, 16
    %v1064 = vpop.permute.xlu0 %1063
    %v1066 = vmul.f32 %v1061, %v1064
    %v1067 = vmul.f32 %v1062, %v1064
    %1068 = vrot.lane.b32.xlu0 %v1017, 16
    %v1069 = vpop.permute.xlu0 %1068
    %v1071 = vadd.f32 %v1066, %v1069
    %v1072 = vadd.f32 %v1067, %v1069
    %v1073 = vsel %vm649, %v1019, %v1071
    %v1074 = vsel %vm649, %v1020, %v1072
    %v1075 = vld [vmem:[%s29] sm:$0xff]
    %v1076 = vld [vmem:[%s29 + $0x8] sm:$0xff]
    %v1077 = vld [vmem:[%s29 + $0x10] sm:$0xff]
    %v1078 = vld [vmem:[%s29 + $0x18] sm:$0xff]
    %v1079 = vpack.c.bf16 %v1076, %v1075
    %v1080 = vpack.c.bf16 %v1078, %v1077
    %v1081 = vpack.c.bf16 %v1074, %v1073
    %v1083 = vsel %vm649, %v1079, 0
    %v1086 = vsel %vm649, %v1080, 0
    %1088 = vmatprep.subr.bf16.mxu0 0
    %1089 = vmatpush1.bf16.msra.mxu0 0
    %1090 = vmatprep.subr.bf16.mxu0 0
    %1091 = vmatpush1.bf16.msra.mxu0 0
    %1092 = vmatprep.subr.bf16.mxu0 0
    %1093 = vmatpush1.bf16.msra.mxu0 0
    %1094 = vmatprep.subr.bf16.mxu0 0
    %1095 = vmatpush1.bf16.msra.mxu0 0
    %1096 = vmatprep.subr.bf16.mxu0 0
    %1097 = vmatpush1.bf16.msra.mxu0 0
    %1098 = vmatprep.subr.bf16.mxu0 0
    %1099 = vmatpush1.bf16.msra.mxu0 0
    %1100 = vmatprep.subr.bf16.mxu0 0
    %1101 = vmatpush1.bf16.msra.mxu0 0
    %1102 = vmatprep.subr.bf16.mxu0 0
    %1103 = vmatpush1.bf16.msra.mxu0 %v1081
    %1104 = vmatprep.subr.bf16.mxu0 0
    %1105 = vmatpush2.bf16.msra.mxu0 0
    %1106 = vmatprep.subr.bf16.mxu0 0
    %1107 = vmatpush2.bf16.msra.mxu0 0
    %1108 = vmatprep.subr.bf16.mxu0 0
    %1109 = vmatpush2.bf16.msra.mxu0 0
    %1110 = vmatprep.subr.bf16.mxu0 0
    %1111 = vmatpush2.bf16.msra.mxu0 0
    %1112 = vmatprep.subr.bf16.mxu0 0
    %1113 = vmatpush2.bf16.msra.mxu0 0
    %1114 = vmatprep.subr.bf16.mxu0 0
    %1115 = vmatpush2.bf16.msra.mxu0 0
    %1116 = vmatprep.subr.bf16.mxu0 0
    %1117 = vmatpush2.bf16.msra.mxu0 0
    %1118 = vmatprep.subr.bf16.mxu0 0
    %1119 = vmatpush2.bf16.msra.mxu0 0
    %1120 = vmatprep.mubr.bf16.mxu0 0
    %1121 = vmatmul.mubr.bf16.gmra.mxu0 %v1083
    %v1122 = vpop.f32.mrf.mxu0
    %v1123 = vadd.f32 0.0, %v1122
    %v1124 = vpop.f32.mrf.mxu0
    %v1125 = vpop.f32.mrf.mxu0
    %v1126 = vadd.f32 0.0, %v1125
    %v1127 = vpop.f32.mrf.mxu0
    %1128 = vmatprep.mubr.bf16.mxu0 0
    %1129 = vmatmul.mubr.bf16.gmra.mxu0 %v1086
    %v1130 = vpop.f32.mrf.mxu0
    %v1131 = vadd.f32 0.0, %v1130
    %v1132 = vpop.f32.mrf.mxu0
    %v1133 = vpop.f32.mrf.mxu0
    %v1134 = vadd.f32 0.0, %v1133
    %v1135 = vpop.f32.mrf.mxu0
    %1136 = vdwg.mxu0
    %v1137 = vld [vmem:[#allocation20] sm:$0xff]
    %v1138 = vld [vmem:[#allocation20 + $0x8] sm:$0xff]
    %v1139 = vld [vmem:[#allocation20 + $0x10] sm:$0xff]
    %v1140 = vld [vmem:[#allocation20 + $0x18] sm:$0xff]
    %v1141 = vld [vmem:[%s41] sm:$0xff]
    %v1142 = vld [vmem:[%s41 + $0x8] sm:$0xff]
    %v1143 = vld [vmem:[%s41 + $0x10] sm:$0xff]
    %v1144 = vld [vmem:[%s41 + $0x18] sm:$0xff]
    %v1145 = vld [vmem:[#allocation19] sm:$0xff]
    %v1146 = vld [vmem:[#allocation19 + $0x8] sm:$0xff]
    %v1147 = vpack.c.bf16 %v1138, %v1137
    %v1148 = vpack.c.bf16 %v1140, %v1139
    %v1150 = vsel %vm811, %v1081, 0
    %1152 = vmatprep.subr.bf16.mxu0 0
    %1153 = vmatpush1.bf16.msra.mxu0 0
    %1154 = vmatprep.subr.bf16.mxu0 0
    %1155 = vmatpush1.bf16.msra.mxu0 0
    %1156 = vmatprep.subr.bf16.mxu0 0
    %1157 = vmatpush1.bf16.msra.mxu0 0
    %1158 = vmatprep.subr.bf16.mxu0 0
    %1159 = vmatpush1.bf16.msra.mxu0 0
    %1160 = vmatprep.subr.bf16.mxu0 0
    %1161 = vmatpush1.bf16.msra.mxu0 0
    %1162 = vmatprep.subr.bf16.mxu0 0
    %1163 = vmatpush1.bf16.msra.mxu0 0
    %1164 = vmatprep.subr.bf16.mxu0 0
    %1165 = vmatpush1.bf16.msra.mxu0 %v1148
    %1166 = vmatprep.subr.bf16.mxu0 0
    %1167 = vmatpush1.bf16.msra.mxu0 %v1147
    %1168 = vmatprep.subr.bf16.mxu0 0
    %1169 = vmatpush2.bf16.msra.mxu0 0
    %1170 = vmatprep.subr.bf16.mxu0 0
    %1171 = vmatpush2.bf16.msra.mxu0 0
    %1172 = vmatprep.subr.bf16.mxu0 0
    %1173 = vmatpush2.bf16.msra.mxu0 0
    %1174 = vmatprep.subr.bf16.mxu0 0
    %1175 = vmatpush2.bf16.msra.mxu0 0
    %1176 = vmatprep.subr.bf16.mxu0 0
    %1177 = vmatpush2.bf16.msra.mxu0 0
    %1178 = vmatprep.subr.bf16.mxu0 0
    %1179 = vmatpush2.bf16.msra.mxu0 0
    %1180 = vmatprep.subr.bf16.mxu0 0
    %1181 = vmatpush2.bf16.msra.mxu0 0
    %1182 = vmatprep.subr.bf16.mxu0 0
    %1183 = vmatpush2.bf16.msra.mxu0 0
    %1184 = vmatprep.mubr.bf16.mxu0 0
    %1185 = vmatmul.mubr.bf16.gmra.mxu0 %v1150
    %v1186 = vpop.f32.mrf.mxu0
    %v1187 = vadd.f32 0.0, %v1186
    %v1188 = vpop.f32.mrf.mxu0
    %v1189 = vpop.f32.mrf.mxu0
    %v1190 = vadd.f32 0.0, %v1189
    %v1191 = vpop.f32.mrf.mxu0
    %1192 = vdwg.mxu0
    %v1193 = vtanh.pop %v1187
    %v1194 = vtanh.pop %v1190
    %v1195 = vpack.c.bf16 %v1194, %v1193
    %v1196 = vpack.c.bf16 %v1142, %v1141
    %v1197 = vpack.c.bf16 %v1144, %v1143
    %v1199 = vsel %vm811, %v1195, 0
    %1201 = vmatprep.subr.bf16.mxu0 0
    %1202 = vmatpush1.bf16.msra.mxu0 0
    %1203 = vmatprep.subr.bf16.mxu0 0
    %1204 = vmatpush1.bf16.msra.mxu0 0
    %1205 = vmatprep.subr.bf16.mxu0 0
    %1206 = vmatpush1.bf16.msra.mxu0 0
    %1207 = vmatprep.subr.bf16.mxu0 0
    %1208 = vmatpush1.bf16.msra.mxu0 0
    %1209 = vmatprep.subr.bf16.mxu0 0
    %1210 = vmatpush1.bf16.msra.mxu0 0
    %1211 = vmatprep.subr.bf16.mxu0 0
    %1212 = vmatpush1.bf16.msra.mxu0 0
    %1213 = vmatprep.subr.bf16.mxu0 0
    %1214 = vmatpush1.bf16.msra.mxu0 %v1197
    %1215 = vmatprep.subr.bf16.mxu0 0
    %1216 = vmatpush1.bf16.msra.mxu0 %v1196
    %1217 = vmatprep.subr.bf16.mxu0 0
    %1218 = vmatpush2.bf16.msra.mxu0 0
    %1219 = vmatprep.subr.bf16.mxu0 0
    %1220 = vmatpush2.bf16.msra.mxu0 0
    %1221 = vmatprep.subr.bf16.mxu0 0
    %1222 = vmatpush2.bf16.msra.mxu0 0
    %1223 = vmatprep.subr.bf16.mxu0 0
    %1224 = vmatpush2.bf16.msra.mxu0 0
    %1225 = vmatprep.subr.bf16.mxu0 0
    %1226 = vmatpush2.bf16.msra.mxu0 0
    %1227 = vmatprep.subr.bf16.mxu0 0
    %1228 = vmatpush2.bf16.msra.mxu0 0
    %1229 = vmatprep.subr.bf16.mxu0 0
    %1230 = vmatpush2.bf16.msra.mxu0 0
    %1231 = vmatprep.subr.bf16.mxu0 0
    %1232 = vmatpush2.bf16.msra.mxu0 0
    %1233 = vmatprep.mubr.bf16.mxu0 0
    %1234 = vmatmul.mubr.bf16.gmra.mxu0 %v1199
    %v1235 = vpop.f32.mrf.mxu0
    %v1236 = vadd.f32 0.0, %v1235
    %v1237 = vpop.f32.mrf.mxu0
    %v1238 = vpop.f32.mrf.mxu0
    %v1239 = vadd.f32 0.0, %v1238
    %v1240 = vpop.f32.mrf.mxu0
    %1241 = vdwg.mxu0
    %v1242 = vld [vmem:[%s33] sm:$0xff]
    %v1243 = vld [vmem:[%s33 + $0x8] sm:$0xff]
    %vm1244 = vcmp.gt.f32.partialorder %v1242, 0.5
    %vm1245 = vcmp.gt.f32.partialorder %v1243, 0.5
    %v1246 = vsel %vm1244, %v1236, -1e+10
    %v1247 = vsel %vm1245, %v1239, -1e+10
    %v1248 = vmul.f32 %v1246, 1.442695
    %v1249 = vpow.pop %v1248
    %v1250 = vmul.f32 %v1247, 1.442695
    %v1251 = vpow.pop %v1250
    %v1253 = vsel %vm649, %v1145, 0
    %v1256 = vsel %vm649, %v1146, 0
    %1258 = vmatprep.subr.mxu0 0.0
    %1259 = vmatpush1.msra.mxu0 0.0
    %1260 = vmatprep.subr.mxu0 0.0
    %1261 = vmatpush1.msra.mxu0 0.0
    %1262 = vmatprep.subr.mxu0 0.0
    %1263 = vmatpush1.msra.mxu0 0.0
    %1264 = vmatprep.subr.mxu0 0.0
    %1265 = vmatpush1.msra.mxu0 0.0
    %1266 = vmatprep.subr.mxu0 0.0
    %1267 = vmatpush1.msra.mxu0 0.0
    %1268 = vmatprep.subr.mxu0 0.0
    %1269 = vmatpush1.msra.mxu0 0.0
    %1270 = vmatprep.subr.mxu0 0.0
    %1271 = vmatpush1.msra.mxu0 0.0
    %1272 = vmatprep.subr.mxu0 0.0
    %1273 = vmatpush1.msra.mxu0 0.0
    %1274 = vmatprep.subr.mxu0 0.0
    %1275 = vmatpush1.msra.mxu0 0.0
    %1276 = vmatprep.subr.mxu0 0.0
    %1277 = vmatpush1.msra.mxu0 0.0
    %1278 = vmatprep.subr.mxu0 0.0
    %1279 = vmatpush1.msra.mxu0 0.0
    %1280 = vmatprep.subr.mxu0 0.0
    %1281 = vmatpush1.msra.mxu0 0.0
    %1282 = vmatprep.subr.mxu0 0.0
    %1283 = vmatpush1.msra.mxu0 0.0
    %1284 = vmatprep.subr.mxu0 0.0
    %1285 = vmatpush1.msra.mxu0 0.0
    %1286 = vmatprep.subr.mxu0 0.0
    %1287 = vmatpush1.msra.mxu0 %v1251
    %1288 = vmatprep.subr.mxu0 0.0
    %1289 = vmatpush1.msra.mxu0 %v1249
    %1290 = vmatprep.subr.mxu0 0.0
    %1291 = vmatpush2.msra.mxu0 0.0
    %1292 = vmatprep.subr.mxu0 0.0
    %1293 = vmatpush2.msra.mxu0 0.0
    %1294 = vmatprep.subr.mxu0 0.0
    %1295 = vmatpush2.msra.mxu0 0.0
    %1296 = vmatprep.subr.mxu0 0.0
    %1297 = vmatpush2.msra.mxu0 0.0
    %1298 = vmatprep.subr.mxu0 0.0
    %1299 = vmatpush2.msra.mxu0 0.0
    %1300 = vmatprep.subr.mxu0 0.0
    %1301 = vmatpush2.msra.mxu0 0.0
    %1302 = vmatprep.subr.mxu0 0.0
    %1303 = vmatpush2.msra.mxu0 0.0
    %1304 = vmatprep.subr.mxu0 0.0
    %1305 = vmatpush2.msra.mxu0 0.0
    %1306 = vmatprep.subr.mxu0 0.0
    %1307 = vmatpush2.msra.mxu0 0.0
    %1308 = vmatprep.subr.mxu0 0.0
    %1309 = vmatpush2.msra.mxu0 0.0
    %1310 = vmatprep.subr.mxu0 0.0
    %1311 = vmatpush2.msra.mxu0 0.0
    %1312 = vmatprep.subr.mxu0 0.0
    %1313 = vmatpush2.msra.mxu0 0.0
    %1314 = vmatprep.subr.mxu0 0.0
    %1315 = vmatpush2.msra.mxu0 0.0
    %1316 = vmatprep.subr.mxu0 0.0
    %1317 = vmatpush2.msra.mxu0 0.0
    %1318 = vmatprep.subr.mxu0 0.0
    %1319 = vmatpush2.msra.mxu0 0.0
    %1320 = vmatprep.subr.mxu0 0.0
    %1321 = vmatpush2.msra.mxu0 0.0
    %1322 = vmatprep.mubr.f32.mxu0 0.0
    %1323 = vmatmul.mubr.f32.gmra.mxu0 %v1253
    %v1324 = vpop.f32.mrf.mxu0
    %v1325 = vadd.f32 0.0, %v1324
    %v1326 = vpop.f32.mrf.mxu0
    %1327 = vmatprep.mubr.f32.mxu0 0.0
    %1328 = vmatmul.mubr.f32.gmra.mxu0 %v1256
    %v1329 = vpop.f32.mrf.mxu0
    %v1330 = vadd.f32 0.0, %v1329
    %v1331 = vpop.f32.mrf.mxu0
    %1332 = vdwg.mxu0
    %v1333 = vrcp.pop %v1325
    %v1334 = vrcp.pop %v1330
    %v1335 = vmul.f32 %v1249, %v1333
    %v1336 = vmul.f32 %v1251, %v1334
    %1338 = vset.pattern.permute.xlu0 0
    %1339 = vperm.xlu0 %1338, %v1335
    %v1340 = vpop.permute.xlu0 %1339
    %1343 = vset.pattern.permute.xlu0 0
    %1344 = vperm.xlu0 %1343, %v1336
    %v1345 = vpop.permute.xlu0 %1344
    %v1347 = vmul.f32 %v1073, %v1340
    %v1348 = vmul.f32 %v1074, %v1345
    %v1349 = vpack.c.bf16 %v1126, %v1123
    %v1351 = vsel %vm811, %v1349, 0
    %1353 = vmatprep.subr.bf16.mxu0 0
    %1354 = vmatpush1.bf16.msra.mxu0 0
    %1355 = vmatprep.subr.bf16.mxu0 0
    %1356 = vmatpush1.bf16.msra.mxu0 0
    %1357 = vmatprep.subr.bf16.mxu0 0
    %1358 = vmatpush1.bf16.msra.mxu0 0
    %1359 = vmatprep.subr.bf16.mxu0 0
    %1360 = vmatpush1.bf16.msra.mxu0 0
    %1361 = vmatprep.subr.bf16.mxu0 0
    %1362 = vmatpush1.bf16.msra.mxu0 0
    %1363 = vmatprep.subr.bf16.mxu0 0
    %1364 = vmatpush1.bf16.msra.mxu0 0
    %1365 = vmatprep.subr.bf16.mxu0 0
    %1366 = vmatpush1.bf16.msra.mxu0 %v1148
    %1367 = vmatprep.subr.bf16.mxu0 0
    %1368 = vmatpush1.bf16.msra.mxu0 %v1147
    %1369 = vmatprep.subr.bf16.mxu0 0
    %1370 = vmatpush2.bf16.msra.mxu0 0
    %1371 = vmatprep.subr.bf16.mxu0 0
    %1372 = vmatpush2.bf16.msra.mxu0 0
    %1373 = vmatprep.subr.bf16.mxu0 0
    %1374 = vmatpush2.bf16.msra.mxu0 0
    %1375 = vmatprep.subr.bf16.mxu0 0
    %1376 = vmatpush2.bf16.msra.mxu0 0
    %1377 = vmatprep.subr.bf16.mxu0 0
    %1378 = vmatpush2.bf16.msra.mxu0 0
    %1379 = vmatprep.subr.bf16.mxu0 0
    %1380 = vmatpush2.bf16.msra.mxu0 0
    %1381 = vmatprep.subr.bf16.mxu0 0
    %1382 = vmatpush2.bf16.msra.mxu0 0
    %1383 = vmatprep.subr.bf16.mxu0 0
    %1384 = vmatpush2.bf16.msra.mxu0 0
    %1385 = vmatprep.mubr.bf16.mxu0 0
    %1386 = vmatmul.mubr.bf16.gmra.mxu0 %v1351
    %v1387 = vpop.f32.mrf.mxu0
    %v1388 = vadd.f32 0.0, %v1387
    %v1389 = vpop.f32.mrf.mxu0
    %v1390 = vpop.f32.mrf.mxu0
    %v1391 = vadd.f32 0.0, %v1390
    %v1392 = vpop.f32.mrf.mxu0
    %1393 = vdwg.mxu0
    %v1394 = vtanh.pop %v1388
    %v1395 = vtanh.pop %v1391
    %v1396 = vpack.c.bf16 %v1395, %v1394
    %v1398 = vsel %vm811, %v1396, 0
    %1400 = vmatprep.subr.bf16.mxu0 0
    %1401 = vmatpush1.bf16.msra.mxu0 0
    %1402 = vmatprep.subr.bf16.mxu0 0
    %1403 = vmatpush1.bf16.msra.mxu0 0
    %1404 = vmatprep.subr.bf16.mxu0 0
    %1405 = vmatpush1.bf16.msra.mxu0 0
    %1406 = vmatprep.subr.bf16.mxu0 0
    %1407 = vmatpush1.bf16.msra.mxu0 0
    %1408 = vmatprep.subr.bf16.mxu0 0
    %1409 = vmatpush1.bf16.msra.mxu0 0
    %1410 = vmatprep.subr.bf16.mxu0 0
    %1411 = vmatpush1.bf16.msra.mxu0 0
    %1412 = vmatprep.subr.bf16.mxu0 0
    %1413 = vmatpush1.bf16.msra.mxu0 %v1197
    %1414 = vmatprep.subr.bf16.mxu0 0
    %1415 = vmatpush1.bf16.msra.mxu0 %v1196
    %1416 = vmatprep.subr.bf16.mxu0 0
    %1417 = vmatpush2.bf16.msra.mxu0 0
    %1418 = vmatprep.subr.bf16.mxu0 0
    %1419 = vmatpush2.bf16.msra.mxu0 0
    %1420 = vmatprep.subr.bf16.mxu0 0
    %1421 = vmatpush2.bf16.msra.mxu0 0
    %1422 = vmatprep.subr.bf16.mxu0 0
    %1423 = vmatpush2.bf16.msra.mxu0 0
    %1424 = vmatprep.subr.bf16.mxu0 0
    %1425 = vmatpush2.bf16.msra.mxu0 0
    %1426 = vmatprep.subr.bf16.mxu0 0
    %1427 = vmatpush2.bf16.msra.mxu0 0
    %1428 = vmatprep.subr.bf16.mxu0 0
    %1429 = vmatpush2.bf16.msra.mxu0 0
    %1430 = vmatprep.subr.bf16.mxu0 0
    %1431 = vmatpush2.bf16.msra.mxu0 0
    %1432 = vmatprep.mubr.bf16.mxu0 0
    %1433 = vmatmul.mubr.bf16.gmra.mxu0 %v1398
    %v1434 = vpop.f32.mrf.mxu0
    %v1435 = vadd.f32 0.0, %v1434
    %v1436 = vpop.f32.mrf.mxu0
    %v1437 = vpop.f32.mrf.mxu0
    %v1438 = vadd.f32 0.0, %v1437
    %v1439 = vpop.f32.mrf.mxu0
    %1440 = vdwg.mxu0
    %s1441 = scalar_lea.vmem %s33, 16
    %v1442 = vld [vmem:[%s1441] sm:$0xff]
    %v1443 = vld [vmem:[%s1441 + $0x8] sm:$0xff]
    %vm1444 = vcmp.gt.f32.partialorder %v1442, 0.5
    %vm1445 = vcmp.gt.f32.partialorder %v1443, 0.5
    %v1446 = vsel %vm1444, %v1435, -1e+10
    %v1447 = vsel %vm1445, %v1438, -1e+10
    %v1448 = vmul.f32 %v1446, 1.442695
    %v1449 = vpow.pop %v1448
    %v1450 = vmul.f32 %v1447, 1.442695
    %v1451 = vpow.pop %v1450
    %1452 = vmatprep.subr.mxu0 0.0
    %1453 = vmatpush1.msra.mxu0 0.0
    %1454 = vmatprep.subr.mxu0 0.0
    %1455 = vmatpush1.msra.mxu0 0.0
    %1456 = vmatprep.subr.mxu0 0.0
    %1457 = vmatpush1.msra.mxu0 0.0
    %1458 = vmatprep.subr.mxu0 0.0
    %1459 = vmatpush1.msra.mxu0 0.0
    %1460 = vmatprep.subr.mxu0 0.0
    %1461 = vmatpush1.msra.mxu0 0.0
    %1462 = vmatprep.subr.mxu0 0.0
    %1463 = vmatpush1.msra.mxu0 0.0
    %1464 = vmatprep.subr.mxu0 0.0
    %1465 = vmatpush1.msra.mxu0 0.0
    %1466 = vmatprep.subr.mxu0 0.0
    %1467 = vmatpush1.msra.mxu0 0.0
    %1468 = vmatprep.subr.mxu0 0.0
    %1469 = vmatpush1.msra.mxu0 0.0
    %1470 = vmatprep.subr.mxu0 0.0
    %1471 = vmatpush1.msra.mxu0 0.0
    %1472 = vmatprep.subr.mxu0 0.0
    %1473 = vmatpush1.msra.mxu0 0.0
    %1474 = vmatprep.subr.mxu0 0.0
    %1475 = vmatpush1.msra.mxu0 0.0
    %1476 = vmatprep.subr.mxu0 0.0
    %1477 = vmatpush1.msra.mxu0 0.0
    %1478 = vmatprep.subr.mxu0 0.0
    %1479 = vmatpush1.msra.mxu0 0.0
    %1480 = vmatprep.subr.mxu0 0.0
    %1481 = vmatpush1.msra.mxu0 %v1451
    %1482 = vmatprep.subr.mxu0 0.0
    %1483 = vmatpush1.msra.mxu0 %v1449
    %1484 = vmatprep.subr.mxu0 0.0
    %1485 = vmatpush2.msra.mxu0 0.0
    %1486 = vmatprep.subr.mxu0 0.0
    %1487 = vmatpush2.msra.mxu0 0.0
    %1488 = vmatprep.subr.mxu0 0.0
    %1489 = vmatpush2.msra.mxu0 0.0
    %1490 = vmatprep.subr.mxu0 0.0
    %1491 = vmatpush2.msra.mxu0 0.0
    %1492 = vmatprep.subr.mxu0 0.0
    %1493 = vmatpush2.msra.mxu0 0.0
    %1494 = vmatprep.subr.mxu0 0.0
    %1495 = vmatpush2.msra.mxu0 0.0
    %1496 = vmatprep.subr.mxu0 0.0
    %1497 = vmatpush2.msra.mxu0 0.0
    %1498 = vmatprep.subr.mxu0 0.0
    %1499 = vmatpush2.msra.mxu0 0.0
    %1500 = vmatprep.subr.mxu0 0.0
    %1501 = vmatpush2.msra.mxu0 0.0
    %1502 = vmatprep.subr.mxu0 0.0
    %1503 = vmatpush2.msra.mxu0 0.0
    %1504 = vmatprep.subr.mxu0 0.0
    %1505 = vmatpush2.msra.mxu0 0.0
    %1506 = vmatprep.subr.mxu0 0.0
    %1507 = vmatpush2.msra.mxu0 0.0
    %1508 = vmatprep.subr.mxu0 0.0
    %1509 = vmatpush2.msra.mxu0 0.0
    %1510 = vmatprep.subr.mxu0 0.0
    %1511 = vmatpush2.msra.mxu0 0.0
    %1512 = vmatprep.subr.mxu0 0.0
    %1513 = vmatpush2.msra.mxu0 0.0
    %1514 = vmatprep.subr.mxu0 0.0
    %1515 = vmatpush2.msra.mxu0 0.0
    %1516 = vmatprep.mubr.f32.mxu0 0.0
    %1517 = vmatmul.mubr.f32.gmra.mxu0 %v1253
    %v1518 = vpop.f32.mrf.mxu0
    %v1519 = vadd.f32 0.0, %v1518
    %v1520 = vpop.f32.mrf.mxu0
    %1521 = vmatprep.mubr.f32.mxu0 0.0
    %1522 = vmatmul.mubr.f32.gmra.mxu0 %v1256
    %v1523 = vpop.f32.mrf.mxu0
    %v1524 = vadd.f32 0.0, %v1523
    %v1525 = vpop.f32.mrf.mxu0
    %1526 = vdwg.mxu0
    %v1527 = vrcp.pop %v1519
    %v1528 = vrcp.pop %v1524
    %v1529 = vmul.f32 %v1449, %v1527
    %v1530 = vmul.f32 %v1451, %v1528
    %1532 = vset.pattern.permute.xlu0 0
    %1533 = vperm.xlu0 %1532, %v1529
    %v1534 = vpop.permute.xlu0 %1533
    %1537 = vset.pattern.permute.xlu0 0
    %1538 = vperm.xlu0 %1537, %v1530
    %v1539 = vpop.permute.xlu0 %1538
    %v1541 = vmul.f32 %v1123, %v1534
    %v1542 = vmul.f32 %v1126, %v1539
    %v1543 = vpack.c.bf16 %v1134, %v1131
    %v1545 = vsel %vm811, %v1543, 0
    %1547 = vmatprep.subr.bf16.mxu0 0
    %1548 = vmatpush1.bf16.msra.mxu0 0
    %1549 = vmatprep.subr.bf16.mxu0 0
    %1550 = vmatpush1.bf16.msra.mxu0 0
    %1551 = vmatprep.subr.bf16.mxu0 0
    %1552 = vmatpush1.bf16.msra.mxu0 0
    %1553 = vmatprep.subr.bf16.mxu0 0
    %1554 = vmatpush1.bf16.msra.mxu0 0
    %1555 = vmatprep.subr.bf16.mxu0 0
    %1556 = vmatpush1.bf16.msra.mxu0 0
    %1557 = vmatprep.subr.bf16.mxu0 0
    %1558 = vmatpush1.bf16.msra.mxu0 0
    %1559 = vmatprep.subr.bf16.mxu0 0
    %1560 = vmatpush1.bf16.msra.mxu0 %v1148
    %1561 = vmatprep.subr.bf16.mxu0 0
    %1562 = vmatpush1.bf16.msra.mxu0 %v1147
    %1563 = vmatprep.subr.bf16.mxu0 0
    %1564 = vmatpush2.bf16.msra.mxu0 0
    %1565 = vmatprep.subr.bf16.mxu0 0
    %1566 = vmatpush2.bf16.msra.mxu0 0
    %1567 = vmatprep.subr.bf16.mxu0 0
    %1568 = vmatpush2.bf16.msra.mxu0 0
    %1569 = vmatprep.subr.bf16.mxu0 0
    %1570 = vmatpush2.bf16.msra.mxu0 0
    %1571 = vmatprep.subr.bf16.mxu0 0
    %1572 = vmatpush2.bf16.msra.mxu0 0
    %1573 = vmatprep.subr.bf16.mxu0 0
    %1574 = vmatpush2.bf16.msra.mxu0 0
    %1575 = vmatprep.subr.bf16.mxu0 0
    %1576 = vmatpush2.bf16.msra.mxu0 0
    %1577 = vmatprep.subr.bf16.mxu0 0
    %1578 = vmatpush2.bf16.msra.mxu0 0
    %1579 = vmatprep.mubr.bf16.mxu0 0
    %1580 = vmatmul.mubr.bf16.gmra.mxu0 %v1545
    %v1581 = vpop.f32.mrf.mxu0
    %v1582 = vadd.f32 0.0, %v1581
    %v1583 = vpop.f32.mrf.mxu0
    %v1584 = vpop.f32.mrf.mxu0
    %v1585 = vadd.f32 0.0, %v1584
    %v1586 = vpop.f32.mrf.mxu0
    %1587 = vdwg.mxu0
    %v1588 = vtanh.pop %v1582
    %v1589 = vtanh.pop %v1585
    %v1590 = vpack.c.bf16 %v1589, %v1588
    %v1592 = vsel %vm811, %v1590, 0
    %1594 = vmatprep.subr.bf16.mxu0 0
    %1595 = vmatpush1.bf16.msra.mxu0 0
    %1596 = vmatprep.subr.bf16.mxu0 0
    %1597 = vmatpush1.bf16.msra.mxu0 0
    %1598 = vmatprep.subr.bf16.mxu0 0
    %1599 = vmatpush1.bf16.msra.mxu0 0
    %1600 = vmatprep.subr.bf16.mxu0 0
    %1601 = vmatpush1.bf16.msra.mxu0 0
    %1602 = vmatprep.subr.bf16.mxu0 0
    %1603 = vmatpush1.bf16.msra.mxu0 0
    %1604 = vmatprep.subr.bf16.mxu0 0
    %1605 = vmatpush1.bf16.msra.mxu0 0
    %1606 = vmatprep.subr.bf16.mxu0 0
    %1607 = vmatpush1.bf16.msra.mxu0 %v1197
    %1608 = vmatprep.subr.bf16.mxu0 0
    %1609 = vmatpush1.bf16.msra.mxu0 %v1196
    %1610 = vmatprep.subr.bf16.mxu0 0
    %1611 = vmatpush2.bf16.msra.mxu0 0
    %1612 = vmatprep.subr.bf16.mxu0 0
    %1613 = vmatpush2.bf16.msra.mxu0 0
    %1614 = vmatprep.subr.bf16.mxu0 0
    %1615 = vmatpush2.bf16.msra.mxu0 0
    %1616 = vmatprep.subr.bf16.mxu0 0
    %1617 = vmatpush2.bf16.msra.mxu0 0
    %1618 = vmatprep.subr.bf16.mxu0 0
    %1619 = vmatpush2.bf16.msra.mxu0 0
    %1620 = vmatprep.subr.bf16.mxu0 0
    %1621 = vmatpush2.bf16.msra.mxu0 0
    %1622 = vmatprep.subr.bf16.mxu0 0
    %1623 = vmatpush2.bf16.msra.mxu0 0
    %1624 = vmatprep.subr.bf16.mxu0 0
    %1625 = vmatpush2.bf16.msra.mxu0 0
    %1626 = vmatprep.mubr.bf16.mxu0 0
    %1627 = vmatmul.mubr.bf16.gmra.mxu0 %v1592
    %v1628 = vpop.f32.mrf.mxu0
    %v1629 = vadd.f32 0.0, %v1628
    %v1630 = vpop.f32.mrf.mxu0
    %v1631 = vpop.f32.mrf.mxu0
    %v1632 = vadd.f32 0.0, %v1631
    %v1633 = vpop.f32.mrf.mxu0
    %1634 = vdwg.mxu0
    %s1635 = scalar_lea.vmem %s33, 32
    %v1636 = vld [vmem:[%s1635] sm:$0xff]
    %v1637 = vld [vmem:[%s1635 + $0x8] sm:$0xff]
    %vm1638 = vcmp.gt.f32.partialorder %v1636, 0.5
    %vm1639 = vcmp.gt.f32.partialorder %v1637, 0.5
    %v1640 = vsel %vm1638, %v1629, -1e+10
    %v1641 = vsel %vm1639, %v1632, -1e+10
    %v1642 = vmul.f32 %v1640, 1.442695
    %v1643 = vpow.pop %v1642
    %v1644 = vmul.f32 %v1641, 1.442695
    %v1645 = vpow.pop %v1644
    %1646 = vmatprep.subr.mxu0 0.0
    %1647 = vmatpush1.msra.mxu0 0.0
    %1648 = vmatprep.subr.mxu0 0.0
    %1649 = vmatpush1.msra.mxu0 0.0
    %1650 = vmatprep.subr.mxu0 0.0
    %1651 = vmatpush1.msra.mxu0 0.0
    %1652 = vmatprep.subr.mxu0 0.0
    %1653 = vmatpush1.msra.mxu0 0.0
    %1654 = vmatprep.subr.mxu0 0.0
    %1655 = vmatpush1.msra.mxu0 0.0
    %1656 = vmatprep.subr.mxu0 0.0
    %1657 = vmatpush1.msra.mxu0 0.0
    %1658 = vmatprep.subr.mxu0 0.0
    %1659 = vmatpush1.msra.mxu0 0.0
    %1660 = vmatprep.subr.mxu0 0.0
    %1661 = vmatpush1.msra.mxu0 0.0
    %1662 = vmatprep.subr.mxu0 0.0
    %1663 = vmatpush1.msra.mxu0 0.0
    %1664 = vmatprep.subr.mxu0 0.0
    %1665 = vmatpush1.msra.mxu0 0.0
    %1666 = vmatprep.subr.mxu0 0.0
    %1667 = vmatpush1.msra.mxu0 0.0
    %1668 = vmatprep.subr.mxu0 0.0
    %1669 = vmatpush1.msra.mxu0 0.0
    %1670 = vmatprep.subr.mxu0 0.0
    %1671 = vmatpush1.msra.mxu0 0.0
    %1672 = vmatprep.subr.mxu0 0.0
    %1673 = vmatpush1.msra.mxu0 0.0
    %1674 = vmatprep.subr.mxu0 0.0
    %1675 = vmatpush1.msra.mxu0 %v1645
    %1676 = vmatprep.subr.mxu0 0.0
    %1677 = vmatpush1.msra.mxu0 %v1643
    %1678 = vmatprep.subr.mxu0 0.0
    %1679 = vmatpush2.msra.mxu0 0.0
    %1680 = vmatprep.subr.mxu0 0.0
    %1681 = vmatpush2.msra.mxu0 0.0
    %1682 = vmatprep.subr.mxu0 0.0
    %1683 = vmatpush2.msra.mxu0 0.0
    %1684 = vmatprep.subr.mxu0 0.0
    %1685 = vmatpush2.msra.mxu0 0.0
    %1686 = vmatprep.subr.mxu0 0.0
    %1687 = vmatpush2.msra.mxu0 0.0
    %1688 = vmatprep.subr.mxu0 0.0
    %1689 = vmatpush2.msra.mxu0 0.0
    %1690 = vmatprep.subr.mxu0 0.0
    %1691 = vmatpush2.msra.mxu0 0.0
    %1692 = vmatprep.subr.mxu0 0.0
    %1693 = vmatpush2.msra.mxu0 0.0
    %1694 = vmatprep.subr.mxu0 0.0
    %1695 = vmatpush2.msra.mxu0 0.0
    %1696 = vmatprep.subr.mxu0 0.0
    %1697 = vmatpush2.msra.mxu0 0.0
    %1698 = vmatprep.subr.mxu0 0.0
    %1699 = vmatpush2.msra.mxu0 0.0
    %1700 = vmatprep.subr.mxu0 0.0
    %1701 = vmatpush2.msra.mxu0 0.0
    %1702 = vmatprep.subr.mxu0 0.0
    %1703 = vmatpush2.msra.mxu0 0.0
    %1704 = vmatprep.subr.mxu0 0.0
    %1705 = vmatpush2.msra.mxu0 0.0
    %1706 = vmatprep.subr.mxu0 0.0
    %1707 = vmatpush2.msra.mxu0 0.0
    %1708 = vmatprep.subr.mxu0 0.0
    %1709 = vmatpush2.msra.mxu0 0.0
    %1710 = vmatprep.mubr.f32.mxu0 0.0
    %1711 = vmatmul.mubr.f32.gmra.mxu0 %v1253
    %v1712 = vpop.f32.mrf.mxu0
    %v1713 = vadd.f32 0.0, %v1712
    %v1714 = vpop.f32.mrf.mxu0
    %1715 = vmatprep.mubr.f32.mxu0 0.0
    %1716 = vmatmul.mubr.f32.gmra.mxu0 %v1256
    %v1717 = vpop.f32.mrf.mxu0
    %v1718 = vadd.f32 0.0, %v1717
    %v1719 = vpop.f32.mrf.mxu0
    %1720 = vdwg.mxu0
    %v1721 = vrcp.pop %v1713
    %v1722 = vrcp.pop %v1718
    %v1723 = vmul.f32 %v1643, %v1721
    %v1724 = vmul.f32 %v1645, %v1722
    %1726 = vset.pattern.permute.xlu0 0
    %1727 = vperm.xlu0 %1726, %v1723
    %v1728 = vpop.permute.xlu0 %1727
    %1731 = vset.pattern.permute.xlu0 0
    %1732 = vperm.xlu0 %1731, %v1724
    %v1733 = vpop.permute.xlu0 %1732
    %v1735 = vmul.f32 %v1131, %v1728
    %v1736 = vmul.f32 %v1134, %v1733
    %1739 = vrot.lane.b32.xlu0 %v1541, 32
    %v1740 = vpop.permute.xlu0 %1739
    %1741 = vrot.lane.b32.xlu0 %v1542, 32
    %v1742 = vpop.permute.xlu0 %1741
    %1747 = vrot.lane.b32.xlu0 %v1735, 64
    %v1748 = vpop.permute.xlu0 %1747
    %1749 = vrot.lane.b32.xlu0 %v1736, 64
    %v1750 = vpop.permute.xlu0 %1749
    %v1753 = vsel %vm811, %v1347, %v1740
    %v1754 = vsel %vm811, %v1348, %v1742
    %v1755 = vsel %vm564, %v1753, %v1748
    %v1756 = vsel %vm564, %v1754, %v1750
    %v1757 = vld [vmem:[%s43] sm:$0xff]
    %v1758 = vld [vmem:[%s43 + $0x8] sm:$0xff]
    %v1759 = vld [vmem:[%s43 + $0x10] sm:$0xff]
    %v1760 = vld [vmem:[%s43 + $0x18] sm:$0xff]
    %v1761 = vld [vmem:[%s43 + $0x20] sm:$0xff]
    %v1762 = vld [vmem:[%s43 + $0x28] sm:$0xff]
    %v1763 = vld [vmem:[%s43 + $0x30] sm:$0xff]
    %v1764 = vld [vmem:[%s43 + $0x38] sm:$0xff]
    %v1765 = vld [vmem:[%s43 + $0x40] sm:$0xff]
    %v1766 = vld [vmem:[%s43 + $0x48] sm:$0xff]
    %v1767 = vld [vmem:[%s43 + $0x50] sm:$0xff]
    %v1768 = vld [vmem:[%s43 + $0x58] sm:$0xff]
    %v1769 = vld [vmem:[%s43 + $0x60] sm:$0xff]
    %v1770 = vld [vmem:[%s43 + $0x68] sm:$0xff]
    %v1771 = vld [vmem:[%s43 + $0x70] sm:$0xff]
    %v1772 = vld [vmem:[%s43 + $0x78] sm:$0xff]
    %v1773 = vld [vmem:[%s43 + $0x80] sm:$0xff]
    %v1774 = vld [vmem:[%s43 + $0x88] sm:$0xff]
    %v1775 = vld [vmem:[%s43 + $0x90] sm:$0xff]
    %v1776 = vld [vmem:[%s43 + $0x98] sm:$0xff]
    %v1777 = vld [vmem:[%s43 + $0xa0] sm:$0xff]
    %v1778 = vld [vmem:[%s43 + $0xa8] sm:$0xff]
    %v1779 = vld [vmem:[%s43 + $0xb0] sm:$0xff]
    %v1780 = vld [vmem:[%s43 + $0xb8] sm:$0xff]
    %v1781 = vld [vmem:[%s43 + $0xc0] sm:$0xff]
    %v1782 = vld [vmem:[%s43 + $0xc8] sm:$0xff]
    %v1783 = vld [vmem:[%s43 + $0xd0] sm:$0xff]
    %v1784 = vld [vmem:[%s43 + $0xd8] sm:$0xff]
    %v1785 = vld [vmem:[%s43 + $0xe0] sm:$0xff]
    %v1786 = vld [vmem:[%s43 + $0xe8] sm:$0xff]
    %v1787 = vld [vmem:[%s43 + $0xf0] sm:$0xff]
    %v1788 = vld [vmem:[%s43 + $0xf8] sm:$0xff]
    %v1789 = vld [vmem:[%s43 + $0x100] sm:$0xff]
    %v1790 = vld [vmem:[%s43 + $0x108] sm:$0xff]
    %v1791 = vld [vmem:[%s43 + $0x110] sm:$0xff]
    %v1792 = vld [vmem:[%s43 + $0x118] sm:$0xff]
    %v1793 = vpack.c.bf16 %v1756, %v1755
    %v1794 = vpack.c.bf16 %v1760, %v1757
    %v1795 = vpack.c.bf16 %v1761, %v1758
    %v1796 = vpack.c.bf16 %v1762, %v1759
    %v1797 = vpack.c.bf16 %v1766, %v1763
    %v1798 = vpack.c.bf16 %v1767, %v1764
    %v1799 = vpack.c.bf16 %v1768, %v1765
    %v1800 = vpack.c.bf16 %v1772, %v1769
    %v1801 = vpack.c.bf16 %v1773, %v1770
    %v1802 = vpack.c.bf16 %v1774, %v1771
    %v1803 = vpack.c.bf16 %v1778, %v1775
    %v1804 = vpack.c.bf16 %v1779, %v1776
    %v1805 = vpack.c.bf16 %v1780, %v1777
    %v1806 = vpack.c.bf16 %v1784, %v1781
    %v1807 = vpack.c.bf16 %v1785, %v1782
    %v1808 = vpack.c.bf16 %v1786, %v1783
    %v1809 = vpack.c.bf16 %v1790, %v1787
    %v1810 = vpack.c.bf16 %v1791, %v1788
    %v1811 = vpack.c.bf16 %v1792, %v1789
    %v1812 = vld [vmem:[#allocation22] sm:$0x7]
    %v1814 = vlaneseq
    %v1815 = vshrl.u32 %v1814, 7
    %v1816 = vsub.s32 0, %v1815
    %v1817 = vrot.slane %v1812, %v1816
    %v1818 = vlaneseq
    %v1819 = vshrl.u32 %v1818, 7
    %v1820 = vsub.s32 1, %v1819
    %v1821 = vrot.slane %v1812, %v1820
    %v1822 = vlaneseq
    %v1823 = vshrl.u32 %v1822, 7
    %v1824 = vsub.s32 2, %v1823
    %v1825 = vrot.slane %v1812, %v1824
    %vm1829 = vcmask 785408
    %v1831 = vsel %vm1829, %v1793, 0
    %1833 = vmatprep.subr.bf16.mxu0 0
    %1834 = vmatpush1.bf16.msra.mxu0 0
    %1835 = vmatprep.subr.bf16.mxu0 0
    %1836 = vmatpush1.bf16.msra.mxu0 0
    %1837 = vmatprep.subr.bf16.mxu0 %v1810
    %1838 = vmatpush1.bf16.msra.mxu0 %v1809
    %1839 = vmatprep.subr.bf16.mxu0 %v1807
    %1840 = vmatpush1.bf16.msra.mxu0 %v1806
    %1841 = vmatprep.subr.bf16.mxu0 %v1804
    %1842 = vmatpush1.bf16.msra.mxu0 %v1803
    %1843 = vmatprep.subr.bf16.mxu0 %v1801
    %1844 = vmatpush1.bf16.msra.mxu0 %v1800
    %1845 = vmatprep.subr.bf16.mxu0 %v1798
    %1846 = vmatpush1.bf16.msra.mxu0 %v1797
    %1847 = vmatprep.subr.bf16.mxu0 %v1795
    %1848 = vmatpush1.bf16.msra.mxu0 %v1794
    %1849 = vmatprep.subr.bf16.mxu0 0
    %1850 = vmatpush2.bf16.msra.mxu0 0
    %1851 = vmatprep.subr.bf16.mxu0 0
    %1852 = vmatpush2.bf16.msra.mxu0 0
    %1853 = vmatprep.subr.bf16.mxu0 0
    %1854 = vmatpush2.bf16.msra.mxu0 0
    %1855 = vmatprep.subr.bf16.mxu0 0
    %1856 = vmatpush2.bf16.msra.mxu0 0
    %1857 = vmatprep.subr.bf16.mxu0 0
    %1858 = vmatpush2.bf16.msra.mxu0 0
    %1859 = vmatprep.subr.bf16.mxu0 0
    %1860 = vmatpush2.bf16.msra.mxu0 0
    %1861 = vmatprep.subr.bf16.mxu0 0
    %1862 = vmatpush2.bf16.msra.mxu0 0
    %1863 = vmatprep.subr.bf16.mxu0 0
    %1864 = vmatpush2.bf16.msra.mxu0 0
    %1865 = vmatprep.mubr.bf16.mxu0 0
    %1866 = vmatmul.mubr.bf16.gmra.mxu0 %v1831
    %v1867 = vpop.f32.mrf.mxu0
    %v1868 = vadd.f32 %v1817, %v1867
    %v1869 = vpop.f32.mrf.mxu0
    %v1870 = vadd.f32 %v1821, %v1869
    %v1871 = vpop.f32.mrf.mxu0
    %v1872 = vadd.f32 %v1817, %v1871
    %v1873 = vpop.f32.mrf.mxu0
    %v1874 = vadd.f32 %v1821, %v1873
    %1875 = vdwg.mxu0
    %1876 = vmatprep.subr.bf16.mxu0 0
    %1877 = vmatpush1.bf16.msra.mxu0 0
    %1878 = vmatprep.subr.bf16.mxu0 0
    %1879 = vmatpush1.bf16.msra.mxu0 0
    %1880 = vmatprep.subr.bf16.mxu0 0
    %1881 = vmatpush1.bf16.msra.mxu0 %v1811
    %1882 = vmatprep.subr.bf16.mxu0 0
    %1883 = vmatpush1.bf16.msra.mxu0 %v1808
    %1884 = vmatprep.subr.bf16.mxu0 0
    %1885 = vmatpush1.bf16.msra.mxu0 %v1805
    %1886 = vmatprep.subr.bf16.mxu0 0
    %1887 = vmatpush1.bf16.msra.mxu0 %v1802
    %1888 = vmatprep.subr.bf16.mxu0 0
    %1889 = vmatpush1.bf16.msra.mxu0 %v1799
    %1890 = vmatprep.subr.bf16.mxu0 0
    %1891 = vmatpush1.bf16.msra.mxu0 %v1796
    %1892 = vmatprep.subr.bf16.mxu0 0
    %1893 = vmatpush2.bf16.msra.mxu0 0
    %1894 = vmatprep.subr.bf16.mxu0 0
    %1895 = vmatpush2.bf16.msra.mxu0 0
    %1896 = vmatprep.subr.bf16.mxu0 0
    %1897 = vmatpush2.bf16.msra.mxu0 0
    %1898 = vmatprep.subr.bf16.mxu0 0
    %1899 = vmatpush2.bf16.msra.mxu0 0
    %1900 = vmatprep.subr.bf16.mxu0 0
    %1901 = vmatpush2.bf16.msra.mxu0 0
    %1902 = vmatprep.subr.bf16.mxu0 0
    %1903 = vmatpush2.bf16.msra.mxu0 0
    %1904 = vmatprep.subr.bf16.mxu0 0
    %1905 = vmatpush2.bf16.msra.mxu0 0
    %1906 = vmatprep.subr.bf16.mxu0 0
    %1907 = vmatpush2.bf16.msra.mxu0 0
    %1908 = vmatprep.mubr.bf16.mxu0 0
    %1909 = vmatmul.mubr.bf16.gmra.mxu0 %v1831
    %v1910 = vpop.f32.mrf.mxu0
    %v1911 = vadd.f32 %v1825, %v1910
    %v1912 = vpop.f32.mrf.mxu0
    %v1913 = vpop.f32.mrf.mxu0
    %v1914 = vadd.f32 %v1825, %v1913
    %v1915 = vpop.f32.mrf.mxu0
    %1916 = vdwg.mxu0
    %v1917 = vld [vmem:[%s45] sm:$0xff]
    %v1918 = vld [vmem:[%s45 + $0x8] sm:$0xff]
    %v1919 = vld [vmem:[%s45 + $0x10] sm:$0xff]
    %v1920 = vld [vmem:[%s45 + $0x18] sm:$0xff]
    %v1921 = vld [vmem:[%s45 + $0x20] sm:$0xff]
    %v1922 = vld [vmem:[%s45 + $0x28] sm:$0xff]
    %v1923 = vld [vmem:[%s45 + $0x30] sm:$0xff]
    %v1924 = vld [vmem:[%s45 + $0x38] sm:$0xff]
    %v1925 = vld [vmem:[%s45 + $0x40] sm:$0xff]
    %v1926 = vld [vmem:[%s45 + $0x48] sm:$0xff]
    %v1927 = vld [vmem:[%s45 + $0x50] sm:$0xff]
    %v1928 = vld [vmem:[%s45 + $0x58] sm:$0xff]
    %v1929 = vld [vmem:[%s45 + $0x60] sm:$0xff]
    %v1930 = vld [vmem:[%s45 + $0x68] sm:$0xff]
    %v1931 = vld [vmem:[%s45 + $0x70] sm:$0xff]
    %v1932 = vld [vmem:[%s45 + $0x78] sm:$0xff]
    %v1933 = vld [vmem:[%s45 + $0x80] sm:$0xff]
    %v1934 = vld [vmem:[%s45 + $0x88] sm:$0xff]
    %v1935 = vld [vmem:[%s45 + $0x90] sm:$0xff]
    %v1936 = vld [vmem:[%s45 + $0x98] sm:$0xff]
    %v1937 = vld [vmem:[%s45 + $0xa0] sm:$0xff]
    %v1938 = vld [vmem:[%s45 + $0xa8] sm:$0xff]
    %v1939 = vld [vmem:[%s45 + $0xb0] sm:$0xff]
    %v1940 = vld [vmem:[%s45 + $0xb8] sm:$0xff]
    %v1941 = vld [vmem:[%s45 + $0xc0] sm:$0xff]
    %v1942 = vld [vmem:[%s45 + $0xc8] sm:$0xff]
    %v1943 = vld [vmem:[%s45 + $0xd0] sm:$0xff]
    %v1944 = vld [vmem:[%s45 + $0xd8] sm:$0xff]
    %v1945 = vld [vmem:[%s45 + $0xe0] sm:$0xff]
    %v1946 = vld [vmem:[%s45 + $0xe8] sm:$0xff]
    %v1947 = vld [vmem:[%s45 + $0xf0] sm:$0xff]
    %v1948 = vld [vmem:[%s45 + $0xf8] sm:$0xff]
    %v1949 = vld [vmem:[%s45 + $0x100] sm:$0xff]
    %v1950 = vld [vmem:[%s45 + $0x108] sm:$0xff]
    %v1951 = vld [vmem:[%s45 + $0x110] sm:$0xff]
    %v1952 = vld [vmem:[%s45 + $0x118] sm:$0xff]
    %v1953 = vpack.c.bf16 %v1920, %v1917
    %v1954 = vpack.c.bf16 %v1921, %v1918
    %v1955 = vpack.c.bf16 %v1922, %v1919
    %v1956 = vpack.c.bf16 %v1926, %v1923
    %v1957 = vpack.c.bf16 %v1927, %v1924
    %v1958 = vpack.c.bf16 %v1928, %v1925
    %v1959 = vpack.c.bf16 %v1932, %v1929
    %v1960 = vpack.c.bf16 %v1933, %v1930
    %v1961 = vpack.c.bf16 %v1934, %v1931
    %v1962 = vpack.c.bf16 %v1938, %v1935
    %v1963 = vpack.c.bf16 %v1939, %v1936
    %v1964 = vpack.c.bf16 %v1940, %v1937
    %v1965 = vpack.c.bf16 %v1944, %v1941
    %v1966 = vpack.c.bf16 %v1945, %v1942
    %v1967 = vpack.c.bf16 %v1946, %v1943
    %v1968 = vpack.c.bf16 %v1950, %v1947
    %v1969 = vpack.c.bf16 %v1951, %v1948
    %v1970 = vpack.c.bf16 %v1952, %v1949
    %v1971 = vld [vmem:[#allocation23] sm:$0x7]
    %v1972 = vld [vmem:[%s35] sm:$0x3]
    %v1974 = vlaneseq
    %v1975 = vshrl.u32 %v1974, 7
    %v1976 = vsub.s32 0, %v1975
    %v1977 = vrot.slane %v1971, %v1976
    %v1978 = vlaneseq
    %v1979 = vshrl.u32 %v1978, 7
    %v1980 = vsub.s32 1, %v1979
    %v1981 = vrot.slane %v1971, %v1980
    %v1982 = vlaneseq
    %v1983 = vshrl.u32 %v1982, 7
    %v1984 = vsub.s32 2, %v1983
    %v1985 = vrot.slane %v1971, %v1984
    %v1990 = vsel %vm1829, 0, 0
    %1992 = vmatprep.subr.bf16.mxu0 0
    %1993 = vmatpush1.bf16.msra.mxu0 0
    %1994 = vmatprep.subr.bf16.mxu0 0
    %1995 = vmatpush1.bf16.msra.mxu0 0
    %1996 = vmatprep.subr.bf16.mxu0 %v1969
    %1997 = vmatpush1.bf16.msra.mxu0 %v1968
    %1998 = vmatprep.subr.bf16.mxu0 %v1966
    %1999 = vmatpush1.bf16.msra.mxu0 %v1965
    %2000 = vmatprep.subr.bf16.mxu0 %v1963
    %2001 = vmatpush1.bf16.msra.mxu0 %v1962
    %2002 = vmatprep.subr.bf16.mxu0 %v1960
    %2003 = vmatpush1.bf16.msra.mxu0 %v1959
    %2004 = vmatprep.subr.bf16.mxu0 %v1957
    %2005 = vmatpush1.bf16.msra.mxu0 %v1956
    %2006 = vmatprep.subr.bf16.mxu0 %v1954
    %2007 = vmatpush1.bf16.msra.mxu0 %v1953
    %2008 = vmatprep.subr.bf16.mxu0 0
    %2009 = vmatpush2.bf16.msra.mxu0 0
    %2010 = vmatprep.subr.bf16.mxu0 0
    %2011 = vmatpush2.bf16.msra.mxu0 0
    %2012 = vmatprep.subr.bf16.mxu0 0
    %2013 = vmatpush2.bf16.msra.mxu0 0
    %2014 = vmatprep.subr.bf16.mxu0 0
    %2015 = vmatpush2.bf16.msra.mxu0 0
    %2016 = vmatprep.subr.bf16.mxu0 0
    %2017 = vmatpush2.bf16.msra.mxu0 0
    %2018 = vmatprep.subr.bf16.mxu0 0
    %2019 = vmatpush2.bf16.msra.mxu0 0
    %2020 = vmatprep.subr.bf16.mxu0 0
    %2021 = vmatpush2.bf16.msra.mxu0 0
    %2022 = vmatprep.subr.bf16.mxu0 0
    %2023 = vmatpush2.bf16.msra.mxu0 0
    %2024 = vmatprep.mubr.bf16.mxu0 0
    %2025 = vmatmul.mubr.bf16.gmra.mxu0 %v1990
    %v2026 = vpop.f32.mrf.mxu0
    %v2027 = vadd.f32 %v1977, %v2026
    %v2028 = vpop.f32.mrf.mxu0
    %v2029 = vadd.f32 %v1981, %v2028
    %v2030 = vpop.f32.mrf.mxu0
    %v2031 = vpop.f32.mrf.mxu0
    %2032 = vdwg.mxu0
    %2033 = vmatprep.subr.bf16.mxu0 0
    %2034 = vmatpush1.bf16.msra.mxu0 0
    %2035 = vmatprep.subr.bf16.mxu0 0
    %2036 = vmatpush1.bf16.msra.mxu0 0
    %2037 = vmatprep.subr.bf16.mxu0 0
    %2038 = vmatpush1.bf16.msra.mxu0 %v1970
    %2039 = vmatprep.subr.bf16.mxu0 0
    %2040 = vmatpush1.bf16.msra.mxu0 %v1967
    %2041 = vmatprep.subr.bf16.mxu0 0
    %2042 = vmatpush1.bf16.msra.mxu0 %v1964
    %2043 = vmatprep.subr.bf16.mxu0 0
    %2044 = vmatpush1.bf16.msra.mxu0 %v1961
    %2045 = vmatprep.subr.bf16.mxu0 0
    %2046 = vmatpush1.bf16.msra.mxu0 %v1958
    %2047 = vmatprep.subr.bf16.mxu0 0
    %2048 = vmatpush1.bf16.msra.mxu0 %v1955
    %2049 = vmatprep.subr.bf16.mxu0 0
    %2050 = vmatpush2.bf16.msra.mxu0 0
    %2051 = vmatprep.subr.bf16.mxu0 0
    %2052 = vmatpush2.bf16.msra.mxu0 0
    %2053 = vmatprep.subr.bf16.mxu0 0
    %2054 = vmatpush2.bf16.msra.mxu0 0
    %2055 = vmatprep.subr.bf16.mxu0 0
    %2056 = vmatpush2.bf16.msra.mxu0 0
    %2057 = vmatprep.subr.bf16.mxu0 0
    %2058 = vmatpush2.bf16.msra.mxu0 0
    %2059 = vmatprep.subr.bf16.mxu0 0
    %2060 = vmatpush2.bf16.msra.mxu0 0
    %2061 = vmatprep.subr.bf16.mxu0 0
    %2062 = vmatpush2.bf16.msra.mxu0 0
    %2063 = vmatprep.subr.bf16.mxu0 0
    %2064 = vmatpush2.bf16.msra.mxu0 0
    %2065 = vmatprep.mubr.bf16.mxu0 0
    %2066 = vmatmul.mubr.bf16.gmra.mxu0 %v1990
    %v2067 = vpop.f32.mrf.mxu0
    %v2068 = vadd.f32 %v1985, %v2067
    %v2069 = vpop.f32.mrf.mxu0
    %v2070 = vpop.f32.mrf.mxu0
    %v2071 = vpop.f32.mrf.mxu0
    %2072 = vdwg.mxu0
    %v2074 = vrot.slane %v2027, 1
    %v2077 = vadd.f32 %v1868, %v2027
    %v2078 = vadd.f32 %v1872, %v2074
    %v2079 = vxor.u32 %v2077, 2147483648
    %v2080 = vxor.u32 %v2078, 2147483648
    %v2081 = vmul.f32 %v2079, 1.442695
    %v2082 = vpow.pop %v2081
    %v2083 = vmul.f32 %v2080, 1.442695
    %v2084 = vpow.pop %v2083
    %v2085 = vadd.f32 %v2082, 1.0
    %v2086 = vadd.f32 %v2084, 1.0
    %v2087 = vrcp.pop %v2085
    %v2088 = vmul.f32 1.0, %v2087
    %v2089 = vrcp.pop %v2086
    %v2090 = vmul.f32 1.0, %v2089
    %v2092 = vrot.slane %v2029, 1
    %v2095 = vadd.f32 %v1870, %v2029
    %v2096 = vadd.f32 %v1874, %v2092
    %v2097 = vxor.u32 %v2095, 2147483648
    %v2098 = vxor.u32 %v2096, 2147483648
    %v2099 = vmul.f32 %v2097, 1.442695
    %v2100 = vpow.pop %v2099
    %v2101 = vmul.f32 %v2098, 1.442695
    %v2102 = vpow.pop %v2101
    %v2103 = vadd.f32 %v2100, 1.0
    %v2104 = vadd.f32 %v2102, 1.0
    %v2105 = vrcp.pop %v2103
    %v2106 = vmul.f32 1.0, %v2105
    %v2107 = vrcp.pop %v2104
    %v2108 = vmul.f32 1.0, %v2107
    %v2110 = vrot.slane %v2068, 1
    %v2113 = vmul.f32 %v2088, %v2068
    %v2114 = vmul.f32 %v2090, %v2110
    %v2115 = vadd.f32 %v1911, %v2113
    %v2116 = vadd.f32 %v1914, %v2114
    %v2117 = vtanh.pop %v2115
    %v2118 = vtanh.pop %v2116
    %v2119 = vsub.f32 1.0, %v2106
    %v2120 = vsub.f32 1.0, %v2108
    %v2121 = vmul.f32 %v2119, %v2117
    %v2122 = vmul.f32 %v2120, %v2118
    %v2123 = vmul.f32 %v2106, 0.0
    %v2124 = vmul.f32 %v2108, 0.0
    %v2125 = vadd.f32 %v2121, %v2123
    %v2126 = vadd.f32 %v2122, %v2124
    %vm2127 = vcmp.gt.s32.totalorder %v1972, 0
    %v2130 = vrot.slane %v2126, 7
    %vm2131 = vcmask 1041409
    %v2132 = vsel %vm2131, %v2130, %v2125
    %v2134 = vsel %vm2127, %v2132, 0.0
    %v2135 = vpack.c.bf16 %v2134, %v2134
    %v2137 = vsel %vm1829, %v2135, 0
    %2139 = vmatprep.subr.bf16.mxu0 0
    %2140 = vmatpush1.bf16.msra.mxu0 0
    %2141 = vmatprep.subr.bf16.mxu0 0
    %2142 = vmatpush1.bf16.msra.mxu0 0
    %2143 = vmatprep.subr.bf16.mxu0 %v1969
    %2144 = vmatpush1.bf16.msra.mxu0 %v1968
    %2145 = vmatprep.subr.bf16.mxu0 %v1966
    %2146 = vmatpush1.bf16.msra.mxu0 %v1965
    %2147 = vmatprep.subr.bf16.mxu0 %v1963
    %2148 = vmatpush1.bf16.msra.mxu0 %v1962
    %2149 = vmatprep.subr.bf16.mxu0 %v1960
    %2150 = vmatpush1.bf16.msra.mxu0 %v1959
    %2151 = vmatprep.subr.bf16.mxu0 %v1957
    %2152 = vmatpush1.bf16.msra.mxu0 %v1956
    %2153 = vmatprep.subr.bf16.mxu0 %v1954
    %2154 = vmatpush1.bf16.msra.mxu0 %v1953
    %2155 = vmatprep.subr.bf16.mxu0 0
    %2156 = vmatpush2.bf16.msra.mxu0 0
    %2157 = vmatprep.subr.bf16.mxu0 0
    %2158 = vmatpush2.bf16.msra.mxu0 0
    %2159 = vmatprep.subr.bf16.mxu0 0
    %2160 = vmatpush2.bf16.msra.mxu0 0
    %2161 = vmatprep.subr.bf16.mxu0 0
    %2162 = vmatpush2.bf16.msra.mxu0 0
    %2163 = vmatprep.subr.bf16.mxu0 0
    %2164 = vmatpush2.bf16.msra.mxu0 0
    %2165 = vmatprep.subr.bf16.mxu0 0
    %2166 = vmatpush2.bf16.msra.mxu0 0
    %2167 = vmatprep.subr.bf16.mxu0 0
    %2168 = vmatpush2.bf16.msra.mxu0 0
    %2169 = vmatprep.subr.bf16.mxu0 0
    %2170 = vmatpush2.bf16.msra.mxu0 0
    %2171 = vmatprep.mubr.bf16.mxu0 0
    %2172 = vmatmul.mubr.bf16.gmra.mxu0 %v2137
    %v2173 = vpop.f32.mrf.mxu0
    %v2174 = vadd.f32 %v1977, %v2173
    %v2175 = vpop.f32.mrf.mxu0
    %v2176 = vadd.f32 %v1981, %v2175
    %v2177 = vpop.f32.mrf.mxu0
    %v2178 = vpop.f32.mrf.mxu0
    %2179 = vdwg.mxu0
    %2180 = vmatprep.subr.bf16.mxu0 0
    %2181 = vmatpush1.bf16.msra.mxu0 0
    %2182 = vmatprep.subr.bf16.mxu0 0
    %2183 = vmatpush1.bf16.msra.mxu0 0
    %2184 = vmatprep.subr.bf16.mxu0 0
    %2185 = vmatpush1.bf16.msra.mxu0 %v1970
    %2186 = vmatprep.subr.bf16.mxu0 0
    %2187 = vmatpush1.bf16.msra.mxu0 %v1967
    %2188 = vmatprep.subr.bf16.mxu0 0
    %2189 = vmatpush1.bf16.msra.mxu0 %v1964
    %2190 = vmatprep.subr.bf16.mxu0 0
    %2191 = vmatpush1.bf16.msra.mxu0 %v1961
    %2192 = vmatprep.subr.bf16.mxu0 0
    %2193 = vmatpush1.bf16.msra.mxu0 %v1958
    %2194 = vmatprep.subr.bf16.mxu0 0
    %2195 = vmatpush1.bf16.msra.mxu0 %v1955
    %2196 = vmatprep.subr.bf16.mxu0 0
    %2197 = vmatpush2.bf16.msra.mxu0 0
    %2198 = vmatprep.subr.bf16.mxu0 0
    %2199 = vmatpush2.bf16.msra.mxu0 0
    %2200 = vmatprep.subr.bf16.mxu0 0
    %2201 = vmatpush2.bf16.msra.mxu0 0
    %2202 = vmatprep.subr.bf16.mxu0 0
    %2203 = vmatpush2.bf16.msra.mxu0 0
    %2204 = vmatprep.subr.bf16.mxu0 0
    %2205 = vmatpush2.bf16.msra.mxu0 0
    %2206 = vmatprep.subr.bf16.mxu0 0
    %2207 = vmatpush2.bf16.msra.mxu0 0
    %2208 = vmatprep.subr.bf16.mxu0 0
    %2209 = vmatpush2.bf16.msra.mxu0 0
    %2210 = vmatprep.subr.bf16.mxu0 0
    %2211 = vmatpush2.bf16.msra.mxu0 0
    %2212 = vmatprep.mubr.bf16.mxu0 0
    %2213 = vmatmul.mubr.bf16.gmra.mxu0 %v2137
    %v2214 = vpop.f32.mrf.mxu0
    %v2215 = vadd.f32 %v1985, %v2214
    %v2216 = vpop.f32.mrf.mxu0
    %v2217 = vpop.f32.mrf.mxu0
    %v2218 = vpop.f32.mrf.mxu0
    %2219 = vdwg.mxu0
    %v2221 = vrot.slane %v2174, 7
    %v2224 = vadd.f32 %v1868, %v2221
    %v2225 = vadd.f32 %v1872, %v2174
    %v2226 = vxor.u32 %v2224, 2147483648
    %v2227 = vxor.u32 %v2225, 2147483648
    %v2228 = vmul.f32 %v2226, 1.442695
    %v2229 = vpow.pop %v2228
    %v2230 = vmul.f32 %v2227, 1.442695
    %v2231 = vpow.pop %v2230
    %v2232 = vadd.f32 %v2229, 1.0
    %v2233 = vadd.f32 %v2231, 1.0
    %v2234 = vrcp.pop %v2232
    %v2235 = vmul.f32 1.0, %v2234
    %v2236 = vrcp.pop %v2233
    %v2237 = vmul.f32 1.0, %v2236
    %v2239 = vrot.slane %v2176, 7
    %v2242 = vadd.f32 %v1870, %v2239
    %v2243 = vadd.f32 %v1874, %v2176
    %v2244 = vxor.u32 %v2242, 2147483648
    %v2245 = vxor.u32 %v2243, 2147483648
    %v2246 = vmul.f32 %v2244, 1.442695
    %v2247 = vpow.pop %v2246
    %v2248 = vmul.f32 %v2245, 1.442695
    %v2249 = vpow.pop %v2248
    %v2250 = vadd.f32 %v2247, 1.0
    %v2251 = vadd.f32 %v2249, 1.0
    %v2252 = vrcp.pop %v2250
    %v2253 = vmul.f32 1.0, %v2252
    %v2254 = vrcp.pop %v2251
    %v2255 = vmul.f32 1.0, %v2254
    %v2257 = vrot.slane %v2215, 7
    %v2260 = vmul.f32 %v2235, %v2257
    %v2261 = vmul.f32 %v2237, %v2215
    %v2262 = vadd.f32 %v1911, %v2260
    %v2263 = vadd.f32 %v1914, %v2261
    %v2264 = vtanh.pop %v2262
    %v2265 = vtanh.pop %v2263
    %v2266 = vsub.f32 1.0, %v2253
    %v2267 = vsub.f32 1.0, %v2255
    %v2268 = vmul.f32 %v2266, %v2264
    %v2269 = vmul.f32 %v2267, %v2265
    %v2271 = vrot.slane %v2134, 7
    %v2274 = vmul.f32 %v2253, %v2271
    %v2275 = vmul.f32 %v2255, %v2134
    %v2276 = vadd.f32 %v2268, %v2274
    %v2277 = vadd.f32 %v2269, %v2275
    %vm2278 = vcmp.gt.s32.totalorder %v1972, 1
    %v2281 = vrot.slane %v2276, 1
    %v2282 = vsel %vm2131, %v2277, %v2281
    %v2284 = vsel %vm2278, %v2282, %v2134
    %v2285 = vpack.c.bf16 %v2284, %v2284
    %v2287 = vsel %vm1829, %v2285, 0
    %2289 = vmatprep.subr.bf16.mxu0 0
    %2290 = vmatpush1.bf16.msra.mxu0 0
    %2291 = vmatprep.subr.bf16.mxu0 0
    %2292 = vmatpush1.bf16.msra.mxu0 0
    %2293 = vmatprep.subr.bf16.mxu0 %v1969
    %2294 = vmatpush1.bf16.msra.mxu0 %v1968
    %2295 = vmatprep.subr.bf16.mxu0 %v1966
    %2296 = vmatpush1.bf16.msra.mxu0 %v1965
    %2297 = vmatprep.subr.bf16.mxu0 %v1963
    %2298 = vmatpush1.bf16.msra.mxu0 %v1962
    %2299 = vmatprep.subr.bf16.mxu0 %v1960
    %2300 = vmatpush1.bf16.msra.mxu0 %v1959
    %2301 = vmatprep.subr.bf16.mxu0 %v1957
    %2302 = vmatpush1.bf16.msra.mxu0 %v1956
    %2303 = vmatprep.subr.bf16.mxu0 %v1954
    %2304 = vmatpush1.bf16.msra.mxu0 %v1953
    %2305 = vmatprep.subr.bf16.mxu0 0
    %2306 = vmatpush2.bf16.msra.mxu0 0
    %2307 = vmatprep.subr.bf16.mxu0 0
    %2308 = vmatpush2.bf16.msra.mxu0 0
    %2309 = vmatprep.subr.bf16.mxu0 0
    %2310 = vmatpush2.bf16.msra.mxu0 0
    %2311 = vmatprep.subr.bf16.mxu0 0
    %2312 = vmatpush2.bf16.msra.mxu0 0
    %2313 = vmatprep.subr.bf16.mxu0 0
    %2314 = vmatpush2.bf16.msra.mxu0 0
    %2315 = vmatprep.subr.bf16.mxu0 0
    %2316 = vmatpush2.bf16.msra.mxu0 0
    %2317 = vmatprep.subr.bf16.mxu0 0
    %2318 = vmatpush2.bf16.msra.mxu0 0
    %2319 = vmatprep.subr.bf16.mxu0 0
    %2320 = vmatpush2.bf16.msra.mxu0 0
    %2321 = vmatprep.mubr.bf16.mxu0 0
    %2322 = vmatmul.mubr.bf16.gmra.mxu0 %v2287
    %v2323 = vpop.f32.mrf.mxu0
    %v2324 = vadd.f32 %v1977, %v2323
    %v2325 = vpop.f32.mrf.mxu0
    %v2326 = vadd.f32 %v1981, %v2325
    %v2327 = vpop.f32.mrf.mxu0
    %v2328 = vpop.f32.mrf.mxu0
    %2329 = vdwg.mxu0
    %2330 = vmatprep.subr.bf16.mxu0 0
    %2331 = vmatpush1.bf16.msra.mxu0 0
    %2332 = vmatprep.subr.bf16.mxu0 0
    %2333 = vmatpush1.bf16.msra.mxu0 0
    %2334 = vmatprep.subr.bf16.mxu0 0
    %2335 = vmatpush1.bf16.msra.mxu0 %v1970
    %2336 = vmatprep.subr.bf16.mxu0 0
    %2337 = vmatpush1.bf16.msra.mxu0 %v1967
    %2338 = vmatprep.subr.bf16.mxu0 0
    %2339 = vmatpush1.bf16.msra.mxu0 %v1964
    %2340 = vmatprep.subr.bf16.mxu0 0
    %2341 = vmatpush1.bf16.msra.mxu0 %v1961
    %2342 = vmatprep.subr.bf16.mxu0 0
    %2343 = vmatpush1.bf16.msra.mxu0 %v1958
    %2344 = vmatprep.subr.bf16.mxu0 0
    %2345 = vmatpush1.bf16.msra.mxu0 %v1955
    %2346 = vmatprep.subr.bf16.mxu0 0
    %2347 = vmatpush2.bf16.msra.mxu0 0
    %2348 = vmatprep.subr.bf16.mxu0 0
    %2349 = vmatpush2.bf16.msra.mxu0 0
    %2350 = vmatprep.subr.bf16.mxu0 0
    %2351 = vmatpush2.bf16.msra.mxu0 0
    %2352 = vmatprep.subr.bf16.mxu0 0
    %2353 = vmatpush2.bf16.msra.mxu0 0
    %2354 = vmatprep.subr.bf16.mxu0 0
    %2355 = vmatpush2.bf16.msra.mxu0 0
    %2356 = vmatprep.subr.bf16.mxu0 0
    %2357 = vmatpush2.bf16.msra.mxu0 0
    %2358 = vmatprep.subr.bf16.mxu0 0
    %2359 = vmatpush2.bf16.msra.mxu0 0
    %2360 = vmatprep.subr.bf16.mxu0 0
    %2361 = vmatpush2.bf16.msra.mxu0 0
    %2362 = vmatprep.mubr.bf16.mxu0 0
    %2363 = vmatmul.mubr.bf16.gmra.mxu0 %v2287
    %v2364 = vpop.f32.mrf.mxu0
    %v2365 = vadd.f32 %v1985, %v2364
    %v2366 = vpop.f32.mrf.mxu0
    %v2367 = vpop.f32.mrf.mxu0
    %v2368 = vpop.f32.mrf.mxu0
    %2369 = vdwg.mxu0
    %v2371 = vrot.slane %v2324, 6
    %v2372 = vrot.slane %v2324, 7
    %v2375 = vadd.f32 %v1868, %v2371
    %v2376 = vadd.f32 %v1872, %v2372
    %v2377 = vxor.u32 %v2375, 2147483648
    %v2378 = vxor.u32 %v2376, 2147483648
    %v2379 = vmul.f32 %v2377, 1.442695
    %v2380 = vpow.pop %v2379
    %v2381 = vmul.f32 %v2378, 1.442695
    %v2382 = vpow.pop %v2381
    %v2383 = vadd.f32 %v2380, 1.0
    %v2384 = vadd.f32 %v2382, 1.0
    %v2385 = vrcp.pop %v2383
    %v2386 = vmul.f32 1.0, %v2385
    %v2387 = vrcp.pop %v2384
    %v2388 = vmul.f32 1.0, %v2387
    %v2390 = vrot.slane %v2326, 6
    %v2391 = vrot.slane %v2326, 7
    %v2394 = vadd.f32 %v1870, %v2390
    %v2395 = vadd.f32 %v1874, %v2391
    %v2396 = vxor.u32 %v2394, 2147483648
    %v2397 = vxor.u32 %v2395, 2147483648
    %v2398 = vmul.f32 %v2396, 1.442695
    %v2399 = vpow.pop %v2398
    %v2400 = vmul.f32 %v2397, 1.442695
    %v2401 = vpow.pop %v2400
    %v2402 = vadd.f32 %v2399, 1.0
    %v2403 = vadd.f32 %v2401, 1.0
    %v2404 = vrcp.pop %v2402
    %v2405 = vmul.f32 1.0, %v2404
    %v2406 = vrcp.pop %v2403
    %v2407 = vmul.f32 1.0, %v2406
    %v2409 = vrot.slane %v2365, 6
    %v2410 = vrot.slane %v2365, 7
    %v2413 = vmul.f32 %v2386, %v2409
    %v2414 = vmul.f32 %v2388, %v2410
    %v2415 = vadd.f32 %v1911, %v2413
    %v2416 = vadd.f32 %v1914, %v2414
    %v2417 = vtanh.pop %v2415
    %v2418 = vtanh.pop %v2416
    %v2419 = vsub.f32 1.0, %v2405
    %v2420 = vsub.f32 1.0, %v2407
    %v2421 = vmul.f32 %v2419, %v2417
    %v2422 = vmul.f32 %v2420, %v2418
    %v2424 = vrot.slane %v2284, 6
    %v2425 = vrot.slane %v2284, 7
    %v2428 = vmul.f32 %v2405, %v2424
    %v2429 = vmul.f32 %v2407, %v2425
    %v2430 = vadd.f32 %v2421, %v2428
    %v2431 = vadd.f32 %v2422, %v2429
    %vm2432 = vcmp.gt.s32.totalorder %v1972, 2
    %v2435 = vrot.slane %v2430, 2
    %v2436 = vrot.slane %v2431, 1
    %v2437 = vsel %vm2131, %v2436, %v2435
    %v2439 = vsel %vm2432, %v2437, %v2284
    %v2440 = vpack.c.bf16 %v2439, %v2439
    %v2442 = vsel %vm1829, %v2440, 0
    %2444 = vmatprep.subr.bf16.mxu0 0
    %2445 = vmatpush1.bf16.msra.mxu0 0
    %2446 = vmatprep.subr.bf16.mxu0 0
    %2447 = vmatpush1.bf16.msra.mxu0 0
    %2448 = vmatprep.subr.bf16.mxu0 %v1969
    %2449 = vmatpush1.bf16.msra.mxu0 %v1968
    %2450 = vmatprep.subr.bf16.mxu0 %v1966
    %2451 = vmatpush1.bf16.msra.mxu0 %v1965
    %2452 = vmatprep.subr.bf16.mxu0 %v1963
    %2453 = vmatpush1.bf16.msra.mxu0 %v1962
    %2454 = vmatprep.subr.bf16.mxu0 %v1960
    %2455 = vmatpush1.bf16.msra.mxu0 %v1959
    %2456 = vmatprep.subr.bf16.mxu0 %v1957
    %2457 = vmatpush1.bf16.msra.mxu0 %v1956
    %2458 = vmatprep.subr.bf16.mxu0 %v1954
    %2459 = vmatpush1.bf16.msra.mxu0 %v1953
    %2460 = vmatprep.subr.bf16.mxu0 0
    %2461 = vmatpush2.bf16.msra.mxu0 0
    %2462 = vmatprep.subr.bf16.mxu0 0
    %2463 = vmatpush2.bf16.msra.mxu0 0
    %2464 = vmatprep.subr.bf16.mxu0 0
    %2465 = vmatpush2.bf16.msra.mxu0 0
    %2466 = vmatprep.subr.bf16.mxu0 0
    %2467 = vmatpush2.bf16.msra.mxu0 0
    %2468 = vmatprep.subr.bf16.mxu0 0
    %2469 = vmatpush2.bf16.msra.mxu0 0
    %2470 = vmatprep.subr.bf16.mxu0 0
    %2471 = vmatpush2.bf16.msra.mxu0 0
    %2472 = vmatprep.subr.bf16.mxu0 0
    %2473 = vmatpush2.bf16.msra.mxu0 0
    %2474 = vmatprep.subr.bf16.mxu0 0
    %2475 = vmatpush2.bf16.msra.mxu0 0
    %2476 = vmatprep.mubr.bf16.mxu0 0
    %2477 = vmatmul.mubr.bf16.gmra.mxu0 %v2442
    %v2478 = vpop.f32.mrf.mxu0
    %v2479 = vadd.f32 %v1977, %v2478
    %v2480 = vpop.f32.mrf.mxu0
    %v2481 = vadd.f32 %v1981, %v2480
    %v2482 = vpop.f32.mrf.mxu0
    %v2483 = vpop.f32.mrf.mxu0
    %2484 = vdwg.mxu0
    %2485 = vmatprep.subr.bf16.mxu0 0
    %2486 = vmatpush1.bf16.msra.mxu0 0
    %2487 = vmatprep.subr.bf16.mxu0 0
    %2488 = vmatpush1.bf16.msra.mxu0 0
    %2489 = vmatprep.subr.bf16.mxu0 0
    %2490 = vmatpush1.bf16.msra.mxu0 %v1970
    %2491 = vmatprep.subr.bf16.mxu0 0
    %2492 = vmatpush1.bf16.msra.mxu0 %v1967
    %2493 = vmatprep.subr.bf16.mxu0 0
    %2494 = vmatpush1.bf16.msra.mxu0 %v1964
    %2495 = vmatprep.subr.bf16.mxu0 0
    %2496 = vmatpush1.bf16.msra.mxu0 %v1961
    %2497 = vmatprep.subr.bf16.mxu0 0
    %2498 = vmatpush1.bf16.msra.mxu0 %v1958
    %2499 = vmatprep.subr.bf16.mxu0 0
    %2500 = vmatpush1.bf16.msra.mxu0 %v1955
    %2501 = vmatprep.subr.bf16.mxu0 0
    %2502 = vmatpush2.bf16.msra.mxu0 0
    %2503 = vmatprep.subr.bf16.mxu0 0
    %2504 = vmatpush2.bf16.msra.mxu0 0
    %2505 = vmatprep.subr.bf16.mxu0 0
    %2506 = vmatpush2.bf16.msra.mxu0 0
    %2507 = vmatprep.subr.bf16.mxu0 0
    %2508 = vmatpush2.bf16.msra.mxu0 0
    %2509 = vmatprep.subr.bf16.mxu0 0
    %2510 = vmatpush2.bf16.msra.mxu0 0
    %2511 = vmatprep.subr.bf16.mxu0 0
    %2512 = vmatpush2.bf16.msra.mxu0 0
    %2513 = vmatprep.subr.bf16.mxu0 0
    %2514 = vmatpush2.bf16.msra.mxu0 0
    %2515 = vmatprep.subr.bf16.mxu0 0
    %2516 = vmatpush2.bf16.msra.mxu0 0
    %2517 = vmatprep.mubr.bf16.mxu0 0
    %2518 = vmatmul.mubr.bf16.gmra.mxu0 %v2442
    %v2519 = vpop.f32.mrf.mxu0
    %v2520 = vadd.f32 %v1985, %v2519
    %v2521 = vpop.f32.mrf.mxu0
    %v2522 = vpop.f32.mrf.mxu0
    %v2523 = vpop.f32.mrf.mxu0
    %2524 = vdwg.mxu0
    %v2526 = vrot.slane %v2479, 5
    %v2527 = vrot.slane %v2479, 6
    %v2530 = vadd.f32 %v1868, %v2526
    %v2531 = vadd.f32 %v1872, %v2527
    %v2532 = vxor.u32 %v2530, 2147483648
    %v2533 = vxor.u32 %v2531, 2147483648
    %v2534 = vmul.f32 %v2532, 1.442695
    %v2535 = vpow.pop %v2534
    %v2536 = vmul.f32 %v2533, 1.442695
    %v2537 = vpow.pop %v2536
    %v2538 = vadd.f32 %v2535, 1.0
    %v2539 = vadd.f32 %v2537, 1.0
    %v2540 = vrcp.pop %v2538
    %v2541 = vmul.f32 1.0, %v2540
    %v2542 = vrcp.pop %v2539
    %v2543 = vmul.f32 1.0, %v2542
    %v2545 = vrot.slane %v2481, 5
    %v2546 = vrot.slane %v2481, 6
    %v2549 = vadd.f32 %v1870, %v2545
    %v2550 = vadd.f32 %v1874, %v2546
    %v2551 = vxor.u32 %v2549, 2147483648
    %v2552 = vxor.u32 %v2550, 2147483648
    %v2553 = vmul.f32 %v2551, 1.442695
    %v2554 = vpow.pop %v2553
    %v2555 = vmul.f32 %v2552, 1.442695
    %v2556 = vpow.pop %v2555
    %v2557 = vadd.f32 %v2554, 1.0
    %v2558 = vadd.f32 %v2556, 1.0
    %v2559 = vrcp.pop %v2557
    %v2560 = vmul.f32 1.0, %v2559
    %v2561 = vrcp.pop %v2558
    %v2562 = vmul.f32 1.0, %v2561
    %v2564 = vrot.slane %v2520, 5
    %v2565 = vrot.slane %v2520, 6
    %v2568 = vmul.f32 %v2541, %v2564
    %v2569 = vmul.f32 %v2543, %v2565
    %v2570 = vadd.f32 %v1911, %v2568
    %v2571 = vadd.f32 %v1914, %v2569
    %v2572 = vtanh.pop %v2570
    %v2573 = vtanh.pop %v2571
    %v2574 = vsub.f32 1.0, %v2560
    %v2575 = vsub.f32 1.0, %v2562
    %v2576 = vmul.f32 %v2574, %v2572
    %v2577 = vmul.f32 %v2575, %v2573
    %v2579 = vrot.slane %v2439, 5
    %v2580 = vrot.slane %v2439, 6
    %v2583 = vmul.f32 %v2560, %v2579
    %v2584 = vmul.f32 %v2562, %v2580
    %v2585 = vadd.f32 %v2576, %v2583
    %v2586 = vadd.f32 %v2577, %v2584
    %vm2587 = vcmp.gt.s32.totalorder %v1972, 3
    %v2590 = vrot.slane %v2585, 3
    %v2591 = vrot.slane %v2586, 2
    %v2592 = vsel %vm2131, %v2591, %v2590
    %v2594 = vsel %vm2587, %v2592, %v2439
    %v2595 = vpack.c.bf16 %v2594, %v2594
    %v2597 = vsel %vm1829, %v2595, 0
    %2599 = vmatprep.subr.bf16.mxu0 0
    %2600 = vmatpush1.bf16.msra.mxu0 0
    %2601 = vmatprep.subr.bf16.mxu0 0
    %2602 = vmatpush1.bf16.msra.mxu0 0
    %2603 = vmatprep.subr.bf16.mxu0 %v1969
    %2604 = vmatpush1.bf16.msra.mxu0 %v1968
    %2605 = vmatprep.subr.bf16.mxu0 %v1966
    %2606 = vmatpush1.bf16.msra.mxu0 %v1965
    %2607 = vmatprep.subr.bf16.mxu0 %v1963
    %2608 = vmatpush1.bf16.msra.mxu0 %v1962
    %2609 = vmatprep.subr.bf16.mxu0 %v1960
    %2610 = vmatpush1.bf16.msra.mxu0 %v1959
    %2611 = vmatprep.subr.bf16.mxu0 %v1957
    %2612 = vmatpush1.bf16.msra.mxu0 %v1956
    %2613 = vmatprep.subr.bf16.mxu0 %v1954
    %2614 = vmatpush1.bf16.msra.mxu0 %v1953
    %2615 = vmatprep.subr.bf16.mxu0 0
    %2616 = vmatpush2.bf16.msra.mxu0 0
    %2617 = vmatprep.subr.bf16.mxu0 0
    %2618 = vmatpush2.bf16.msra.mxu0 0
    %2619 = vmatprep.subr.bf16.mxu0 0
    %2620 = vmatpush2.bf16.msra.mxu0 0
    %2621 = vmatprep.subr.bf16.mxu0 0
    %2622 = vmatpush2.bf16.msra.mxu0 0
    %2623 = vmatprep.subr.bf16.mxu0 0
    %2624 = vmatpush2.bf16.msra.mxu0 0
    %2625 = vmatprep.subr.bf16.mxu0 0
    %2626 = vmatpush2.bf16.msra.mxu0 0
    %2627 = vmatprep.subr.bf16.mxu0 0
    %2628 = vmatpush2.bf16.msra.mxu0 0
    %2629 = vmatprep.subr.bf16.mxu0 0
    %2630 = vmatpush2.bf16.msra.mxu0 0
    %2631 = vmatprep.mubr.bf16.mxu0 0
    %2632 = vmatmul.mubr.bf16.gmra.mxu0 %v2597
    %v2633 = vpop.f32.mrf.mxu0
    %v2634 = vadd.f32 %v1977, %v2633
    %v2635 = vpop.f32.mrf.mxu0
    %v2636 = vadd.f32 %v1981, %v2635
    %v2637 = vpop.f32.mrf.mxu0
    %v2638 = vpop.f32.mrf.mxu0
    %2639 = vdwg.mxu0
    %2640 = vmatprep.subr.bf16.mxu0 0
    %2641 = vmatpush1.bf16.msra.mxu0 0
    %2642 = vmatprep.subr.bf16.mxu0 0
    %2643 = vmatpush1.bf16.msra.mxu0 0
    %2644 = vmatprep.subr.bf16.mxu0 0
    %2645 = vmatpush1.bf16.msra.mxu0 %v1970
    %2646 = vmatprep.subr.bf16.mxu0 0
    %2647 = vmatpush1.bf16.msra.mxu0 %v1967
    %2648 = vmatprep.subr.bf16.mxu0 0
    %2649 = vmatpush1.bf16.msra.mxu0 %v1964
    %2650 = vmatprep.subr.bf16.mxu0 0
    %2651 = vmatpush1.bf16.msra.mxu0 %v1961
    %2652 = vmatprep.subr.bf16.mxu0 0
    %2653 = vmatpush1.bf16.msra.mxu0 %v1958
    %2654 = vmatprep.subr.bf16.mxu0 0
    %2655 = vmatpush1.bf16.msra.mxu0 %v1955
    %2656 = vmatprep.subr.bf16.mxu0 0
    %2657 = vmatpush2.bf16.msra.mxu0 0
    %2658 = vmatprep.subr.bf16.mxu0 0
    %2659 = vmatpush2.bf16.msra.mxu0 0
    %2660 = vmatprep.subr.bf16.mxu0 0
    %2661 = vmatpush2.bf16.msra.mxu0 0
    %2662 = vmatprep.subr.bf16.mxu0 0
    %2663 = vmatpush2.bf16.msra.mxu0 0
    %2664 = vmatprep.subr.bf16.mxu0 0
    %2665 = vmatpush2.bf16.msra.mxu0 0
    %2666 = vmatprep.subr.bf16.mxu0 0
    %2667 = vmatpush2.bf16.msra.mxu0 0
    %2668 = vmatprep.subr.bf16.mxu0 0
    %2669 = vmatpush2.bf16.msra.mxu0 0
    %2670 = vmatprep.subr.bf16.mxu0 0
    %2671 = vmatpush2.bf16.msra.mxu0 0
    %2672 = vmatprep.mubr.bf16.mxu0 0
    %2673 = vmatmul.mubr.bf16.gmra.mxu0 %v2597
    %v2674 = vpop.f32.mrf.mxu0
    %v2675 = vadd.f32 %v1985, %v2674
    %v2676 = vpop.f32.mrf.mxu0
    %v2677 = vpop.f32.mrf.mxu0
    %v2678 = vpop.f32.mrf.mxu0
    %2679 = vdwg.mxu0
    %v2681 = vrot.slane %v2634, 4
    %v2682 = vrot.slane %v2634, 5
    %v2685 = vadd.f32 %v1868, %v2681
    %v2686 = vadd.f32 %v1872, %v2682
    %v2687 = vxor.u32 %v2685, 2147483648
    %v2688 = vxor.u32 %v2686, 2147483648
    %v2689 = vmul.f32 %v2687, 1.442695
    %v2690 = vpow.pop %v2689
    %v2691 = vmul.f32 %v2688, 1.442695
    %v2692 = vpow.pop %v2691
    %v2693 = vadd.f32 %v2690, 1.0
    %v2694 = vadd.f32 %v2692, 1.0
    %v2695 = vrcp.pop %v2693
    %v2696 = vmul.f32 1.0, %v2695
    %v2697 = vrcp.pop %v2694
    %v2698 = vmul.f32 1.0, %v2697
    %v2700 = vrot.slane %v2636, 4
    %v2701 = vrot.slane %v2636, 5
    %v2704 = vadd.f32 %v1870, %v2700
    %v2705 = vadd.f32 %v1874, %v2701
    %v2706 = vxor.u32 %v2704, 2147483648
    %v2707 = vxor.u32 %v2705, 2147483648
    %v2708 = vmul.f32 %v2706, 1.442695
    %v2709 = vpow.pop %v2708
    %v2710 = vmul.f32 %v2707, 1.442695
    %v2711 = vpow.pop %v2710
    %v2712 = vadd.f32 %v2709, 1.0
    %v2713 = vadd.f32 %v2711, 1.0
    %v2714 = vrcp.pop %v2712
    %v2715 = vmul.f32 1.0, %v2714
    %v2716 = vrcp.pop %v2713
    %v2717 = vmul.f32 1.0, %v2716
    %v2719 = vrot.slane %v2675, 4
    %v2720 = vrot.slane %v2675, 5
    %v2723 = vmul.f32 %v2696, %v2719
    %v2724 = vmul.f32 %v2698, %v2720
    %v2725 = vadd.f32 %v1911, %v2723
    %v2726 = vadd.f32 %v1914, %v2724
    %v2727 = vtanh.pop %v2725
    %v2728 = vtanh.pop %v2726
    %v2729 = vsub.f32 1.0, %v2715
    %v2730 = vsub.f32 1.0, %v2717
    %v2731 = vmul.f32 %v2729, %v2727
    %v2732 = vmul.f32 %v2730, %v2728
    %v2734 = vrot.slane %v2594, 4
    %v2735 = vrot.slane %v2594, 5
    %v2738 = vmul.f32 %v2715, %v2734
    %v2739 = vmul.f32 %v2717, %v2735
    %v2740 = vadd.f32 %v2731, %v2738
    %v2741 = vadd.f32 %v2732, %v2739
    %vm2742 = vcmp.gt.s32.totalorder %v1972, 4
    %v2745 = vrot.slane %v2740, 4
    %v2746 = vrot.slane %v2741, 3
    %v2747 = vsel %vm2131, %v2746, %v2745
    %v2749 = vsel %vm2742, %v2747, %v2594
    %v2750 = vpack.c.bf16 %v2749, %v2749
    %v2752 = vsel %vm1829, %v2750, 0
    %2754 = vmatprep.subr.bf16.mxu0 0
    %2755 = vmatpush1.bf16.msra.mxu0 0
    %2756 = vmatprep.subr.bf16.mxu0 0
    %2757 = vmatpush1.bf16.msra.mxu0 0
    %2758 = vmatprep.subr.bf16.mxu0 %v1969
    %2759 = vmatpush1.bf16.msra.mxu0 %v1968
    %2760 = vmatprep.subr.bf16.mxu0 %v1966
    %2761 = vmatpush1.bf16.msra.mxu0 %v1965
    %2762 = vmatprep.subr.bf16.mxu0 %v1963
    %2763 = vmatpush1.bf16.msra.mxu0 %v1962
    %2764 = vmatprep.subr.bf16.mxu0 %v1960
    %2765 = vmatpush1.bf16.msra.mxu0 %v1959
    %2766 = vmatprep.subr.bf16.mxu0 %v1957
    %2767 = vmatpush1.bf16.msra.mxu0 %v1956
    %2768 = vmatprep.subr.bf16.mxu0 %v1954
    %2769 = vmatpush1.bf16.msra.mxu0 %v1953
    %2770 = vmatprep.subr.bf16.mxu0 0
    %2771 = vmatpush2.bf16.msra.mxu0 0
    %2772 = vmatprep.subr.bf16.mxu0 0
    %2773 = vmatpush2.bf16.msra.mxu0 0
    %2774 = vmatprep.subr.bf16.mxu0 0
    %2775 = vmatpush2.bf16.msra.mxu0 0
    %2776 = vmatprep.subr.bf16.mxu0 0
    %2777 = vmatpush2.bf16.msra.mxu0 0
    %2778 = vmatprep.subr.bf16.mxu0 0
    %2779 = vmatpush2.bf16.msra.mxu0 0
    %2780 = vmatprep.subr.bf16.mxu0 0
    %2781 = vmatpush2.bf16.msra.mxu0 0
    %2782 = vmatprep.subr.bf16.mxu0 0
    %2783 = vmatpush2.bf16.msra.mxu0 0
    %2784 = vmatprep.subr.bf16.mxu0 0
    %2785 = vmatpush2.bf16.msra.mxu0 0
    %2786 = vmatprep.mubr.bf16.mxu0 0
    %2787 = vmatmul.mubr.bf16.gmra.mxu0 %v2752
    %v2788 = vpop.f32.mrf.mxu0
    %v2789 = vadd.f32 %v1977, %v2788
    %v2790 = vpop.f32.mrf.mxu0
    %v2791 = vadd.f32 %v1981, %v2790
    %v2792 = vpop.f32.mrf.mxu0
    %v2793 = vpop.f32.mrf.mxu0
    %2794 = vdwg.mxu0
    %2795 = vmatprep.subr.bf16.mxu0 0
    %2796 = vmatpush1.bf16.msra.mxu0 0
    %2797 = vmatprep.subr.bf16.mxu0 0
    %2798 = vmatpush1.bf16.msra.mxu0 0
    %2799 = vmatprep.subr.bf16.mxu0 0
    %2800 = vmatpush1.bf16.msra.mxu0 %v1970
    %2801 = vmatprep.subr.bf16.mxu0 0
    %2802 = vmatpush1.bf16.msra.mxu0 %v1967
    %2803 = vmatprep.subr.bf16.mxu0 0
    %2804 = vmatpush1.bf16.msra.mxu0 %v1964
    %2805 = vmatprep.subr.bf16.mxu0 0
    %2806 = vmatpush1.bf16.msra.mxu0 %v1961
    %2807 = vmatprep.subr.bf16.mxu0 0
    %2808 = vmatpush1.bf16.msra.mxu0 %v1958
    %2809 = vmatprep.subr.bf16.mxu0 0
    %2810 = vmatpush1.bf16.msra.mxu0 %v1955
    %2811 = vmatprep.subr.bf16.mxu0 0
    %2812 = vmatpush2.bf16.msra.mxu0 0
    %2813 = vmatprep.subr.bf16.mxu0 0
    %2814 = vmatpush2.bf16.msra.mxu0 0
    %2815 = vmatprep.subr.bf16.mxu0 0
    %2816 = vmatpush2.bf16.msra.mxu0 0
    %2817 = vmatprep.subr.bf16.mxu0 0
    %2818 = vmatpush2.bf16.msra.mxu0 0
    %2819 = vmatprep.subr.bf16.mxu0 0
    %2820 = vmatpush2.bf16.msra.mxu0 0
    %2821 = vmatprep.subr.bf16.mxu0 0
    %2822 = vmatpush2.bf16.msra.mxu0 0
    %2823 = vmatprep.subr.bf16.mxu0 0
    %2824 = vmatpush2.bf16.msra.mxu0 0
    %2825 = vmatprep.subr.bf16.mxu0 0
    %2826 = vmatpush2.bf16.msra.mxu0 0
    %2827 = vmatprep.mubr.bf16.mxu0 0
    %2828 = vmatmul.mubr.bf16.gmra.mxu0 %v2752
    %v2829 = vpop.f32.mrf.mxu0
    %v2830 = vadd.f32 %v1985, %v2829
    %v2831 = vpop.f32.mrf.mxu0
    %v2832 = vpop.f32.mrf.mxu0
    %v2833 = vpop.f32.mrf.mxu0
    %2834 = vdwg.mxu0
    %v2836 = vrot.slane %v2789, 3
    %v2837 = vrot.slane %v2789, 4
    %v2840 = vadd.f32 %v1868, %v2836
    %v2841 = vadd.f32 %v1872, %v2837
    %v2842 = vxor.u32 %v2840, 2147483648
    %v2843 = vxor.u32 %v2841, 2147483648
    %v2844 = vmul.f32 %v2842, 1.442695
    %v2845 = vpow.pop %v2844
    %v2846 = vmul.f32 %v2843, 1.442695
    %v2847 = vpow.pop %v2846
    %v2848 = vadd.f32 %v2845, 1.0
    %v2849 = vadd.f32 %v2847, 1.0
    %v2850 = vrcp.pop %v2848
    %v2851 = vmul.f32 1.0, %v2850
    %v2852 = vrcp.pop %v2849
    %v2853 = vmul.f32 1.0, %v2852
    %v2855 = vrot.slane %v2791, 3
    %v2856 = vrot.slane %v2791, 4
    %v2859 = vadd.f32 %v1870, %v2855
    %v2860 = vadd.f32 %v1874, %v2856
    %v2861 = vxor.u32 %v2859, 2147483648
    %v2862 = vxor.u32 %v2860, 2147483648
    %v2863 = vmul.f32 %v2861, 1.442695
    %v2864 = vpow.pop %v2863
    %v2865 = vmul.f32 %v2862, 1.442695
    %v2866 = vpow.pop %v2865
    %v2867 = vadd.f32 %v2864, 1.0
    %v2868 = vadd.f32 %v2866, 1.0
    %v2869 = vrcp.pop %v2867
    %v2870 = vmul.f32 1.0, %v2869
    %v2871 = vrcp.pop %v2868
    %v2872 = vmul.f32 1.0, %v2871
    %v2874 = vrot.slane %v2830, 3
    %v2875 = vrot.slane %v2830, 4
    %v2878 = vmul.f32 %v2851, %v2874
    %v2879 = vmul.f32 %v2853, %v2875
    %v2880 = vadd.f32 %v1911, %v2878
    %v2881 = vadd.f32 %v1914, %v2879
    %v2882 = vtanh.pop %v2880
    %v2883 = vtanh.pop %v2881
    %v2884 = vsub.f32 1.0, %v2870
    %v2885 = vsub.f32 1.0, %v2872
    %v2886 = vmul.f32 %v2884, %v2882
    %v2887 = vmul.f32 %v2885, %v2883
    %v2889 = vrot.slane %v2749, 3
    %v2890 = vrot.slane %v2749, 4
    %v2893 = vmul.f32 %v2870, %v2889
    %v2894 = vmul.f32 %v2872, %v2890
    %v2895 = vadd.f32 %v2886, %v2893
    %v2896 = vadd.f32 %v2887, %v2894
    %vm2897 = vcmp.gt.s32.totalorder %v1972, 5
    %v2900 = vrot.slane %v2895, 5
    %v2901 = vrot.slane %v2896, 4
    %v2902 = vsel %vm2131, %v2901, %v2900
    %v2904 = vsel %vm2897, %v2902, %v2749
    %v2905 = vpack.c.bf16 %v2904, %v2904
    %v2907 = vsel %vm1829, %v2905, 0
    %2909 = vmatprep.subr.bf16.mxu0 0
    %2910 = vmatpush1.bf16.msra.mxu0 0
    %2911 = vmatprep.subr.bf16.mxu0 0
    %2912 = vmatpush1.bf16.msra.mxu0 0
    %2913 = vmatprep.subr.bf16.mxu0 %v1969
    %2914 = vmatpush1.bf16.msra.mxu0 %v1968
    %2915 = vmatprep.subr.bf16.mxu0 %v1966
    %2916 = vmatpush1.bf16.msra.mxu0 %v1965
    %2917 = vmatprep.subr.bf16.mxu0 %v1963
    %2918 = vmatpush1.bf16.msra.mxu0 %v1962
    %2919 = vmatprep.subr.bf16.mxu0 %v1960
    %2920 = vmatpush1.bf16.msra.mxu0 %v1959
    %2921 = vmatprep.subr.bf16.mxu0 %v1957
    %2922 = vmatpush1.bf16.msra.mxu0 %v1956
    %2923 = vmatprep.subr.bf16.mxu0 %v1954
    %2924 = vmatpush1.bf16.msra.mxu0 %v1953
    %2925 = vmatprep.subr.bf16.mxu0 0
    %2926 = vmatpush2.bf16.msra.mxu0 0
    %2927 = vmatprep.subr.bf16.mxu0 0
    %2928 = vmatpush2.bf16.msra.mxu0 0
    %2929 = vmatprep.subr.bf16.mxu0 0
    %2930 = vmatpush2.bf16.msra.mxu0 0
    %2931 = vmatprep.subr.bf16.mxu0 0
    %2932 = vmatpush2.bf16.msra.mxu0 0
    %2933 = vmatprep.subr.bf16.mxu0 0
    %2934 = vmatpush2.bf16.msra.mxu0 0
    %2935 = vmatprep.subr.bf16.mxu0 0
    %2936 = vmatpush2.bf16.msra.mxu0 0
    %2937 = vmatprep.subr.bf16.mxu0 0
    %2938 = vmatpush2.bf16.msra.mxu0 0
    %2939 = vmatprep.subr.bf16.mxu0 0
    %2940 = vmatpush2.bf16.msra.mxu0 0
    %2941 = vmatprep.mubr.bf16.mxu0 0
    %2942 = vmatmul.mubr.bf16.gmra.mxu0 %v2907
    %v2943 = vpop.f32.mrf.mxu0
    %v2944 = vadd.f32 %v1977, %v2943
    %v2945 = vpop.f32.mrf.mxu0
    %v2946 = vadd.f32 %v1981, %v2945
    %v2947 = vpop.f32.mrf.mxu0
    %v2948 = vpop.f32.mrf.mxu0
    %2949 = vdwg.mxu0
    %2950 = vmatprep.subr.bf16.mxu0 0
    %2951 = vmatpush1.bf16.msra.mxu0 0
    %2952 = vmatprep.subr.bf16.mxu0 0
    %2953 = vmatpush1.bf16.msra.mxu0 0
    %2954 = vmatprep.subr.bf16.mxu0 0
    %2955 = vmatpush1.bf16.msra.mxu0 %v1970
    %2956 = vmatprep.subr.bf16.mxu0 0
    %2957 = vmatpush1.bf16.msra.mxu0 %v1967
    %2958 = vmatprep.subr.bf16.mxu0 0
    %2959 = vmatpush1.bf16.msra.mxu0 %v1964
    %2960 = vmatprep.subr.bf16.mxu0 0
    %2961 = vmatpush1.bf16.msra.mxu0 %v1961
    %2962 = vmatprep.subr.bf16.mxu0 0
    %2963 = vmatpush1.bf16.msra.mxu0 %v1958
    %2964 = vmatprep.subr.bf16.mxu0 0
    %2965 = vmatpush1.bf16.msra.mxu0 %v1955
    %2966 = vmatprep.subr.bf16.mxu0 0
    %2967 = vmatpush2.bf16.msra.mxu0 0
    %2968 = vmatprep.subr.bf16.mxu0 0
    %2969 = vmatpush2.bf16.msra.mxu0 0
    %2970 = vmatprep.subr.bf16.mxu0 0
    %2971 = vmatpush2.bf16.msra.mxu0 0
    %2972 = vmatprep.subr.bf16.mxu0 0
    %2973 = vmatpush2.bf16.msra.mxu0 0
    %2974 = vmatprep.subr.bf16.mxu0 0
    %2975 = vmatpush2.bf16.msra.mxu0 0
    %2976 = vmatprep.subr.bf16.mxu0 0
    %2977 = vmatpush2.bf16.msra.mxu0 0
    %2978 = vmatprep.subr.bf16.mxu0 0
    %2979 = vmatpush2.bf16.msra.mxu0 0
    %2980 = vmatprep.subr.bf16.mxu0 0
    %2981 = vmatpush2.bf16.msra.mxu0 0
    %2982 = vmatprep.mubr.bf16.mxu0 0
    %2983 = vmatmul.mubr.bf16.gmra.mxu0 %v2907
    %v2984 = vpop.f32.mrf.mxu0
    %v2985 = vadd.f32 %v1985, %v2984
    %v2986 = vpop.f32.mrf.mxu0
    %v2987 = vpop.f32.mrf.mxu0
    %v2988 = vpop.f32.mrf.mxu0
    %2989 = vdwg.mxu0
    %v2991 = vrot.slane %v2944, 2
    %v2992 = vrot.slane %v2944, 3
    %v2995 = vadd.f32 %v1868, %v2991
    %v2996 = vadd.f32 %v1872, %v2992
    %v2997 = vxor.u32 %v2995, 2147483648
    %v2998 = vxor.u32 %v2996, 2147483648
    %v2999 = vmul.f32 %v2997, 1.442695
    %v3000 = vpow.pop %v2999
    %v3001 = vmul.f32 %v2998, 1.442695
    %v3002 = vpow.pop %v3001
    %v3003 = vadd.f32 %v3000, 1.0
    %v3004 = vadd.f32 %v3002, 1.0
    %v3005 = vrcp.pop %v3003
    %v3006 = vmul.f32 1.0, %v3005
    %v3007 = vrcp.pop %v3004
    %v3008 = vmul.f32 1.0, %v3007
    %v3010 = vrot.slane %v2946, 2
    %v3011 = vrot.slane %v2946, 3
    %v3014 = vadd.f32 %v1870, %v3010
    %v3015 = vadd.f32 %v1874, %v3011
    %v3016 = vxor.u32 %v3014, 2147483648
    %v3017 = vxor.u32 %v3015, 2147483648
    %v3018 = vmul.f32 %v3016, 1.442695
    %v3019 = vpow.pop %v3018
    %v3020 = vmul.f32 %v3017, 1.442695
    %v3021 = vpow.pop %v3020
    %v3022 = vadd.f32 %v3019, 1.0
    %v3023 = vadd.f32 %v3021, 1.0
    %v3024 = vrcp.pop %v3022
    %v3025 = vmul.f32 1.0, %v3024
    %v3026 = vrcp.pop %v3023
    %v3027 = vmul.f32 1.0, %v3026
    %v3029 = vrot.slane %v2985, 2
    %v3030 = vrot.slane %v2985, 3
    %v3033 = vmul.f32 %v3006, %v3029
    %v3034 = vmul.f32 %v3008, %v3030
    %v3035 = vadd.f32 %v1911, %v3033
    %v3036 = vadd.f32 %v1914, %v3034
    %v3037 = vtanh.pop %v3035
    %v3038 = vtanh.pop %v3036
    %v3039 = vsub.f32 1.0, %v3025
    %v3040 = vsub.f32 1.0, %v3027
    %v3041 = vmul.f32 %v3039, %v3037
    %v3042 = vmul.f32 %v3040, %v3038
    %v3044 = vrot.slane %v2904, 2
    %v3045 = vrot.slane %v2904, 3
    %v3048 = vmul.f32 %v3025, %v3044
    %v3049 = vmul.f32 %v3027, %v3045
    %v3050 = vadd.f32 %v3041, %v3048
    %v3051 = vadd.f32 %v3042, %v3049
    %vm3052 = vcmp.gt.s32.totalorder %v1972, 6
    %v3055 = vrot.slane %v3050, 6
    %v3056 = vrot.slane %v3051, 5
    %v3057 = vsel %vm2131, %v3056, %v3055
    %v3059 = vsel %vm3052, %v3057, %v2904
    %v3060 = vpack.c.bf16 %v3059, %v3059
    %v3062 = vsel %vm1829, %v3060, 0
    %3064 = vmatprep.subr.bf16.mxu0 0
    %3065 = vmatpush1.bf16.msra.mxu0 0
    %3066 = vmatprep.subr.bf16.mxu0 0
    %3067 = vmatpush1.bf16.msra.mxu0 0
    %3068 = vmatprep.subr.bf16.mxu0 %v1969
    %3069 = vmatpush1.bf16.msra.mxu0 %v1968
    %3070 = vmatprep.subr.bf16.mxu0 %v1966
    %3071 = vmatpush1.bf16.msra.mxu0 %v1965
    %3072 = vmatprep.subr.bf16.mxu0 %v1963
    %3073 = vmatpush1.bf16.msra.mxu0 %v1962
    %3074 = vmatprep.subr.bf16.mxu0 %v1960
    %3075 = vmatpush1.bf16.msra.mxu0 %v1959
    %3076 = vmatprep.subr.bf16.mxu0 %v1957
    %3077 = vmatpush1.bf16.msra.mxu0 %v1956
    %3078 = vmatprep.subr.bf16.mxu0 %v1954
    %3079 = vmatpush1.bf16.msra.mxu0 %v1953
    %3080 = vmatprep.subr.bf16.mxu0 0
    %3081 = vmatpush2.bf16.msra.mxu0 0
    %3082 = vmatprep.subr.bf16.mxu0 0
    %3083 = vmatpush2.bf16.msra.mxu0 0
    %3084 = vmatprep.subr.bf16.mxu0 0
    %3085 = vmatpush2.bf16.msra.mxu0 0
    %3086 = vmatprep.subr.bf16.mxu0 0
    %3087 = vmatpush2.bf16.msra.mxu0 0
    %3088 = vmatprep.subr.bf16.mxu0 0
    %3089 = vmatpush2.bf16.msra.mxu0 0
    %3090 = vmatprep.subr.bf16.mxu0 0
    %3091 = vmatpush2.bf16.msra.mxu0 0
    %3092 = vmatprep.subr.bf16.mxu0 0
    %3093 = vmatpush2.bf16.msra.mxu0 0
    %3094 = vmatprep.subr.bf16.mxu0 0
    %3095 = vmatpush2.bf16.msra.mxu0 0
    %3096 = vmatprep.mubr.bf16.mxu0 0
    %3097 = vmatmul.mubr.bf16.gmra.mxu0 %v3062
    %v3098 = vpop.f32.mrf.mxu0
    %v3099 = vadd.f32 %v1977, %v3098
    %v3100 = vpop.f32.mrf.mxu0
    %v3101 = vadd.f32 %v1981, %v3100
    %v3102 = vpop.f32.mrf.mxu0
    %v3103 = vpop.f32.mrf.mxu0
    %3104 = vdwg.mxu0
    %3105 = vmatprep.subr.bf16.mxu0 0
    %3106 = vmatpush1.bf16.msra.mxu0 0
    %3107 = vmatprep.subr.bf16.mxu0 0
    %3108 = vmatpush1.bf16.msra.mxu0 0
    %3109 = vmatprep.subr.bf16.mxu0 0
    %3110 = vmatpush1.bf16.msra.mxu0 %v1970
    %3111 = vmatprep.subr.bf16.mxu0 0
    %3112 = vmatpush1.bf16.msra.mxu0 %v1967
    %3113 = vmatprep.subr.bf16.mxu0 0
    %3114 = vmatpush1.bf16.msra.mxu0 %v1964
    %3115 = vmatprep.subr.bf16.mxu0 0
    %3116 = vmatpush1.bf16.msra.mxu0 %v1961
    %3117 = vmatprep.subr.bf16.mxu0 0
    %3118 = vmatpush1.bf16.msra.mxu0 %v1958
    %3119 = vmatprep.subr.bf16.mxu0 0
    %3120 = vmatpush1.bf16.msra.mxu0 %v1955
    %3121 = vmatprep.subr.bf16.mxu0 0
    %3122 = vmatpush2.bf16.msra.mxu0 0
    %3123 = vmatprep.subr.bf16.mxu0 0
    %3124 = vmatpush2.bf16.msra.mxu0 0
    %3125 = vmatprep.subr.bf16.mxu0 0
    %3126 = vmatpush2.bf16.msra.mxu0 0
    %3127 = vmatprep.subr.bf16.mxu0 0
    %3128 = vmatpush2.bf16.msra.mxu0 0
    %3129 = vmatprep.subr.bf16.mxu0 0
    %3130 = vmatpush2.bf16.msra.mxu0 0
    %3131 = vmatprep.subr.bf16.mxu0 0
    %3132 = vmatpush2.bf16.msra.mxu0 0
    %3133 = vmatprep.subr.bf16.mxu0 0
    %3134 = vmatpush2.bf16.msra.mxu0 0
    %3135 = vmatprep.subr.bf16.mxu0 0
    %3136 = vmatpush2.bf16.msra.mxu0 0
    %3137 = vmatprep.mubr.bf16.mxu0 0
    %3138 = vmatmul.mubr.bf16.gmra.mxu0 %v3062
    %v3139 = vpop.f32.mrf.mxu0
    %v3140 = vadd.f32 %v1985, %v3139
    %v3141 = vpop.f32.mrf.mxu0
    %v3142 = vpop.f32.mrf.mxu0
    %v3143 = vpop.f32.mrf.mxu0
    %3144 = vdwg.mxu0
    %v3146 = vrot.slane %v3099, 1
    %v3147 = vrot.slane %v3099, 2
    %v3150 = vadd.f32 %v1868, %v3146
    %v3151 = vadd.f32 %v1872, %v3147
    %v3152 = vxor.u32 %v3150, 2147483648
    %v3153 = vxor.u32 %v3151, 2147483648
    %v3154 = vmul.f32 %v3152, 1.442695
    %v3155 = vpow.pop %v3154
    %v3156 = vmul.f32 %v3153, 1.442695
    %v3157 = vpow.pop %v3156
    %v3158 = vadd.f32 %v3155, 1.0
    %v3159 = vadd.f32 %v3157, 1.0
    %v3160 = vrcp.pop %v3158
    %v3161 = vmul.f32 1.0, %v3160
    %v3162 = vrcp.pop %v3159
    %v3163 = vmul.f32 1.0, %v3162
    %v3165 = vrot.slane %v3101, 1
    %v3166 = vrot.slane %v3101, 2
    %v3169 = vadd.f32 %v1870, %v3165
    %v3170 = vadd.f32 %v1874, %v3166
    %v3171 = vxor.u32 %v3169, 2147483648
    %v3172 = vxor.u32 %v3170, 2147483648
    %v3173 = vmul.f32 %v3171, 1.442695
    %v3174 = vpow.pop %v3173
    %v3175 = vmul.f32 %v3172, 1.442695
    %v3176 = vpow.pop %v3175
    %v3177 = vadd.f32 %v3174, 1.0
    %v3178 = vadd.f32 %v3176, 1.0
    %v3179 = vrcp.pop %v3177
    %v3180 = vmul.f32 1.0, %v3179
    %v3181 = vrcp.pop %v3178
    %v3182 = vmul.f32 1.0, %v3181
    %v3184 = vrot.slane %v3140, 1
    %v3185 = vrot.slane %v3140, 2
    %v3188 = vmul.f32 %v3161, %v3184
    %v3189 = vmul.f32 %v3163, %v3185
    %v3190 = vadd.f32 %v1911, %v3188
    %v3191 = vadd.f32 %v1914, %v3189
    %v3192 = vtanh.pop %v3190
    %v3193 = vtanh.pop %v3191
    %v3194 = vsub.f32 1.0, %v3180
    %v3195 = vsub.f32 1.0, %v3182
    %v3196 = vmul.f32 %v3194, %v3192
    %v3197 = vmul.f32 %v3195, %v3193
    %v3199 = vrot.slane %v3059, 1
    %v3200 = vrot.slane %v3059, 2
    %v3203 = vmul.f32 %v3180, %v3199
    %v3204 = vmul.f32 %v3182, %v3200
    %v3205 = vadd.f32 %v3196, %v3203
    %v3206 = vadd.f32 %v3197, %v3204
    %vm3207 = vcmp.gt.s32.totalorder %v1972, 7
    %v3210 = vrot.slane %v3205, 7
    %v3211 = vrot.slane %v3206, 6
    %v3212 = vsel %vm2131, %v3211, %v3210
    %v3214 = vsel %vm3207, %v3212, %v3059
    %v3215 = vld [vmem:[#allocation25] sm:$0x1]
    %v3217 = vlaneseq
    %v3218 = vshrl.u32 %v3217, 7
    %v3219 = vsub.s32 0, %v3218
    %v3220 = vrot.slane %v3215, %v3219
    %v3222 = vmul.f32 %v3214, %v3220
    %3224 = vrot.lane.b32.xlu0 %v3222, 96
    %v3225 = vpop.permute.xlu0 %3224
    %v3227 = vadd.f32 %v3222, %v3225
    %3228 = vrot.lane.b32.xlu0 %v3222, 64
    %v3229 = vpop.permute.xlu0 %3228
    %v3231 = vadd.f32 %v3227, %v3229
    %v3232 = vld [vmem:[#allocation26] sm:$0xff]
    %v3233 = vld [vmem:[#allocation26 + $0x8] sm:$0xff]
    %v3234 = vld [vmem:[#allocation26 + $0x10] sm:$0xff]
    %v3235 = vld [vmem:[#allocation26 + $0x18] sm:$0xff]
    %v3236 = vpack.c.bf16 %v3231, %v3231
    %v3237 = vpack.c.bf16 %v3233, %v3232
    %v3238 = vpack.c.bf16 %v3235, %v3234
    %v3239 = vld [vmem:[#allocation28] sm:$0x1]
    %v3241 = vlaneseq
    %v3242 = vshrl.u32 %v3241, 7
    %v3243 = vsub.s32 0, %v3242
    %v3244 = vrot.slane %v3239, %v3243
    %v3247 = vsel %vm811, %v3236, 0
    %3249 = vmatprep.subr.bf16.mxu0 0
    %3250 = vmatpush1.bf16.msra.mxu0 0
    %3251 = vmatprep.subr.bf16.mxu0 0
    %3252 = vmatpush1.bf16.msra.mxu0 0
    %3253 = vmatprep.subr.bf16.mxu0 0
    %3254 = vmatpush1.bf16.msra.mxu0 0
    %3255 = vmatprep.subr.bf16.mxu0 0
    %3256 = vmatpush1.bf16.msra.mxu0 0
    %3257 = vmatprep.subr.bf16.mxu0 0
    %3258 = vmatpush1.bf16.msra.mxu0 0
    %3259 = vmatprep.subr.bf16.mxu0 0
    %3260 = vmatpush1.bf16.msra.mxu0 0
    %3261 = vmatprep.subr.bf16.mxu0 0
    %3262 = vmatpush1.bf16.msra.mxu0 %v3238
    %3263 = vmatprep.subr.bf16.mxu0 0
    %3264 = vmatpush1.bf16.msra.mxu0 %v3237
    %3265 = vmatprep.subr.bf16.mxu0 0
    %3266 = vmatpush2.bf16.msra.mxu0 0
    %3267 = vmatprep.subr.bf16.mxu0 0
    %3268 = vmatpush2.bf16.msra.mxu0 0
    %3269 = vmatprep.subr.bf16.mxu0 0
    %3270 = vmatpush2.bf16.msra.mxu0 0
    %3271 = vmatprep.subr.bf16.mxu0 0
    %3272 = vmatpush2.bf16.msra.mxu0 0
    %3273 = vmatprep.subr.bf16.mxu0 0
    %3274 = vmatpush2.bf16.msra.mxu0 0
    %3275 = vmatprep.subr.bf16.mxu0 0
    %3276 = vmatpush2.bf16.msra.mxu0 0
    %3277 = vmatprep.subr.bf16.mxu0 0
    %3278 = vmatpush2.bf16.msra.mxu0 0
    %3279 = vmatprep.subr.bf16.mxu0 0
    %3280 = vmatpush2.bf16.msra.mxu0 0
    %3281 = vmatprep.mubr.bf16.mxu0 0
    %3282 = vmatmul.mubr.bf16.gmra.mxu0 %v3247
    %v3283 = vpop.f32.mrf.mxu0
    %v3284 = vadd.f32 %v3244, %v3283
    %v3285 = vpop.f32.mrf.mxu0
    %v3286 = vpop.f32.mrf.mxu0
    %v3287 = vpop.f32.mrf.mxu0
    %3288 = vdwg.mxu0
    %v3289 = vld [vmem:[%s57] sm:$0x3]
    %v3290 = vmul.f32 %v3284, 0.5
    %v3291 = vmul.f32 %v3290, 1.442695
    %v3292 = vpow.pop %v3291
    %3294 = vrot.lane.b32.xlu0 %v3292, 96
    %v3295 = vpop.permute.xlu0 %3294
    %v3297 = vmul.f32 %v3289, %v3295
    %v3298 = vadd.f32 %v3284, %v3297
    %3300 = vrot.lane.b32.xlu0 %v3298, 64
    %v3301 = vpop.permute.xlu0 %3300
    %v3303 = vsel %vm564, %v3284, %v3301
    %vm3304 = vcmask 779264
    %3305 = vst.msk [vmem:[%s77] sm:$0x3] %vm3304, %v3303
    %v3306 = vld [vmem:[#allocation29] sm:$0xff]
    %v3307 = vld [vmem:[#allocation29 + $0x8] sm:$0xff]
    %v3308 = vld [vmem:[#allocation29 + $0x10] sm:$0xff]
    %v3309 = vld [vmem:[#allocation29 + $0x18] sm:$0xff]
    %v3310 = vpack.c.bf16 %v3307, %v3306
    %v3311 = vpack.c.bf16 %v3309, %v3308
    %v3312 = vld [vmem:[#allocation32] sm:$0x1]
    %v3314 = vlaneseq
    %v3315 = vshrl.u32 %v3314, 7
    %v3316 = vsub.s32 0, %v3315
    %v3317 = vrot.slane %v3312, %v3316
    %3319 = vmatprep.subr.bf16.mxu0 0
    %3320 = vmatpush1.bf16.msra.mxu0 0
    %3321 = vmatprep.subr.bf16.mxu0 0
    %3322 = vmatpush1.bf16.msra.mxu0 0
    %3323 = vmatprep.subr.bf16.mxu0 0
    %3324 = vmatpush1.bf16.msra.mxu0 0
    %3325 = vmatprep.subr.bf16.mxu0 0
    %3326 = vmatpush1.bf16.msra.mxu0 0
    %3327 = vmatprep.subr.bf16.mxu0 0
    %3328 = vmatpush1.bf16.msra.mxu0 0
    %3329 = vmatprep.subr.bf16.mxu0 0
    %3330 = vmatpush1.bf16.msra.mxu0 0
    %3331 = vmatprep.subr.bf16.mxu0 0
    %3332 = vmatpush1.bf16.msra.mxu0 %v3311
    %3333 = vmatprep.subr.bf16.mxu0 0
    %3334 = vmatpush1.bf16.msra.mxu0 %v3310
    %3335 = vmatprep.subr.bf16.mxu0 0
    %3336 = vmatpush2.bf16.msra.mxu0 0
    %3337 = vmatprep.subr.bf16.mxu0 0
    %3338 = vmatpush2.bf16.msra.mxu0 0
    %3339 = vmatprep.subr.bf16.mxu0 0
    %3340 = vmatpush2.bf16.msra.mxu0 0
    %3341 = vmatprep.subr.bf16.mxu0 0
    %3342 = vmatpush2.bf16.msra.mxu0 0
    %3343 = vmatprep.subr.bf16.mxu0 0
    %3344 = vmatpush2.bf16.msra.mxu0 0
    %3345 = vmatprep.subr.bf16.mxu0 0
    %3346 = vmatpush2.bf16.msra.mxu0 0
    %3347 = vmatprep.subr.bf16.mxu0 0
    %3348 = vmatpush2.bf16.msra.mxu0 0
    %3349 = vmatprep.subr.bf16.mxu0 0
    %3350 = vmatpush2.bf16.msra.mxu0 0
    %3351 = vmatprep.mubr.bf16.mxu0 0
    %3352 = vmatmul.mubr.bf16.gmra.mxu0 %v1150
    %v3353 = vpop.f32.mrf.mxu0
    %v3354 = vadd.f32 %v3317, %v3353
    %v3355 = vpop.f32.mrf.mxu0
    %v3356 = vpop.f32.mrf.mxu0
    %v3357 = vadd.f32 %v3317, %v3356
    %v3358 = vpop.f32.mrf.mxu0
    %3359 = vdwg.mxu0
    %v3360 = vld [vmem:[#allocation31] sm:$0xff]
    %v3361 = vld [vmem:[#allocation31 + $0x8] sm:$0xff]
    %v3362 = vld [vmem:[#allocation31 + $0x10] sm:$0xff]
    %v3363 = vld [vmem:[#allocation31 + $0x18] sm:$0xff]
    %v3364 = vpack.c.bf16 %v3361, %v3360
    %v3365 = vpack.c.bf16 %v3363, %v3362
    %v3366 = vld [vmem:[#allocation34] sm:$0x1]
    %v3367 = vld [vmem:[%s37] sm:$0x3]
    %v3368 = vpack.c.bf16 %v3298, %v3298
    %v3370 = vlaneseq
    %v3371 = vshrl.u32 %v3370, 7
    %v3372 = vsub.s32 0, %v3371
    %v3373 = vrot.slane %v3366, %v3372
    %v3376 = vsel %vm811, %v3368, 0
    %3378 = vmatprep.subr.bf16.mxu0 0
    %3379 = vmatpush1.bf16.msra.mxu0 0
    %3380 = vmatprep.subr.bf16.mxu0 0
    %3381 = vmatpush1.bf16.msra.mxu0 0
    %3382 = vmatprep.subr.bf16.mxu0 0
    %3383 = vmatpush1.bf16.msra.mxu0 0
    %3384 = vmatprep.subr.bf16.mxu0 0
    %3385 = vmatpush1.bf16.msra.mxu0 0
    %3386 = vmatprep.subr.bf16.mxu0 0
    %3387 = vmatpush1.bf16.msra.mxu0 0
    %3388 = vmatprep.subr.bf16.mxu0 0
    %3389 = vmatpush1.bf16.msra.mxu0 0
    %3390 = vmatprep.subr.bf16.mxu0 0
    %3391 = vmatpush1.bf16.msra.mxu0 %v3365
    %3392 = vmatprep.subr.bf16.mxu0 0
    %3393 = vmatpush1.bf16.msra.mxu0 %v3364
    %3394 = vmatprep.subr.bf16.mxu0 0
    %3395 = vmatpush2.bf16.msra.mxu0 0
    %3396 = vmatprep.subr.bf16.mxu0 0
    %3397 = vmatpush2.bf16.msra.mxu0 0
    %3398 = vmatprep.subr.bf16.mxu0 0
    %3399 = vmatpush2.bf16.msra.mxu0 0
    %3400 = vmatprep.subr.bf16.mxu0 0
    %3401 = vmatpush2.bf16.msra.mxu0 0
    %3402 = vmatprep.subr.bf16.mxu0 0
    %3403 = vmatpush2.bf16.msra.mxu0 0
    %3404 = vmatprep.subr.bf16.mxu0 0
    %3405 = vmatpush2.bf16.msra.mxu0 0
    %3406 = vmatprep.subr.bf16.mxu0 0
    %3407 = vmatpush2.bf16.msra.mxu0 0
    %3408 = vmatprep.subr.bf16.mxu0 0
    %3409 = vmatpush2.bf16.msra.mxu0 0
    %3410 = vmatprep.mubr.bf16.mxu0 0
    %3411 = vmatmul.mubr.bf16.gmra.mxu0 %v3376
    %v3412 = vpop.f32.mrf.mxu0
    %v3413 = vadd.f32 %v3373, %v3412
    %v3414 = vpop.f32.mrf.mxu0
    %v3415 = vpop.f32.mrf.mxu0
    %v3416 = vpop.f32.mrf.mxu0
    %3417 = vdwg.mxu0
    %v3418 = vadd.f32 %v3317, %v3413
    %v3419 = vxor.u32 %v3418, 2147483648
    %v3420 = vmul.f32 %v3419, 1.442695
    %v3421 = vpow.pop %v3420
    %v3422 = vadd.f32 %v3421, 1.0
    %v3423 = vrcp.pop %v3422
    %v3424 = vmul.f32 1.0, %v3423
    %3426 = vrot.lane.b32.xlu0 %v3413, 64
    %v3427 = vpop.permute.xlu0 %3426
    %v3429 = vmul.f32 %v3424, %v3427
    %3431 = vrot.lane.b32.xlu0 %v3429, 64
    %v3432 = vpop.permute.xlu0 %3431
    %v3434 = vadd.f32 %v3317, %v3432
    %v3435 = vtanh.pop %v3434
    %v3436 = vsub.f32 1.0, %v3424
    %3438 = vrot.lane.b32.xlu0 %v3435, 96
    %v3439 = vpop.permute.xlu0 %3438
    %v3441 = vmul.f32 %v3436, %v3439
    %3442 = vrot.lane.b32.xlu0 %v3298, 32
    %v3443 = vpop.permute.xlu0 %3442
    %v3445 = vmul.f32 %v3424, %v3443
    %v3446 = vadd.f32 %v3441, %v3445
    %vm3447 = vcmp.gt.s32.totalorder %v3367, 0
    %v3448 = vsel %vm3447, 1, 0
    %3449 = vset.pattern.permute.xlu0 0
    %3450 = vperm.xlu0 %3449, %v3448
    %v3451 = vpop.permute.xlu0 %3450
    %vm3452 = vcmp.eq.s32.totalorder %v3451, 1
    %v3453 = vsel %vm3452, %v3446, %v3443
    %v3454 = vsel %vm3452, %v3446, 0.0
    %v3455 = vpack.c.bf16 %v3453, %v3453
    %3457 = vrot.lane.b32.xlu0 %v3455, 96
    %v3458 = vpop.permute.xlu0 %3457
    %v3460 = vsel %vm811, %v3458, 0
    %3462 = vmatprep.subr.bf16.mxu0 0
    %3463 = vmatpush1.bf16.msra.mxu0 0
    %3464 = vmatprep.subr.bf16.mxu0 0
    %3465 = vmatpush1.bf16.msra.mxu0 0
    %3466 = vmatprep.subr.bf16.mxu0 0
    %3467 = vmatpush1.bf16.msra.mxu0 0
    %3468 = vmatprep.subr.bf16.mxu0 0
    %3469 = vmatpush1.bf16.msra.mxu0 0
    %3470 = vmatprep.subr.bf16.mxu0 0
    %3471 = vmatpush1.bf16.msra.mxu0 0
    %3472 = vmatprep.subr.bf16.mxu0 0
    %3473 = vmatpush1.bf16.msra.mxu0 0
    %3474 = vmatprep.subr.bf16.mxu0 0
    %3475 = vmatpush1.bf16.msra.mxu0 %v3365
    %3476 = vmatprep.subr.bf16.mxu0 0
    %3477 = vmatpush1.bf16.msra.mxu0 %v3364
    %3478 = vmatprep.subr.bf16.mxu0 0
    %3479 = vmatpush2.bf16.msra.mxu0 0
    %3480 = vmatprep.subr.bf16.mxu0 0
    %3481 = vmatpush2.bf16.msra.mxu0 0
    %3482 = vmatprep.subr.bf16.mxu0 0
    %3483 = vmatpush2.bf16.msra.mxu0 0
    %3484 = vmatprep.subr.bf16.mxu0 0
    %3485 = vmatpush2.bf16.msra.mxu0 0
    %3486 = vmatprep.subr.bf16.mxu0 0
    %3487 = vmatpush2.bf16.msra.mxu0 0
    %3488 = vmatprep.subr.bf16.mxu0 0
    %3489 = vmatpush2.bf16.msra.mxu0 0
    %3490 = vmatprep.subr.bf16.mxu0 0
    %3491 = vmatpush2.bf16.msra.mxu0 0
    %3492 = vmatprep.subr.bf16.mxu0 0
    %3493 = vmatpush2.bf16.msra.mxu0 0
    %3494 = vmatprep.mubr.bf16.mxu0 0
    %3495 = vmatmul.mubr.bf16.gmra.mxu0 %v3460
    %v3496 = vpop.f32.mrf.mxu0
    %v3497 = vadd.f32 %v3373, %v3496
    %v3498 = vpop.f32.mrf.mxu0
    %v3499 = vpop.f32.mrf.mxu0
    %v3500 = vpop.f32.mrf.mxu0
    %3501 = vdwg.mxu0
    %v3503 = vrot.slane %v3497, 1
    %v3506 = vadd.f32 %v3354, %v3497
    %v3507 = vadd.f32 %v3357, %v3503
    %v3508 = vxor.u32 %v3506, 2147483648
    %v3509 = vxor.u32 %v3507, 2147483648
    %v3510 = vmul.f32 %v3508, 1.442695
    %v3511 = vpow.pop %v3510
    %v3512 = vmul.f32 %v3509, 1.442695
    %v3513 = vpow.pop %v3512
    %v3514 = vadd.f32 %v3511, 1.0
    %v3515 = vadd.f32 %v3513, 1.0
    %v3516 = vrcp.pop %v3514
    %v3517 = vmul.f32 1.0, %v3516
    %v3518 = vrcp.pop %v3515
    %v3519 = vmul.f32 1.0, %v3518
    %3520 = vrot.lane.b32.xlu0 %v3497, 64
    %v3521 = vpop.permute.xlu0 %3520
    %3522 = vrot.lane.b32.xlu0 %v3503, 64
    %v3523 = vpop.permute.xlu0 %3522
    %v3526 = vmul.f32 %v3517, %v3521
    %v3527 = vmul.f32 %v3519, %v3523
    %3530 = vrot.lane.b32.xlu0 %v3526, 64
    %v3531 = vpop.permute.xlu0 %3530
    %3532 = vrot.lane.b32.xlu0 %v3527, 64
    %v3533 = vpop.permute.xlu0 %3532
    %v3536 = vadd.f32 %v3354, %v3531
    %v3537 = vadd.f32 %v3357, %v3533
    %v3538 = vtanh.pop %v3536
    %v3539 = vtanh.pop %v3537
    %v3540 = vsub.f32 1.0, %v3517
    %v3541 = vsub.f32 1.0, %v3519
    %3544 = vrot.lane.b32.xlu0 %v3538, 96
    %v3545 = vpop.permute.xlu0 %3544
    %3546 = vrot.lane.b32.xlu0 %v3539, 96
    %v3547 = vpop.permute.xlu0 %3546
    %v3550 = vmul.f32 %v3540, %v3545
    %v3551 = vmul.f32 %v3541, %v3547
    %v3553 = vrot.slane %v3453, 1
    %v3556 = vmul.f32 %v3517, %v3453
    %v3557 = vmul.f32 %v3519, %v3553
    %v3558 = vadd.f32 %v3550, %v3556
    %v3559 = vadd.f32 %v3551, %v3557
    %vm3560 = vcmp.gt.s32.totalorder %v3367, 1
    %v3561 = vsel %vm3560, 1, 0
    %3562 = vset.pattern.permute.xlu0 0
    %3563 = vperm.xlu0 %3562, %v3561
    %v3564 = vpop.permute.xlu0 %3563
    %vm3565 = vcmp.eq.s32.totalorder %v3564, 1
    %v3568 = vrot.slane %v3559, 7
    %v3569 = vsel %vm2131, %v3568, %v3558
    %3570 = vrot.lane.b32.xlu0 %v3569, 96
    %v3571 = vpop.permute.xlu0 %3570
    %3573 = vrot.lane.b32.xlu0 %v3453, 96
    %v3574 = vpop.permute.xlu0 %3573
    %v3576 = vsel %vm3565, %v3571, %v3574
    %v3577 = vsel %vm3565, %v3571, 0.0
    %v3578 = vpack.c.bf16 %v3576, %v3576
    %v3580 = vsel %vm811, %v3578, 0
    %3582 = vmatprep.subr.bf16.mxu0 0
    %3583 = vmatpush1.bf16.msra.mxu0 0
    %3584 = vmatprep.subr.bf16.mxu0 0
    %3585 = vmatpush1.bf16.msra.mxu0 0
    %3586 = vmatprep.subr.bf16.mxu0 0
    %3587 = vmatpush1.bf16.msra.mxu0 0
    %3588 = vmatprep.subr.bf16.mxu0 0
    %3589 = vmatpush1.bf16.msra.mxu0 0
    %3590 = vmatprep.subr.bf16.mxu0 0
    %3591 = vmatpush1.bf16.msra.mxu0 0
    %3592 = vmatprep.subr.bf16.mxu0 0
    %3593 = vmatpush1.bf16.msra.mxu0 0
    %3594 = vmatprep.subr.bf16.mxu0 0
    %3595 = vmatpush1.bf16.msra.mxu0 %v3365
    %3596 = vmatprep.subr.bf16.mxu0 0
    %3597 = vmatpush1.bf16.msra.mxu0 %v3364
    %3598 = vmatprep.subr.bf16.mxu0 0
    %3599 = vmatpush2.bf16.msra.mxu0 0
    %3600 = vmatprep.subr.bf16.mxu0 0
    %3601 = vmatpush2.bf16.msra.mxu0 0
    %3602 = vmatprep.subr.bf16.mxu0 0
    %3603 = vmatpush2.bf16.msra.mxu0 0
    %3604 = vmatprep.subr.bf16.mxu0 0
    %3605 = vmatpush2.bf16.msra.mxu0 0
    %3606 = vmatprep.subr.bf16.mxu0 0
    %3607 = vmatpush2.bf16.msra.mxu0 0
    %3608 = vmatprep.subr.bf16.mxu0 0
    %3609 = vmatpush2.bf16.msra.mxu0 0
    %3610 = vmatprep.subr.bf16.mxu0 0
    %3611 = vmatpush2.bf16.msra.mxu0 0
    %3612 = vmatprep.subr.bf16.mxu0 0
    %3613 = vmatpush2.bf16.msra.mxu0 0
    %3614 = vmatprep.mubr.bf16.mxu0 0
    %3615 = vmatmul.mubr.bf16.gmra.mxu0 %v3580
    %v3616 = vpop.f32.mrf.mxu0
    %v3617 = vadd.f32 %v3373, %v3616
    %v3618 = vpop.f32.mrf.mxu0
    %v3619 = vpop.f32.mrf.mxu0
    %v3620 = vpop.f32.mrf.mxu0
    %3621 = vdwg.mxu0
    %v3623 = vrot.slane %v3617, 7
    %v3626 = vadd.f32 %v3354, %v3623
    %v3627 = vadd.f32 %v3357, %v3617
    %v3628 = vxor.u32 %v3626, 2147483648
    %v3629 = vxor.u32 %v3627, 2147483648
    %v3630 = vmul.f32 %v3628, 1.442695
    %v3631 = vpow.pop %v3630
    %v3632 = vmul.f32 %v3629, 1.442695
    %v3633 = vpow.pop %v3632
    %v3634 = vadd.f32 %v3631, 1.0
    %v3635 = vadd.f32 %v3633, 1.0
    %v3636 = vrcp.pop %v3634
    %v3637 = vmul.f32 1.0, %v3636
    %v3638 = vrcp.pop %v3635
    %v3639 = vmul.f32 1.0, %v3638
    %3640 = vrot.lane.b32.xlu0 %v3623, 64
    %v3641 = vpop.permute.xlu0 %3640
    %3642 = vrot.lane.b32.xlu0 %v3617, 64
    %v3643 = vpop.permute.xlu0 %3642
    %v3646 = vmul.f32 %v3637, %v3641
    %v3647 = vmul.f32 %v3639, %v3643
    %3650 = vrot.lane.b32.xlu0 %v3646, 64
    %v3651 = vpop.permute.xlu0 %3650
    %3652 = vrot.lane.b32.xlu0 %v3647, 64
    %v3653 = vpop.permute.xlu0 %3652
    %v3656 = vadd.f32 %v3354, %v3651
    %v3657 = vadd.f32 %v3357, %v3653
    %v3658 = vtanh.pop %v3656
    %v3659 = vtanh.pop %v3657
    %v3660 = vsub.f32 1.0, %v3637
    %v3661 = vsub.f32 1.0, %v3639
    %3664 = vrot.lane.b32.xlu0 %v3658, 96
    %v3665 = vpop.permute.xlu0 %3664
    %3666 = vrot.lane.b32.xlu0 %v3659, 96
    %v3667 = vpop.permute.xlu0 %3666
    %v3670 = vmul.f32 %v3660, %v3665
    %v3671 = vmul.f32 %v3661, %v3667
    %v3673 = vrot.slane %v3576, 7
    %3674 = vrot.lane.b32.xlu0 %v3673, 32
    %v3675 = vpop.permute.xlu0 %3674
    %3676 = vrot.lane.b32.xlu0 %v3576, 32
    %v3677 = vpop.permute.xlu0 %3676
    %v3680 = vmul.f32 %v3637, %v3675
    %v3681 = vmul.f32 %v3639, %v3677
    %v3682 = vadd.f32 %v3670, %v3680
    %v3683 = vadd.f32 %v3671, %v3681
    %vm3684 = vcmp.gt.s32.totalorder %v3367, 2
    %v3685 = vsel %vm3684, 1, 0
    %3686 = vset.pattern.permute.xlu0 0
    %3687 = vperm.xlu0 %3686, %v3685
    %v3688 = vpop.permute.xlu0 %3687
    %vm3689 = vcmp.eq.s32.totalorder %v3688, 1
    %v3692 = vrot.slane %v3682, 1
    %v3693 = vsel %vm2131, %v3683, %v3692
    %3694 = vrot.lane.b32.xlu0 %v3693, 96
    %v3695 = vpop.permute.xlu0 %3694
    %v3697 = vsel %vm3689, %v3695, %v3576
    %v3698 = vsel %vm3689, %v3695, 0.0
    %v3699 = vpack.c.bf16 %v3697, %v3697
    %v3701 = vsel %vm811, %v3699, 0
    %3703 = vmatprep.subr.bf16.mxu0 0
    %3704 = vmatpush1.bf16.msra.mxu0 0
    %3705 = vmatprep.subr.bf16.mxu0 0
    %3706 = vmatpush1.bf16.msra.mxu0 0
    %3707 = vmatprep.subr.bf16.mxu0 0
    %3708 = vmatpush1.bf16.msra.mxu0 0
    %3709 = vmatprep.subr.bf16.mxu0 0
    %3710 = vmatpush1.bf16.msra.mxu0 0
    %3711 = vmatprep.subr.bf16.mxu0 0
    %3712 = vmatpush1.bf16.msra.mxu0 0
    %3713 = vmatprep.subr.bf16.mxu0 0
    %3714 = vmatpush1.bf16.msra.mxu0 0
    %3715 = vmatprep.subr.bf16.mxu0 0
    %3716 = vmatpush1.bf16.msra.mxu0 %v3365
    %3717 = vmatprep.subr.bf16.mxu0 0
    %3718 = vmatpush1.bf16.msra.mxu0 %v3364
    %3719 = vmatprep.subr.bf16.mxu0 0
    %3720 = vmatpush2.bf16.msra.mxu0 0
    %3721 = vmatprep.subr.bf16.mxu0 0
    %3722 = vmatpush2.bf16.msra.mxu0 0
    %3723 = vmatprep.subr.bf16.mxu0 0
    %3724 = vmatpush2.bf16.msra.mxu0 0
    %3725 = vmatprep.subr.bf16.mxu0 0
    %3726 = vmatpush2.bf16.msra.mxu0 0
    %3727 = vmatprep.subr.bf16.mxu0 0
    %3728 = vmatpush2.bf16.msra.mxu0 0
    %3729 = vmatprep.subr.bf16.mxu0 0
    %3730 = vmatpush2.bf16.msra.mxu0 0
    %3731 = vmatprep.subr.bf16.mxu0 0
    %3732 = vmatpush2.bf16.msra.mxu0 0
    %3733 = vmatprep.subr.bf16.mxu0 0
    %3734 = vmatpush2.bf16.msra.mxu0 0
    %3735 = vmatprep.mubr.bf16.mxu0 0
    %3736 = vmatmul.mubr.bf16.gmra.mxu0 %v3701
    %v3737 = vpop.f32.mrf.mxu0
    %v3738 = vadd.f32 %v3373, %v3737
    %v3739 = vpop.f32.mrf.mxu0
    %v3740 = vpop.f32.mrf.mxu0
    %v3741 = vpop.f32.mrf.mxu0
    %3742 = vdwg.mxu0
    %v3744 = vrot.slane %v3738, 6
    %v3745 = vrot.slane %v3738, 7
    %v3748 = vadd.f32 %v3354, %v3744
    %v3749 = vadd.f32 %v3357, %v3745
    %v3750 = vxor.u32 %v3748, 2147483648
    %v3751 = vxor.u32 %v3749, 2147483648
    %v3752 = vmul.f32 %v3750, 1.442695
    %v3753 = vpow.pop %v3752
    %v3754 = vmul.f32 %v3751, 1.442695
    %v3755 = vpow.pop %v3754
    %v3756 = vadd.f32 %v3753, 1.0
    %v3757 = vadd.f32 %v3755, 1.0
    %v3758 = vrcp.pop %v3756
    %v3759 = vmul.f32 1.0, %v3758
    %v3760 = vrcp.pop %v3757
    %v3761 = vmul.f32 1.0, %v3760
    %3762 = vrot.lane.b32.xlu0 %v3744, 64
    %v3763 = vpop.permute.xlu0 %3762
    %3764 = vrot.lane.b32.xlu0 %v3745, 64
    %v3765 = vpop.permute.xlu0 %3764
    %v3768 = vmul.f32 %v3759, %v3763
    %v3769 = vmul.f32 %v3761, %v3765
    %3772 = vrot.lane.b32.xlu0 %v3768, 64
    %v3773 = vpop.permute.xlu0 %3772
    %3774 = vrot.lane.b32.xlu0 %v3769, 64
    %v3775 = vpop.permute.xlu0 %3774
    %v3778 = vadd.f32 %v3354, %v3773
    %v3779 = vadd.f32 %v3357, %v3775
    %v3780 = vtanh.pop %v3778
    %v3781 = vtanh.pop %v3779
    %v3782 = vsub.f32 1.0, %v3759
    %v3783 = vsub.f32 1.0, %v3761
    %3786 = vrot.lane.b32.xlu0 %v3780, 96
    %v3787 = vpop.permute.xlu0 %3786
    %3788 = vrot.lane.b32.xlu0 %v3781, 96
    %v3789 = vpop.permute.xlu0 %3788
    %v3792 = vmul.f32 %v3782, %v3787
    %v3793 = vmul.f32 %v3783, %v3789
    %v3795 = vrot.slane %v3697, 6
    %v3796 = vrot.slane %v3697, 7
    %3797 = vrot.lane.b32.xlu0 %v3795, 32
    %v3798 = vpop.permute.xlu0 %3797
    %3799 = vrot.lane.b32.xlu0 %v3796, 32
    %v3800 = vpop.permute.xlu0 %3799
    %v3803 = vmul.f32 %v3759, %v3798
    %v3804 = vmul.f32 %v3761, %v3800
    %v3805 = vadd.f32 %v3792, %v3803
    %v3806 = vadd.f32 %v3793, %v3804
    %vm3807 = vcmp.gt.s32.totalorder %v3367, 3
    %v3808 = vsel %vm3807, 1, 0
    %3809 = vset.pattern.permute.xlu0 0
    %3810 = vperm.xlu0 %3809, %v3808
    %v3811 = vpop.permute.xlu0 %3810
    %vm3812 = vcmp.eq.s32.totalorder %v3811, 1
    %v3815 = vrot.slane %v3805, 2
    %v3816 = vrot.slane %v3806, 1
    %v3817 = vsel %vm2131, %v3816, %v3815
    %3818 = vrot.lane.b32.xlu0 %v3817, 96
    %v3819 = vpop.permute.xlu0 %3818
    %v3821 = vsel %vm3812, %v3819, %v3697
    %v3822 = vsel %vm3812, %v3819, 0.0
    %v3823 = vpack.c.bf16 %v3821, %v3821
    %v3825 = vsel %vm811, %v3823, 0
    %3827 = vmatprep.subr.bf16.mxu0 0
    %3828 = vmatpush1.bf16.msra.mxu0 0
    %3829 = vmatprep.subr.bf16.mxu0 0
    %3830 = vmatpush1.bf16.msra.mxu0 0
    %3831 = vmatprep.subr.bf16.mxu0 0
    %3832 = vmatpush1.bf16.msra.mxu0 0
    %3833 = vmatprep.subr.bf16.mxu0 0
    %3834 = vmatpush1.bf16.msra.mxu0 0
    %3835 = vmatprep.subr.bf16.mxu0 0
    %3836 = vmatpush1.bf16.msra.mxu0 0
    %3837 = vmatprep.subr.bf16.mxu0 0
    %3838 = vmatpush1.bf16.msra.mxu0 0
    %3839 = vmatprep.subr.bf16.mxu0 0
    %3840 = vmatpush1.bf16.msra.mxu0 %v3365
    %3841 = vmatprep.subr.bf16.mxu0 0
    %3842 = vmatpush1.bf16.msra.mxu0 %v3364
    %3843 = vmatprep.subr.bf16.mxu0 0
    %3844 = vmatpush2.bf16.msra.mxu0 0
    %3845 = vmatprep.subr.bf16.mxu0 0
    %3846 = vmatpush2.bf16.msra.mxu0 0
    %3847 = vmatprep.subr.bf16.mxu0 0
    %3848 = vmatpush2.bf16.msra.mxu0 0
    %3849 = vmatprep.subr.bf16.mxu0 0
    %3850 = vmatpush2.bf16.msra.mxu0 0
    %3851 = vmatprep.subr.bf16.mxu0 0
    %3852 = vmatpush2.bf16.msra.mxu0 0
    %3853 = vmatprep.subr.bf16.mxu0 0
    %3854 = vmatpush2.bf16.msra.mxu0 0
    %3855 = vmatprep.subr.bf16.mxu0 0
    %3856 = vmatpush2.bf16.msra.mxu0 0
    %3857 = vmatprep.subr.bf16.mxu0 0
    %3858 = vmatpush2.bf16.msra.mxu0 0
    %3859 = vmatprep.mubr.bf16.mxu0 0
    %3860 = vmatmul.mubr.bf16.gmra.mxu0 %v3825
    %v3861 = vpop.f32.mrf.mxu0
    %v3862 = vadd.f32 %v3373, %v3861
    %v3863 = vpop.f32.mrf.mxu0
    %v3864 = vpop.f32.mrf.mxu0
    %v3865 = vpop.f32.mrf.mxu0
    %3866 = vdwg.mxu0
    %v3868 = vrot.slane %v3862, 5
    %v3869 = vrot.slane %v3862, 6
    %v3872 = vadd.f32 %v3354, %v3868
    %v3873 = vadd.f32 %v3357, %v3869
    %v3874 = vxor.u32 %v3872, 2147483648
    %v3875 = vxor.u32 %v3873, 2147483648
    %v3876 = vmul.f32 %v3874, 1.442695
    %v3877 = vpow.pop %v3876
    %v3878 = vmul.f32 %v3875, 1.442695
    %v3879 = vpow.pop %v3878
    %v3880 = vadd.f32 %v3877, 1.0
    %v3881 = vadd.f32 %v3879, 1.0
    %v3882 = vrcp.pop %v3880
    %v3883 = vmul.f32 1.0, %v3882
    %v3884 = vrcp.pop %v3881
    %v3885 = vmul.f32 1.0, %v3884
    %3886 = vrot.lane.b32.xlu0 %v3868, 64
    %v3887 = vpop.permute.xlu0 %3886
    %3888 = vrot.lane.b32.xlu0 %v3869, 64
    %v3889 = vpop.permute.xlu0 %3888
    %v3892 = vmul.f32 %v3883, %v3887
    %v3893 = vmul.f32 %v3885, %v3889
    %3896 = vrot.lane.b32.xlu0 %v3892, 64
    %v3897 = vpop.permute.xlu0 %3896
    %3898 = vrot.lane.b32.xlu0 %v3893, 64
    %v3899 = vpop.permute.xlu0 %3898
    %v3902 = vadd.f32 %v3354, %v3897
    %v3903 = vadd.f32 %v3357, %v3899
    %v3904 = vtanh.pop %v3902
    %v3905 = vtanh.pop %v3903
    %v3906 = vsub.f32 1.0, %v3883
    %v3907 = vsub.f32 1.0, %v3885
    %3910 = vrot.lane.b32.xlu0 %v3904, 96
    %v3911 = vpop.permute.xlu0 %3910
    %3912 = vrot.lane.b32.xlu0 %v3905, 96
    %v3913 = vpop.permute.xlu0 %3912
    %v3916 = vmul.f32 %v3906, %v3911
    %v3917 = vmul.f32 %v3907, %v3913
    %v3919 = vrot.slane %v3821, 5
    %v3920 = vrot.slane %v3821, 6
    %3921 = vrot.lane.b32.xlu0 %v3919, 32
    %v3922 = vpop.permute.xlu0 %3921
    %3923 = vrot.lane.b32.xlu0 %v3920, 32
    %v3924 = vpop.permute.xlu0 %3923
    %v3927 = vmul.f32 %v3883, %v3922
    %v3928 = vmul.f32 %v3885, %v3924
    %v3929 = vadd.f32 %v3916, %v3927
    %v3930 = vadd.f32 %v3917, %v3928
    %vm3931 = vcmp.gt.s32.totalorder %v3367, 4
    %v3932 = vsel %vm3931, 1, 0
    %3933 = vset.pattern.permute.xlu0 0
    %3934 = vperm.xlu0 %3933, %v3932
    %v3935 = vpop.permute.xlu0 %3934
    %vm3936 = vcmp.eq.s32.totalorder %v3935, 1
    %v3939 = vrot.slane %v3929, 3
    %v3940 = vrot.slane %v3930, 2
    %v3941 = vsel %vm2131, %v3940, %v3939
    %3942 = vrot.lane.b32.xlu0 %v3941, 96
    %v3943 = vpop.permute.xlu0 %3942
    %v3945 = vsel %vm3936, %v3943, %v3821
    %v3946 = vsel %vm3936, %v3943, 0.0
    %v3947 = vpack.c.bf16 %v3945, %v3945
    %v3949 = vsel %vm811, %v3947, 0
    %3951 = vmatprep.subr.bf16.mxu0 0
    %3952 = vmatpush1.bf16.msra.mxu0 0
    %3953 = vmatprep.subr.bf16.mxu0 0
    %3954 = vmatpush1.bf16.msra.mxu0 0
    %3955 = vmatprep.subr.bf16.mxu0 0
    %3956 = vmatpush1.bf16.msra.mxu0 0
    %3957 = vmatprep.subr.bf16.mxu0 0
    %3958 = vmatpush1.bf16.msra.mxu0 0
    %3959 = vmatprep.subr.bf16.mxu0 0
    %3960 = vmatpush1.bf16.msra.mxu0 0
    %3961 = vmatprep.subr.bf16.mxu0 0
    %3962 = vmatpush1.bf16.msra.mxu0 0
    %3963 = vmatprep.subr.bf16.mxu0 0
    %3964 = vmatpush1.bf16.msra.mxu0 %v3365
    %3965 = vmatprep.subr.bf16.mxu0 0
    %3966 = vmatpush1.bf16.msra.mxu0 %v3364
    %3967 = vmatprep.subr.bf16.mxu0 0
    %3968 = vmatpush2.bf16.msra.mxu0 0
    %3969 = vmatprep.subr.bf16.mxu0 0
    %3970 = vmatpush2.bf16.msra.mxu0 0
    %3971 = vmatprep.subr.bf16.mxu0 0
    %3972 = vmatpush2.bf16.msra.mxu0 0
    %3973 = vmatprep.subr.bf16.mxu0 0
    %3974 = vmatpush2.bf16.msra.mxu0 0
    %3975 = vmatprep.subr.bf16.mxu0 0
    %3976 = vmatpush2.bf16.msra.mxu0 0
    %3977 = vmatprep.subr.bf16.mxu0 0
    %3978 = vmatpush2.bf16.msra.mxu0 0
    %3979 = vmatprep.subr.bf16.mxu0 0
    %3980 = vmatpush2.bf16.msra.mxu0 0
    %3981 = vmatprep.subr.bf16.mxu0 0
    %3982 = vmatpush2.bf16.msra.mxu0 0
    %3983 = vmatprep.mubr.bf16.mxu0 0
    %3984 = vmatmul.mubr.bf16.gmra.mxu0 %v3949
    %v3985 = vpop.f32.mrf.mxu0
    %v3986 = vadd.f32 %v3373, %v3985
    %v3987 = vpop.f32.mrf.mxu0
    %v3988 = vpop.f32.mrf.mxu0
    %v3989 = vpop.f32.mrf.mxu0
    %3990 = vdwg.mxu0
    %v3992 = vrot.slane %v3986, 4
    %v3993 = vrot.slane %v3986, 5
    %v3996 = vadd.f32 %v3354, %v3992
    %v3997 = vadd.f32 %v3357, %v3993
    %v3998 = vxor.u32 %v3996, 2147483648
    %v3999 = vxor.u32 %v3997, 2147483648
    %v4000 = vmul.f32 %v3998, 1.442695
    %v4001 = vpow.pop %v4000
    %v4002 = vmul.f32 %v3999, 1.442695
    %v4003 = vpow.pop %v4002
    %v4004 = vadd.f32 %v4001, 1.0
    %v4005 = vadd.f32 %v4003, 1.0
    %v4006 = vrcp.pop %v4004
    %v4007 = vmul.f32 1.0, %v4006
    %v4008 = vrcp.pop %v4005
    %v4009 = vmul.f32 1.0, %v4008
    %4010 = vrot.lane.b32.xlu0 %v3992, 64
    %v4011 = vpop.permute.xlu0 %4010
    %4012 = vrot.lane.b32.xlu0 %v3993, 64
    %v4013 = vpop.permute.xlu0 %4012
    %v4016 = vmul.f32 %v4007, %v4011
    %v4017 = vmul.f32 %v4009, %v4013
    %4020 = vrot.lane.b32.xlu0 %v4016, 64
    %v4021 = vpop.permute.xlu0 %4020
    %4022 = vrot.lane.b32.xlu0 %v4017, 64
    %v4023 = vpop.permute.xlu0 %4022
    %v4026 = vadd.f32 %v3354, %v4021
    %v4027 = vadd.f32 %v3357, %v4023
    %v4028 = vtanh.pop %v4026
    %v4029 = vtanh.pop %v4027
    %v4030 = vsub.f32 1.0, %v4007
    %v4031 = vsub.f32 1.0, %v4009
    %4034 = vrot.lane.b32.xlu0 %v4028, 96
    %v4035 = vpop.permute.xlu0 %4034
    %4036 = vrot.lane.b32.xlu0 %v4029, 96
    %v4037 = vpop.permute.xlu0 %4036
    %v4040 = vmul.f32 %v4030, %v4035
    %v4041 = vmul.f32 %v4031, %v4037
    %v4043 = vrot.slane %v3945, 4
    %v4044 = vrot.slane %v3945, 5
    %4045 = vrot.lane.b32.xlu0 %v4043, 32
    %v4046 = vpop.permute.xlu0 %4045
    %4047 = vrot.lane.b32.xlu0 %v4044, 32
    %v4048 = vpop.permute.xlu0 %4047
    %v4051 = vmul.f32 %v4007, %v4046
    %v4052 = vmul.f32 %v4009, %v4048
    %v4053 = vadd.f32 %v4040, %v4051
    %v4054 = vadd.f32 %v4041, %v4052
    %vm4055 = vcmp.gt.s32.totalorder %v3367, 5
    %v4056 = vsel %vm4055, 1, 0
    %4057 = vset.pattern.permute.xlu0 0
    %4058 = vperm.xlu0 %4057, %v4056
    %v4059 = vpop.permute.xlu0 %4058
    %vm4060 = vcmp.eq.s32.totalorder %v4059, 1
    %v4063 = vrot.slane %v4053, 4
    %v4064 = vrot.slane %v4054, 3
    %v4065 = vsel %vm2131, %v4064, %v4063
    %4066 = vrot.lane.b32.xlu0 %v4065, 96
    %v4067 = vpop.permute.xlu0 %4066
    %v4069 = vsel %vm4060, %v4067, %v3945
    %v4070 = vsel %vm4060, %v4067, 0.0
    %v4071 = vpack.c.bf16 %v4069, %v4069
    %v4073 = vsel %vm811, %v4071, 0
    %4075 = vmatprep.subr.bf16.mxu0 0
    %4076 = vmatpush1.bf16.msra.mxu0 0
    %4077 = vmatprep.subr.bf16.mxu0 0
    %4078 = vmatpush1.bf16.msra.mxu0 0
    %4079 = vmatprep.subr.bf16.mxu0 0
    %4080 = vmatpush1.bf16.msra.mxu0 0
    %4081 = vmatprep.subr.bf16.mxu0 0
    %4082 = vmatpush1.bf16.msra.mxu0 0
    %4083 = vmatprep.subr.bf16.mxu0 0
    %4084 = vmatpush1.bf16.msra.mxu0 0
    %4085 = vmatprep.subr.bf16.mxu0 0
    %4086 = vmatpush1.bf16.msra.mxu0 0
    %4087 = vmatprep.subr.bf16.mxu0 0
    %4088 = vmatpush1.bf16.msra.mxu0 %v3365
    %4089 = vmatprep.subr.bf16.mxu0 0
    %4090 = vmatpush1.bf16.msra.mxu0 %v3364
    %4091 = vmatprep.subr.bf16.mxu0 0
    %4092 = vmatpush2.bf16.msra.mxu0 0
    %4093 = vmatprep.subr.bf16.mxu0 0
    %4094 = vmatpush2.bf16.msra.mxu0 0
    %4095 = vmatprep.subr.bf16.mxu0 0
    %4096 = vmatpush2.bf16.msra.mxu0 0
    %4097 = vmatprep.subr.bf16.mxu0 0
    %4098 = vmatpush2.bf16.msra.mxu0 0
    %4099 = vmatprep.subr.bf16.mxu0 0
    %4100 = vmatpush2.bf16.msra.mxu0 0
    %4101 = vmatprep.subr.bf16.mxu0 0
    %4102 = vmatpush2.bf16.msra.mxu0 0
    %4103 = vmatprep.subr.bf16.mxu0 0
    %4104 = vmatpush2.bf16.msra.mxu0 0
    %4105 = vmatprep.subr.bf16.mxu0 0
    %4106 = vmatpush2.bf16.msra.mxu0 0
    %4107 = vmatprep.mubr.bf16.mxu0 0
    %4108 = vmatmul.mubr.bf16.gmra.mxu0 %v4073
    %v4109 = vpop.f32.mrf.mxu0
    %v4110 = vadd.f32 %v3373, %v4109
    %v4111 = vpop.f32.mrf.mxu0
    %v4112 = vpop.f32.mrf.mxu0
    %v4113 = vpop.f32.mrf.mxu0
    %4114 = vdwg.mxu0
    %v4116 = vrot.slane %v4110, 3
    %v4117 = vrot.slane %v4110, 4
    %v4120 = vadd.f32 %v3354, %v4116
    %v4121 = vadd.f32 %v3357, %v4117
    %v4122 = vxor.u32 %v4120, 2147483648
    %v4123 = vxor.u32 %v4121, 2147483648
    %v4124 = vmul.f32 %v4122, 1.442695
    %v4125 = vpow.pop %v4124
    %v4126 = vmul.f32 %v4123, 1.442695
    %v4127 = vpow.pop %v4126
    %v4128 = vadd.f32 %v4125, 1.0
    %v4129 = vadd.f32 %v4127, 1.0
    %v4130 = vrcp.pop %v4128
    %v4131 = vmul.f32 1.0, %v4130
    %v4132 = vrcp.pop %v4129
    %v4133 = vmul.f32 1.0, %v4132
    %4134 = vrot.lane.b32.xlu0 %v4116, 64
    %v4135 = vpop.permute.xlu0 %4134
    %4136 = vrot.lane.b32.xlu0 %v4117, 64
    %v4137 = vpop.permute.xlu0 %4136
    %v4140 = vmul.f32 %v4131, %v4135
    %v4141 = vmul.f32 %v4133, %v4137
    %4144 = vrot.lane.b32.xlu0 %v4140, 64
    %v4145 = vpop.permute.xlu0 %4144
    %4146 = vrot.lane.b32.xlu0 %v4141, 64
    %v4147 = vpop.permute.xlu0 %4146
    %v4150 = vadd.f32 %v3354, %v4145
    %v4151 = vadd.f32 %v3357, %v4147
    %v4152 = vtanh.pop %v4150
    %v4153 = vtanh.pop %v4151
    %v4154 = vsub.f32 1.0, %v4131
    %v4155 = vsub.f32 1.0, %v4133
    %4158 = vrot.lane.b32.xlu0 %v4152, 96
    %v4159 = vpop.permute.xlu0 %4158
    %4160 = vrot.lane.b32.xlu0 %v4153, 96
    %v4161 = vpop.permute.xlu0 %4160
    %v4164 = vmul.f32 %v4154, %v4159
    %v4165 = vmul.f32 %v4155, %v4161
    %v4167 = vrot.slane %v4069, 3
    %v4168 = vrot.slane %v4069, 4
    %4169 = vrot.lane.b32.xlu0 %v4167, 32
    %v4170 = vpop.permute.xlu0 %4169
    %4171 = vrot.lane.b32.xlu0 %v4168, 32
    %v4172 = vpop.permute.xlu0 %4171
    %v4175 = vmul.f32 %v4131, %v4170
    %v4176 = vmul.f32 %v4133, %v4172
    %v4177 = vadd.f32 %v4164, %v4175
    %v4178 = vadd.f32 %v4165, %v4176
    %vm4179 = vcmp.gt.s32.totalorder %v3367, 6
    %v4180 = vsel %vm4179, 1, 0
    %4181 = vset.pattern.permute.xlu0 0
    %4182 = vperm.xlu0 %4181, %v4180
    %v4183 = vpop.permute.xlu0 %4182
    %vm4184 = vcmp.eq.s32.totalorder %v4183, 1
    %v4187 = vrot.slane %v4177, 5
    %v4188 = vrot.slane %v4178, 4
    %v4189 = vsel %vm2131, %v4188, %v4187
    %4190 = vrot.lane.b32.xlu0 %v4189, 96
    %v4191 = vpop.permute.xlu0 %4190
    %v4193 = vsel %vm4184, %v4191, %v4069
    %v4194 = vsel %vm4184, %v4191, 0.0
    %v4195 = vpack.c.bf16 %v4193, %v4193
    %v4197 = vsel %vm811, %v4195, 0
    %4199 = vmatprep.subr.bf16.mxu0 0
    %4200 = vmatpush1.bf16.msra.mxu0 0
    %4201 = vmatprep.subr.bf16.mxu0 0
    %4202 = vmatpush1.bf16.msra.mxu0 0
    %4203 = vmatprep.subr.bf16.mxu0 0
    %4204 = vmatpush1.bf16.msra.mxu0 0
    %4205 = vmatprep.subr.bf16.mxu0 0
    %4206 = vmatpush1.bf16.msra.mxu0 0
    %4207 = vmatprep.subr.bf16.mxu0 0
    %4208 = vmatpush1.bf16.msra.mxu0 0
    %4209 = vmatprep.subr.bf16.mxu0 0
    %4210 = vmatpush1.bf16.msra.mxu0 0
    %4211 = vmatprep.subr.bf16.mxu0 0
    %4212 = vmatpush1.bf16.msra.mxu0 %v3365
    %4213 = vmatprep.subr.bf16.mxu0 0
    %4214 = vmatpush1.bf16.msra.mxu0 %v3364
    %4215 = vmatprep.subr.bf16.mxu0 0
    %4216 = vmatpush2.bf16.msra.mxu0 0
    %4217 = vmatprep.subr.bf16.mxu0 0
    %4218 = vmatpush2.bf16.msra.mxu0 0
    %4219 = vmatprep.subr.bf16.mxu0 0
    %4220 = vmatpush2.bf16.msra.mxu0 0
    %4221 = vmatprep.subr.bf16.mxu0 0
    %4222 = vmatpush2.bf16.msra.mxu0 0
    %4223 = vmatprep.subr.bf16.mxu0 0
    %4224 = vmatpush2.bf16.msra.mxu0 0
    %4225 = vmatprep.subr.bf16.mxu0 0
    %4226 = vmatpush2.bf16.msra.mxu0 0
    %4227 = vmatprep.subr.bf16.mxu0 0
    %4228 = vmatpush2.bf16.msra.mxu0 0
    %4229 = vmatprep.subr.bf16.mxu0 0
    %4230 = vmatpush2.bf16.msra.mxu0 0
    %4231 = vmatprep.mubr.bf16.mxu0 0
    %4232 = vmatmul.mubr.bf16.gmra.mxu0 %v4197
    %v4233 = vpop.f32.mrf.mxu0
    %v4234 = vadd.f32 %v3373, %v4233
    %v4235 = vpop.f32.mrf.mxu0
    %v4236 = vpop.f32.mrf.mxu0
    %v4237 = vpop.f32.mrf.mxu0
    %4238 = vdwg.mxu0
    %v4240 = vrot.slane %v4234, 2
    %v4241 = vrot.slane %v4234, 3
    %v4244 = vadd.f32 %v3354, %v4240
    %v4245 = vadd.f32 %v3357, %v4241
    %v4246 = vxor.u32 %v4244, 2147483648
    %v4247 = vxor.u32 %v4245, 2147483648
    %v4248 = vmul.f32 %v4246, 1.442695
    %v4249 = vpow.pop %v4248
    %v4250 = vmul.f32 %v4247, 1.442695
    %v4251 = vpow.pop %v4250
    %v4252 = vadd.f32 %v4249, 1.0
    %v4253 = vadd.f32 %v4251, 1.0
    %v4254 = vrcp.pop %v4252
    %v4255 = vmul.f32 1.0, %v4254
    %v4256 = vrcp.pop %v4253
    %v4257 = vmul.f32 1.0, %v4256
    %4258 = vrot.lane.b32.xlu0 %v4240, 64
    %v4259 = vpop.permute.xlu0 %4258
    %4260 = vrot.lane.b32.xlu0 %v4241, 64
    %v4261 = vpop.permute.xlu0 %4260
    %v4264 = vmul.f32 %v4255, %v4259
    %v4265 = vmul.f32 %v4257, %v4261
    %4268 = vrot.lane.b32.xlu0 %v4264, 64
    %v4269 = vpop.permute.xlu0 %4268
    %4270 = vrot.lane.b32.xlu0 %v4265, 64
    %v4271 = vpop.permute.xlu0 %4270
    %v4274 = vadd.f32 %v3354, %v4269
    %v4275 = vadd.f32 %v3357, %v4271
    %v4276 = vtanh.pop %v4274
    %v4277 = vtanh.pop %v4275
    %v4278 = vsub.f32 1.0, %v4255
    %v4279 = vsub.f32 1.0, %v4257
    %4282 = vrot.lane.b32.xlu0 %v4276, 96
    %v4283 = vpop.permute.xlu0 %4282
    %4284 = vrot.lane.b32.xlu0 %v4277, 96
    %v4285 = vpop.permute.xlu0 %4284
    %v4288 = vmul.f32 %v4278, %v4283
    %v4289 = vmul.f32 %v4279, %v4285
    %v4291 = vrot.slane %v4193, 2
    %v4292 = vrot.slane %v4193, 3
    %4293 = vrot.lane.b32.xlu0 %v4291, 32
    %v4294 = vpop.permute.xlu0 %4293
    %4295 = vrot.lane.b32.xlu0 %v4292, 32
    %v4296 = vpop.permute.xlu0 %4295
    %v4299 = vmul.f32 %v4255, %v4294
    %v4300 = vmul.f32 %v4257, %v4296
    %v4301 = vadd.f32 %v4288, %v4299
    %v4302 = vadd.f32 %v4289, %v4300
    %vm4303 = vcmp.gt.s32.totalorder %v3367, 7
    %v4304 = vsel %vm4303, 1, 0
    %4305 = vset.pattern.permute.xlu0 0
    %4306 = vperm.xlu0 %4305, %v4304
    %v4307 = vpop.permute.xlu0 %4306
    %vm4308 = vcmp.eq.s32.totalorder %v4307, 1
    %v4311 = vrot.slane %v4301, 6
    %v4312 = vrot.slane %v4302, 5
    %v4313 = vsel %vm2131, %v4312, %v4311
    %4314 = vrot.lane.b32.xlu0 %v4313, 96
    %v4315 = vpop.permute.xlu0 %4314
    %v4317 = vsel %vm4308, %v4315, 0.0
    %v4320 = vunpack.c.l.s4 1966171168
    %v4321 = vunpack.c.0.s8 %v4320
    %v4322 = vlaneseq
    %v4323 = vshrl.u32 %v4322, 7
    %v4324 = vsub.s32 %v4321, %v4323
    %v4325 = vrot.slane %v3454, %v4324
    %v4326 = vcombine.high %v4325, %v4325
    %v4328 = vunpack.c.l.s4 1966171168
    %v4329 = vunpack.c.0.s8 %v4328
    %v4330 = vlaneseq
    %v4331 = vshrl.u32 %v4330, 7
    %v4332 = vsub.s32 %v4329, %v4331
    %v4333 = vrot.slane %v4325, %v4332
    %v4335 = vunpack.c.l.s4 1966171168
    %v4336 = vunpack.c.0.s8 %v4335
    %v4337 = vlaneseq
    %v4338 = vshrl.u32 %v4337, 7
    %v4339 = vsub.s32 %v4336, %v4338
    %v4340 = vrot.slane %v4326, %v4339
    %v4345 = vunpack.c.l.s4 1966171168
    %v4346 = vunpack.c.0.s8 %v4345
    %v4347 = vlaneseq
    %v4348 = vshrl.u32 %v4347, 7
    %v4349 = vsub.s32 %v4346, %v4348
    %v4350 = vrot.slane %v3577, %v4349
    %v4351 = vcombine.high %v4350, %v4350
    %v4353 = vunpack.c.l.s4 1966171168
    %v4354 = vunpack.c.0.s8 %v4353
    %v4355 = vlaneseq
    %v4356 = vshrl.u32 %v4355, 7
    %v4357 = vsub.s32 %v4354, %v4356
    %v4358 = vrot.slane %v4350, %v4357
    %v4360 = vunpack.c.l.s4 1966171168
    %v4361 = vunpack.c.0.s8 %v4360
    %v4362 = vlaneseq
    %v4363 = vshrl.u32 %v4362, 7
    %v4364 = vsub.s32 %v4361, %v4363
    %v4365 = vrot.slane %v4351, %v4364
    %v4368 = vunpack.c.l.s4 1966171168
    %v4369 = vunpack.c.0.s8 %v4368
    %v4370 = vlaneseq
    %v4371 = vshrl.u32 %v4370, 7
    %v4372 = vsub.s32 %v4369, %v4371
    %v4373 = vrot.slane %v3698, %v4372
    %v4374 = vcombine.high %v4373, %v4373
    %v4376 = vunpack.c.l.s4 1966171168
    %v4377 = vunpack.c.0.s8 %v4376
    %v4378 = vlaneseq
    %v4379 = vshrl.u32 %v4378, 7
    %v4380 = vsub.s32 %v4377, %v4379
    %v4381 = vrot.slane %v4373, %v4380
    %v4383 = vunpack.c.l.s4 1966171168
    %v4384 = vunpack.c.0.s8 %v4383
    %v4385 = vlaneseq
    %v4386 = vshrl.u32 %v4385, 7
    %v4387 = vsub.s32 %v4384, %v4386
    %v4388 = vrot.slane %v4374, %v4387
    %v4391 = vunpack.c.l.s4 1966171168
    %v4392 = vunpack.c.0.s8 %v4391
    %v4393 = vlaneseq
    %v4394 = vshrl.u32 %v4393, 7
    %v4395 = vsub.s32 %v4392, %v4394
    %v4396 = vrot.slane %v3822, %v4395
    %v4397 = vcombine.high %v4396, %v4396
    %v4399 = vunpack.c.l.s4 1966171168
    %v4400 = vunpack.c.0.s8 %v4399
    %v4401 = vlaneseq
    %v4402 = vshrl.u32 %v4401, 7
    %v4403 = vsub.s32 %v4400, %v4402
    %v4404 = vrot.slane %v4396, %v4403
    %v4406 = vunpack.c.l.s4 1966171168
    %v4407 = vunpack.c.0.s8 %v4406
    %v4408 = vlaneseq
    %v4409 = vshrl.u32 %v4408, 7
    %v4410 = vsub.s32 %v4407, %v4409
    %v4411 = vrot.slane %v4397, %v4410
    %v4414 = vunpack.c.l.s4 1966171168
    %v4415 = vunpack.c.0.s8 %v4414
    %v4416 = vlaneseq
    %v4417 = vshrl.u32 %v4416, 7
    %v4418 = vsub.s32 %v4415, %v4417
    %v4419 = vrot.slane %v3946, %v4418
    %v4420 = vcombine.high %v4419, %v4419
    %v4422 = vunpack.c.l.s4 1966171168
    %v4423 = vunpack.c.0.s8 %v4422
    %v4424 = vlaneseq
    %v4425 = vshrl.u32 %v4424, 7
    %v4426 = vsub.s32 %v4423, %v4425
    %v4427 = vrot.slane %v4419, %v4426
    %v4429 = vunpack.c.l.s4 1966171168
    %v4430 = vunpack.c.0.s8 %v4429
    %v4431 = vlaneseq
    %v4432 = vshrl.u32 %v4431, 7
    %v4433 = vsub.s32 %v4430, %v4432
    %v4434 = vrot.slane %v4420, %v4433
    %v4437 = vunpack.c.l.s4 1966171168
    %v4438 = vunpack.c.0.s8 %v4437
    %v4439 = vlaneseq
    %v4440 = vshrl.u32 %v4439, 7
    %v4441 = vsub.s32 %v4438, %v4440
    %v4442 = vrot.slane %v4070, %v4441
    %v4443 = vcombine.high %v4442, %v4442
    %v4445 = vunpack.c.l.s4 1966171168
    %v4446 = vunpack.c.0.s8 %v4445
    %v4447 = vlaneseq
    %v4448 = vshrl.u32 %v4447, 7
    %v4449 = vsub.s32 %v4446, %v4448
    %v4450 = vrot.slane %v4442, %v4449
    %v4452 = vunpack.c.l.s4 1966171168
    %v4453 = vunpack.c.0.s8 %v4452
    %v4454 = vlaneseq
    %v4455 = vshrl.u32 %v4454, 7
    %v4456 = vsub.s32 %v4453, %v4455
    %v4457 = vrot.slane %v4443, %v4456
    %v4460 = vunpack.c.l.s4 1966171168
    %v4461 = vunpack.c.0.s8 %v4460
    %v4462 = vlaneseq
    %v4463 = vshrl.u32 %v4462, 7
    %v4464 = vsub.s32 %v4461, %v4463
    %v4465 = vrot.slane %v4194, %v4464
    %v4466 = vcombine.high %v4465, %v4465
    %v4468 = vunpack.c.l.s4 1966171168
    %v4469 = vunpack.c.0.s8 %v4468
    %v4470 = vlaneseq
    %v4471 = vshrl.u32 %v4470, 7
    %v4472 = vsub.s32 %v4469, %v4471
    %v4473 = vrot.slane %v4465, %v4472
    %v4475 = vunpack.c.l.s4 1966171168
    %v4476 = vunpack.c.0.s8 %v4475
    %v4477 = vlaneseq
    %v4478 = vshrl.u32 %v4477, 7
    %v4479 = vsub.s32 %v4476, %v4478
    %v4480 = vrot.slane %v4466, %v4479
    %v4483 = vunpack.c.l.s4 1966171168
    %v4484 = vunpack.c.0.s8 %v4483
    %v4485 = vlaneseq
    %v4486 = vshrl.u32 %v4485, 7
    %v4487 = vsub.s32 %v4484, %v4486
    %v4488 = vrot.slane %v4317, %v4487
    %v4489 = vcombine.high %v4488, %v4488
    %v4491 = vunpack.c.l.s4 1966171168
    %v4492 = vunpack.c.0.s8 %v4491
    %v4493 = vlaneseq
    %v4494 = vshrl.u32 %v4493, 7
    %v4495 = vsub.s32 %v4492, %v4494
    %v4496 = vrot.slane %v4488, %v4495
    %v4498 = vunpack.c.l.s4 1966171168
    %v4499 = vunpack.c.0.s8 %v4498
    %v4500 = vlaneseq
    %v4501 = vshrl.u32 %v4500, 7
    %v4502 = vsub.s32 %v4499, %v4501
    %v4503 = vrot.slane %v4489, %v4502
    %v4504 = vlaneseq
    %v4505 = vshrl.u32 %v4504, 7
    %v4506 = vsub.s32 0, %v4505
    %v4507 = vrot.slane %v4358, %v4506
    %v4508 = vlaneseq
    %v4509 = vshrl.u32 %v4508, 7
    %v4510 = vsub.s32 0, %v4509
    %v4511 = vrot.slane %v4365, %v4510
    %4512 = vrot.lane.b32.xlu0 %v4507, 32
    %v4513 = vpop.permute.xlu0 %4512
    %4514 = vrot.lane.b32.xlu0 %v4511, 32
    %v4515 = vpop.permute.xlu0 %4514
    %v4518 = vlaneseq
    %v4519 = vshrl.u32 %v4518, 7
    %v4520 = vsub.s32 0, %v4519
    %v4521 = vrot.slane %v4381, %v4520
    %v4522 = vlaneseq
    %v4523 = vshrl.u32 %v4522, 7
    %v4524 = vsub.s32 0, %v4523
    %v4525 = vrot.slane %v4388, %v4524
    %4526 = vrot.lane.b32.xlu0 %v4521, 32
    %v4527 = vpop.permute.xlu0 %4526
    %4528 = vrot.lane.b32.xlu0 %v4525, 32
    %v4529 = vpop.permute.xlu0 %4528
    %v4532 = vlaneseq
    %v4533 = vshrl.u32 %v4532, 7
    %v4534 = vsub.s32 0, %v4533
    %v4535 = vrot.slane %v4404, %v4534
    %v4536 = vlaneseq
    %v4537 = vshrl.u32 %v4536, 7
    %v4538 = vsub.s32 0, %v4537
    %v4539 = vrot.slane %v4411, %v4538
    %4540 = vrot.lane.b32.xlu0 %v4535, 32
    %v4541 = vpop.permute.xlu0 %4540
    %4542 = vrot.lane.b32.xlu0 %v4539, 32
    %v4543 = vpop.permute.xlu0 %4542
    %v4546 = vlaneseq
    %v4547 = vshrl.u32 %v4546, 7
    %v4548 = vsub.s32 0, %v4547
    %v4549 = vrot.slane %v4427, %v4548
    %v4550 = vlaneseq
    %v4551 = vshrl.u32 %v4550, 7
    %v4552 = vsub.s32 0, %v4551
    %v4553 = vrot.slane %v4434, %v4552
    %4554 = vrot.lane.b32.xlu0 %v4549, 32
    %v4555 = vpop.permute.xlu0 %4554
    %4556 = vrot.lane.b32.xlu0 %v4553, 32
    %v4557 = vpop.permute.xlu0 %4556
    %v4560 = vlaneseq
    %v4561 = vshrl.u32 %v4560, 7
    %v4562 = vsub.s32 0, %v4561
    %v4563 = vrot.slane %v4450, %v4562
    %v4564 = vlaneseq
    %v4565 = vshrl.u32 %v4564, 7
    %v4566 = vsub.s32 0, %v4565
    %v4567 = vrot.slane %v4457, %v4566
    %4568 = vrot.lane.b32.xlu0 %v4563, 32
    %v4569 = vpop.permute.xlu0 %4568
    %4570 = vrot.lane.b32.xlu0 %v4567, 32
    %v4571 = vpop.permute.xlu0 %4570
    %v4574 = vlaneseq
    %v4575 = vshrl.u32 %v4574, 7
    %v4576 = vsub.s32 0, %v4575
    %v4577 = vrot.slane %v4473, %v4576
    %v4578 = vlaneseq
    %v4579 = vshrl.u32 %v4578, 7
    %v4580 = vsub.s32 0, %v4579
    %v4581 = vrot.slane %v4480, %v4580
    %4582 = vrot.lane.b32.xlu0 %v4577, 32
    %v4583 = vpop.permute.xlu0 %4582
    %4584 = vrot.lane.b32.xlu0 %v4581, 32
    %v4585 = vpop.permute.xlu0 %4584
    %v4588 = vlaneseq
    %v4589 = vshrl.u32 %v4588, 7
    %v4590 = vsub.s32 0, %v4589
    %v4591 = vrot.slane %v4496, %v4590
    %v4592 = vlaneseq
    %v4593 = vshrl.u32 %v4592, 7
    %v4594 = vsub.s32 0, %v4593
    %v4595 = vrot.slane %v4503, %v4594
    %4596 = vrot.lane.b32.xlu0 %v4591, 32
    %v4597 = vpop.permute.xlu0 %4596
    %4598 = vrot.lane.b32.xlu0 %v4595, 32
    %v4599 = vpop.permute.xlu0 %4598
    %vm4602 = vcmask 1040384
    %v4603 = vsel %vm4602, %v4333, %v4513
    %v4604 = vsel %vm4602, %v4340, %v4515
    %vm4605 = vcmask 1041408
    %v4606 = vsel %vm4605, %v4603, %v4527
    %v4607 = vsel %vm4605, %v4604, %v4529
    %vm4608 = vcmask 1042432
    %v4609 = vsel %vm4608, %v4606, %v4541
    %v4610 = vsel %vm4608, %v4607, %v4543
    %vm4611 = vcmask 1043456
    %v4612 = vsel %vm4611, %v4609, %v4555
    %v4613 = vsel %vm4611, %v4610, %v4557
    %vm4614 = vcmask 1044480
    %v4615 = vsel %vm4614, %v4612, %v4569
    %v4616 = vsel %vm4614, %v4613, %v4571
    %vm4617 = vcmask 1045504
    %v4618 = vsel %vm4617, %v4615, %v4583
    %v4619 = vsel %vm4617, %v4616, %v4585
    %vm4620 = vcmask 1046528
    %v4621 = vsel %vm4620, %v4618, %v4597
    %v4622 = vsel %vm4620, %v4619, %v4599
    %4625 = vrot.lane.b32.xlu0 %v4621, 96
    %v4626 = vpop.permute.xlu0 %4625
    %4627 = vrot.lane.b32.xlu0 %v4622, 96
    %v4628 = vpop.permute.xlu0 %4627
    %v4631 = vsel %vm811, %v4626, 0.0
    %4632 = vadd.xlane.f32.xlu0 %v4631
    %v4633 = vpop.xlane.xlu0 %4632
    %v4634 = vsel %vm811, %v4628, 0.0
    %4635 = vadd.xlane.f32.xlu0 %v4634
    %v4636 = vpop.xlane.xlu0 %4635
    %v4637 = vrcp.pop 32.0
    %v4638 = vmul.f32 %v4633, %v4637
    %v4639 = vmul.f32 %v4636, %v4637
    %v4640 = vsub.f32 %v4621, %v4638
    %v4641 = vsub.f32 %v4622, %v4639
    %v4642 = vmul.f32 %v4640, %v4640
    %v4643 = vmul.f32 %v4641, %v4641
    %4646 = vrot.lane.b32.xlu0 %v4642, 96
    %v4647 = vpop.permute.xlu0 %4646
    %4648 = vrot.lane.b32.xlu0 %v4643, 96
    %v4649 = vpop.permute.xlu0 %4648
    %v4652 = vsel %vm811, %v4647, 0.0
    %4653 = vadd.xlane.f32.xlu0 %v4652
    %v4654 = vpop.xlane.xlu0 %4653
    %v4655 = vsel %vm811, %v4649, 0.0
    %4656 = vadd.xlane.f32.xlu0 %v4655
    %v4657 = vpop.xlane.xlu0 %4656
    %v4658 = vmul.f32 %v4654, %v4637
    %v4659 = vmul.f32 %v4657, %v4637
    %v4660 = vadd.f32 %v4658, 1e-05
    %v4661 = vadd.f32 %v4659, 1e-05
    %v4662 = vrsqrt.pop %v4660
    %v4663 = vrsqrt.pop %v4661
    %v4664 = vmul.f32 %v4640, %v4662
    %v4665 = vmul.f32 %v4641, %v4663
    %v4666 = vld [vmem:[#allocation35] sm:$0x1]
    %v4668 = vlaneseq
    %v4669 = vshrl.u32 %v4668, 7
    %v4670 = vsub.s32 0, %v4669
    %v4671 = vrot.slane %v4666, %v4670
    %4672 = vrot.lane.b32.xlu0 %v4671, 32
    %v4673 = vpop.permute.xlu0 %4672
    %v4675 = vmul.f32 %v4664, %v4673
    %v4676 = vmul.f32 %v4665, %v4673
    %v4677 = vld [vmem:[#allocation37] sm:$0x1]
    %v4679 = vlaneseq
    %v4680 = vshrl.u32 %v4679, 7
    %v4681 = vsub.s32 0, %v4680
    %v4682 = vrot.slane %v4677, %v4681
    %4683 = vrot.lane.b32.xlu0 %v4682, 32
    %v4684 = vpop.permute.xlu0 %4683
    %v4686 = vadd.f32 %v4675, %v4684
    %v4687 = vadd.f32 %v4676, %v4684
    %v4688 = vld [vmem:[#allocation38] sm:$0xff]
    %v4689 = vld [vmem:[#allocation38 + $0x8] sm:$0xff]
    %v4690 = vld [vmem:[#allocation38 + $0x10] sm:$0xff]
    %v4691 = vld [vmem:[#allocation38 + $0x18] sm:$0xff]
    %v4692 = vpack.c.bf16 %v4687, %v4686
    %v4693 = vpack.c.bf16 %v4689, %v4688
    %v4694 = vpack.c.bf16 %v4691, %v4690
    %v4695 = vld [vmem:[#allocation40] sm:$0x1]
    %v4697 = vlaneseq
    %v4698 = vshrl.u32 %v4697, 7
    %v4699 = vsub.s32 0, %v4698
    %v4700 = vrot.slane %v4695, %v4699
    %4703 = vrot.lane.b32.xlu0 %v4692, 96
    %v4704 = vpop.permute.xlu0 %4703
    %v4706 = vsel %vm811, %v4704, 0
    %4708 = vmatprep.subr.bf16.mxu0 0
    %4709 = vmatpush1.bf16.msra.mxu0 0
    %4710 = vmatprep.subr.bf16.mxu0 0
    %4711 = vmatpush1.bf16.msra.mxu0 0
    %4712 = vmatprep.subr.bf16.mxu0 0
    %4713 = vmatpush1.bf16.msra.mxu0 0
    %4714 = vmatprep.subr.bf16.mxu0 0
    %4715 = vmatpush1.bf16.msra.mxu0 0
    %4716 = vmatprep.subr.bf16.mxu0 0
    %4717 = vmatpush1.bf16.msra.mxu0 0
    %4718 = vmatprep.subr.bf16.mxu0 0
    %4719 = vmatpush1.bf16.msra.mxu0 0
    %4720 = vmatprep.subr.bf16.mxu0 0
    %4721 = vmatpush1.bf16.msra.mxu0 %v4694
    %4722 = vmatprep.subr.bf16.mxu0 0
    %4723 = vmatpush1.bf16.msra.mxu0 %v4693
    %4724 = vmatprep.subr.bf16.mxu0 0
    %4725 = vmatpush2.bf16.msra.mxu0 0
    %4726 = vmatprep.subr.bf16.mxu0 0
    %4727 = vmatpush2.bf16.msra.mxu0 0
    %4728 = vmatprep.subr.bf16.mxu0 0
    %4729 = vmatpush2.bf16.msra.mxu0 0
    %4730 = vmatprep.subr.bf16.mxu0 0
    %4731 = vmatpush2.bf16.msra.mxu0 0
    %4732 = vmatprep.subr.bf16.mxu0 0
    %4733 = vmatpush2.bf16.msra.mxu0 0
    %4734 = vmatprep.subr.bf16.mxu0 0
    %4735 = vmatpush2.bf16.msra.mxu0 0
    %4736 = vmatprep.subr.bf16.mxu0 0
    %4737 = vmatpush2.bf16.msra.mxu0 0
    %4738 = vmatprep.subr.bf16.mxu0 0
    %4739 = vmatpush2.bf16.msra.mxu0 0
    %4740 = vmatprep.mubr.bf16.mxu0 0
    %4741 = vmatmul.mubr.bf16.gmra.mxu0 %v4706
    %v4742 = vpop.f32.mrf.mxu0
    %v4743 = vadd.f32 %v4700, %v4742
    %v4744 = vpop.f32.mrf.mxu0
    %v4745 = vpop.f32.mrf.mxu0
    %v4746 = vadd.f32 %v4700, %v4745
    %v4747 = vpop.f32.mrf.mxu0
    %4748 = vdwg.mxu0
    %4749 = vst.msk [vmem:[#allocation41] sm:$0xff] %vm564, %v4743
    %4750 = vst.msk [vmem:[#allocation41 + $0x8] sm:$0xff] %vm564, %v4746
    // Predicated region
    $region250: #{mst_oatd_forward.1} parent=1 // pred_check
      _
    $region251: #{mst_oatd_forward.1} parent=1 // pred_check_branch
      %4752 = sbr.rel (0) target = $region253
    $region252: #{mst_oatd_forward.1} parent=1 // pred_region
      %s4754 = ssub.s32 256, 256
      %4755 = vsyncadd [#allocation4], %s4754
      %s4756 = sshll.u32 [#allocation41], 4
      %s4757 = int_to_ptr.vmem [resolvable:$true] %s4756
      %4762 = dma.vmem_to_hbm [thread:$0]  %s4757, 256, %s75, [#allocation4], 128, 128, 8
    $region253: #{mst_oatd_forward.1} parent=1 // pred_fallthru
      _
    // Predicated region
    $region254: #{mst_oatd_forward.1} parent=1 // pred_check
      _
    $region255: #{mst_oatd_forward.1} parent=1 // pred_check_branch
      %4764 = sbr.rel (0) target = $region257
    $region256: #{mst_oatd_forward.1} parent=1 // pred_region
      _
    $region257: #{mst_oatd_forward.1} parent=1 // pred_fallthru
      _
    // Predicated region
    $region258: #{mst_oatd_forward.1} parent=1 // pred_check
      _
    $region259: #{mst_oatd_forward.1} parent=1 // pred_check_branch
      %4766 = sbr.rel (0) target = $region261
    $region260: #{mst_oatd_forward.1} parent=1 // pred_region
      %4767 = dma.done [#allocation4], 256
    $region261: #{mst_oatd_forward.1} parent=1 // pred_fallthru
      _
    // Predicated region
    $region262: #{mst_oatd_forward.1} parent=1 // pred_check
      _
    $region263: #{mst_oatd_forward.1} parent=1 // pred_check_branch
      %4769 = sbr.rel (0) target = $region265
    $region264: #{mst_oatd_forward.1} parent=1 // pred_region
      _
    $region265: #{mst_oatd_forward.1} parent=1 // pred_fallthru
      _
    %4770 = vsyncpa [#allocation3], 1
    %4771 = vsyncpa [#allocation6], 1
    %4772 = vsyncpa [#allocation9], 1
    %4773 = vsyncpa [#allocation12], 1
    %4774 = vsyncpa [#allocation15], 1
    %4775 = vsyncpa [#allocation18], 1
    %4776 = vsyncpa [#allocation21], 1
    %4777 = vsyncpa [#allocation24], 1
    %4778 = vsyncpa [#allocation27], 1
    %4779 = vsyncpa [#allocation30], 1
    %4780 = vsyncpa [#allocation33], 1
    %4781 = vsyncpa [#allocation36], 1
    %4782 = vsyncpa [#allocation39], 1
    %4783 = vsyncpa [#allocation4], 1

</llo_original>
